<compile_context>
chip_gen: v5e
topology: v5e:2x2
jax: 0.10.0
libtpu: 0.0.40
codegen_flags: <defaults>
</compile_context>

<pallas_src>
import functools

import jax
import jax.numpy as jnp
from jax.experimental import pallas as pl
from jax.experimental.pallas import tpu as pltpu

NEG_SLOPE = 0.01   # F.leaky_relu default negative_slope
BN_EPS = 1e-5      # nn.BatchNorm2d default eps
LANE = 128


def _leaky_relu(x):
    # max(x, a*x) == leaky_relu(x) for 0 < a < 1 -> single VPU max (no cmp+select)
    return jnp.maximum(x, NEG_SLOPE * x)


def _round_up(v, m):
    return (v + m - 1) // m * m


def residual_block_kernel(x_ref, w1_ref, b1_ref, w2_ref, b2_ref, ws_ref, bs_ref,
                          out_ref, h1_ref, *, TH, Wr, W, H):
    # x_ref  : (1, L1, Cin_p) bf16  flattened tile of the zero-padded image:
    #          TH+4 padded rows x Wr padded cols (1-row x halo + 1-row h1 halo),
    #          plus zero slack so every tap slice stays in bounds.
    # w1_ref : (3, 3*Cin_p, Cout_p)  bf16  conv1 weights, dy-major / dx-grouped
    #          along K, BN1 scale folded.
    # w2_ref : (3, 3*Cout_p, Cout_p) bf16  conv2 weights, BN2 scale folded.
    # ws_ref : (Cin_p, Cout_p)       bf16  1x1 shortcut weights, BN scale folded.
    # b*_ref : (1, Cout_p) f32       folded BN biases (accumulator init).
    # out_ref: (1, TH*Wr, Cout_p) f32  this tile's output rows (garbage cols kept).
    # h1_ref : (L2, Cout_p) bf16     scratch: this tile's zero-padded conv1 output.
    t = pl.program_id(1)
    M1 = (TH + 2) * Wr            # conv1 positions (TH output rows + 1-row halo each side)
    M2 = TH * Wr                  # conv2 / output positions
    cpad = out_ref.shape[-1]
    L2 = h1_ref.shape[0]

    def conv3x3(load, w_ref, bias, M):
        # Per-dy K-grouping: (M, 3*C) LHS from 3 dx-shifted contiguous slices ->
        # 3 MXU matmuls + 3 adds per conv instead of 9. Accumulator starts as the
        # folded BN bias (broadcast on first add).
        acc = bias                                    # (1, cpad) f32
        for dy in range(3):
            base = dy * Wr                            # sublane-aligned (Wr % 16 == 0)
            lhs = jnp.concatenate(
                [load(base, M), load(base + 1, M), load(base + 2, M)], axis=-1)
            acc = acc + jnp.dot(lhs, w_ref[dy], preferred_element_type=jnp.float32)
        return acc

    def xslice(start, size):
        return x_ref[0, start:start + size, :]

    # ---- conv1 (+ folded BN1) over the TH+2 halo rows
    acc1 = conv3x3(xslice, w1_ref, b1_ref[...], M1)

    # ---- validity mask, computed in-kernel (no lane-sparse operand):
    #      zero the garbage columns (col >= W) and the halo rows that fall outside
    #      the image; the zeros become exactly conv2's zero padding.
    flat = jax.lax.broadcasted_iota(jnp.int32, (M1, 1), 0)
    col_ok = (flat & (Wr - 1)) < W                     # Wr is a power of two
    lo = (1 - t * TH) * Wr                             # halo row r valid <=> 0 <= t*TH+r-1 < H,
    hi = (H + 1 - t * TH) * Wr                         # i.e. lo <= flat < hi (row-granular bounds)
    mask = (col_ok & (flat >= lo) & (flat < hi)).astype(jnp.float32)
    h1 = (_leaky_relu(acc1) * mask).astype(jnp.bfloat16)

    # ---- stage h1 as this tile's flattened zero-padded image (bf16 scratch).
    #      Data lands at offset 1: the masked garbage columns become the left/right
    #      zero borders and the recomputed halo rows are the top/bottom borders, so
    #      only the single front row and the small tail need zeroing.
    #      (Fallback if a bundle dump ever shows a big retile on this misaligned
    #       store: keep the staging buffer f32.)
    h1_ref[0:1, :] = jnp.zeros((1, cpad), jnp.bfloat16)
    h1_ref[1 + M1:L2, :] = jnp.zeros((L2 - 1 - M1, cpad), jnp.bfloat16)
    h1_ref[1:1 + M1, :] = h1

    def hslice(start, size):
        return h1_ref[start:start + size, :]

    # ---- conv2 (+ folded BN2) on this tile's TH output rows
    acc2 = conv3x3(hslice, w2_ref, b2_ref[...], M2)

    # ---- shortcut: 1x1 conv (+ folded BN) on this tile's original pixels
    xs = x_ref[0, 2 * Wr + 1:2 * Wr + 1 + M2, :]
    sc = bs_ref[...] + jnp.dot(xs, ws_ref[...], preferred_element_type=jnp.float32)

    out_ref[0] = _leaky_relu(acc2 + sc).astype(out_ref.dtype)


def _fold_bn(gamma, beta, mean, var):
    scale = gamma / jnp.sqrt(var + BN_EPS)
    bias = beta - mean * scale
    return scale, bias


def residual_block(x, params, *, row_tile=32):
    """x: (N, H, W, Cin) float32 NHWC. Returns (N, H, W, Cout) float32."""
    N, H, W, cin = x.shape
    cout = params["w1"].shape[-1]
    cin_p = _round_up(cin, LANE)
    cout_p = _round_up(cout, LANE)

    TH = max(1, min(row_tile, H))          # output rows per tile
    Hc = _round_up(H, TH)
    T = Hc // TH
    # power-of-two row stride: dy*Wr tap offsets sublane-aligned for bf16 and the
    # in-kernel row/col mask needs no vector integer division.
    Wr = max(16, pl.next_power_of_2(W + 2))
    L1 = _round_up((TH + 4) * Wr + 2, 16)  # per-tile flattened input length (+slack)
    L2 = _round_up((TH + 2) * Wr + 2, 16)  # staged h1 length (+slack)
    M2 = TH * Wr

    # --- fold BN scales into conv weights (biases applied as accumulator init) ---
    s1, b1 = _fold_bn(*params["bn1"])
    s2, b2 = _fold_bn(*params["bn2"])
    ss, bs = _fold_bn(*params["bns"])

    w1 = params["w1"] * s1                 # (3,3,cin,cout), scale over Cout
    w2 = params["w2"] * s2
    ws = params["ws"][0, 0] * ss           # (cin, cout)

    def pad_w3(w, ci, co):
        w = jnp.pad(w, ((0, 0), (0, 0), (0, ci - w.shape[2]), (0, co - w.shape[3])))
        # dy-major, dx grouped along K: K index = dx*ci + c  (matches in-kernel concat)
        return w.reshape(3, 3 * ci, co).astype(jnp.bfloat16)

    w1g = pad_w3(w1, cin_p, cout_p)
    w2g = pad_w3(w2, cout_p, cout_p)
    wsg = jnp.pad(ws, ((0, cin_p - cin), (0, cout_p - cout))).astype(jnp.bfloat16)

    def pad_b(b):
        return jnp.pad(b, (0, cout_p - cout)).reshape(1, cout_p).astype(jnp.float32)

    b1p, b2p, bsp = pad_b(b1), pad_b(b2), pad_b(bs)

    # --- padded image: 2 zero rows on top (1 real pad + 1 h1-halo slack), zero rows
    #     to Hc+4 at the bottom, 1 zero col left, zero cols to Wr on the right,
    #     channels zero-padded to a lane multiple. Then cut into overlapping row
    #     tiles of TH+4 padded rows (halo duplicated once, here in HBM), flatten,
    #     pad with slack, and cast to bf16 once (halves input DMA + VMEM).
    xp = jnp.pad(x, ((0, 0), (2, Hc + 2 - H), (1, Wr - W - 1), (0, cin_p - cin)))
    ridx = jnp.arange(T)[:, None] * TH + jnp.arange(TH + 4)[None, :]   # (T, TH+4)
    xt = xp[:, ridx]                                   # (N, T, TH+4, Wr, cin_p)
    xt = xt.reshape(N, T, (TH + 4) * Wr, cin_p)
    xt = jnp.pad(xt, ((0, 0), (0, 0), (0, L1 - (TH + 4) * Wr), (0, 0)))
    xt = xt.reshape(N, T * L1, cin_p).astype(jnp.bfloat16)

    # --- per-generation VMEM limit with headroom (don't request all of v7x's 64MiB)
    try:
        vmem_cap = int(pltpu.get_tpu_info().vmem_capacity_bytes)
    except Exception:
        vmem_cap = 64 * 1024 * 1024
    vmem_limit = min((vmem_cap * 3) // 4, 100 * 1024 * 1024)

    kernel = functools.partial(residual_block_kernel, TH=TH, Wr=Wr, W=W, H=H)

    out = pl.pallas_call(
        kernel,
        out_shape=jax.ShapeDtypeStruct((N, T * M2, cout_p), jnp.float32),
        grid=(N, T),
        in_specs=[
            pl.BlockSpec((1, L1, cin_p), lambda n, t: (n, t, 0)),
            pl.BlockSpec((3, 3 * cin_p, cout_p), lambda n, t: (0, 0, 0)),
            pl.BlockSpec((1, cout_p), lambda n, t: (0, 0)),
            pl.BlockSpec((3, 3 * cout_p, cout_p), lambda n, t: (0, 0, 0)),
            pl.BlockSpec((1, cout_p), lambda n, t: (0, 0)),
            pl.BlockSpec((cin_p, cout_p), lambda n, t: (0, 0)),
            pl.BlockSpec((1, cout_p), lambda n, t: (0, 0)),
        ],
        out_specs=pl.BlockSpec((1, M2, cout_p), lambda n, t: (n, t, 0)),
        scratch_shapes=[pltpu.VMEM((L2, cout_p), jnp.bfloat16)],
        compiler_params=pltpu.CompilerParams(
            dimension_semantics=("parallel", "parallel"),
            vmem_limit_bytes=vmem_limit),
    )(xt, w1g, b1p, w2g, b2p, wsg, bsp)

    # lane-dense tile layout -> logical NHWC output
    return out.reshape(N, Hc, Wr, cout_p)[:, :H, :W, :cout]


def ref_residual_block(x, params):
    """Pure-JAX f32 reference (same inference-mode BN)."""
    conv = functools.partial(
        jax.lax.conv_general_dilated,
        window_strides=(1, 1), padding="SAME",
        dimension_numbers=("NHWC", "HWIO", "NHWC"),
        precision=jax.lax.Precision.HIGHEST)

    def bn(y, p):
        gamma, beta, mean, var = p
        return (y - mean) * (gamma / jnp.sqrt(var + BN_EPS)) + beta

    out = _leaky_relu(bn(conv(x, params["w1"]), params["bn1"]))
    out = bn(conv(out, params["w2"]), params["bn2"])
    sc = bn(conv(x, params["ws"]), params["bns"])
    return _leaky_relu(out + sc)


if __name__ == "__main__":
    N, H, W = 2, 16, 16
    cin, cout = 4, 8     # in_channels != out_channels -> shortcut conv active

    k = jax.random.split(jax.random.PRNGKey(0), 16)

    def bn_params(k0, k1, k2, k3):
        return (1.0 + 0.1 * jax.random.normal(k0, (cout,), jnp.float32),   # gamma
                0.1 * jax.random.normal(k1, (cout,), jnp.float32),         # beta
                0.1 * jax.random.normal(k2, (cout,), jnp.float32),         # running_mean
                1.0 + 0.1 * jnp.abs(jax.random.normal(k3, (cout,), jnp.float32)))  # running_var

    params = {
        "w1": 0.2 * jax.random.normal(k[0], (3, 3, cin, cout), jnp.float32),
        "w2": 0.2 * jax.random.normal(k[1], (3, 3, cout, cout), jnp.float32),
        "ws": 0.2 * jax.random.normal(k[2], (1, 1, cin, cout), jnp.float32),
        "bn1": bn_params(k[3], k[4], k[5], k[6]),
        "bn2": bn_params(k[7], k[8], k[9], k[10]),
        "bns": bn_params(k[11], k[12], k[13], k[14]),
    }

    x = jax.random.normal(k[15], (N, H, W, cin), jnp.float32)

    # row_tile=8 -> 2 row tiles at H=16, exercising the halo / row-mask path.
    out = jax.block_until_ready(residual_block(x, params, row_tile=8))
    ref = ref_residual_block(x, params)

    assert out.shape == (N, H, W, cout), out.shape
    max_err = float(jnp.max(jnp.abs(out - ref)))
    # bf16 MXU operands (input quantized to bf16) with f32 accumulation vs f32 ref
    assert jnp.allclose(out, ref, rtol=5e-2, atol=5e-2), f"max_err={max_err}"
    print("KERNEL_OK")
</pallas_src>

<mosaic_0001>
module attributes {stable_mosaic.version = 11 : i64} {
  func.func @residual_block_kernel(%arg0: i32, %arg1: i32, %arg2: memref<1x400x128xbf16, #tpu.memory_space<vmem>>, %arg3: memref<3x384x128xbf16, #tpu.memory_space<vmem>>, %arg4: memref<1x128xf32, #tpu.memory_space<vmem>>, %arg5: memref<3x384x128xbf16, #tpu.memory_space<vmem>>, %arg6: memref<1x128xf32, #tpu.memory_space<vmem>>, %arg7: memref<128x128xbf16, #tpu.memory_space<vmem>>, %arg8: memref<1x128xf32, #tpu.memory_space<vmem>>, %arg9: memref<1x256x128xf32, #tpu.memory_space<vmem>>, %arg10: memref<336x128xbf16, #tpu.memory_space<vmem>>) attributes {dimension_semantics = [#tpu.dimension_semantics<parallel>, #tpu.dimension_semantics<parallel>], iteration_bounds = array<i64: 2, 2>, scalar_prefetch = 0 : i64, scratch_operands = 1 : i64, tpu.core_type = #tpu.core_type<tc>, window_params = [{transform_indices = @transform_0, window_bounds = array<i64: 1, 400, 128>}, {pipeline_mode = #tpu.pipeline_mode<synchronous>, transform_indices = @transform_1, window_bounds = array<i64: 3, 384, 128>}, {pipeline_mode = #tpu.pipeline_mode<synchronous>, transform_indices = @transform_2, window_bounds = array<i64: 1, 128>}, {pipeline_mode = #tpu.pipeline_mode<synchronous>, transform_indices = @transform_3, window_bounds = array<i64: 3, 384, 128>}, {pipeline_mode = #tpu.pipeline_mode<synchronous>, transform_indices = @transform_4, window_bounds = array<i64: 1, 128>}, {pipeline_mode = #tpu.pipeline_mode<synchronous>, transform_indices = @transform_5, window_bounds = array<i64: 128, 128>}, {pipeline_mode = #tpu.pipeline_mode<synchronous>, transform_indices = @transform_6, window_bounds = array<i64: 1, 128>}, {transform_indices = @transform_7, window_bounds = array<i64: 1, 256, 128>}]} {
    %c0 = arith.constant 0 : index
    %c0_0 = arith.constant 0 : index
    %0 = vector.load %arg4[%c0, %c0_0] : memref<1x128xf32, #tpu.memory_space<vmem>>, vector<1x128xf32>
    %c0_1 = arith.constant 0 : index
    %c0_2 = arith.constant 0 : index
    %c0_3 = arith.constant 0 : index
    %1 = vector.load %arg2[%c0_1, %c0_2, %c0_3] : memref<1x400x128xbf16, #tpu.memory_space<vmem>>, vector<1x320x128xbf16>
    %2 = vector.shape_cast %1 : vector<1x320x128xbf16> to vector<320x128xbf16>
    %c0_4 = arith.constant 0 : index
    %c1 = arith.constant 1 : index
    %c0_5 = arith.constant 0 : index
    %3 = vector.load %arg2[%c0_4, %c1, %c0_5] : memref<1x400x128xbf16, #tpu.memory_space<vmem>>, vector<1x320x128xbf16>
    %4 = vector.shape_cast %3 : vector<1x320x128xbf16> to vector<320x128xbf16>
    %c0_6 = arith.constant 0 : index
    %c2 = arith.constant 2 : index
    %c0_7 = arith.constant 0 : index
    %5 = vector.load %arg2[%c0_6, %c2, %c0_7] : memref<1x400x128xbf16, #tpu.memory_space<vmem>>, vector<1x320x128xbf16>
    %6 = vector.shape_cast %5 : vector<1x320x128xbf16> to vector<320x128xbf16>
    %7 = tpu.concatenate %2, %4, %6 in 1 : vector<320x128xbf16>, vector<320x128xbf16>, vector<320x128xbf16> -> vector<320x384xbf16>
    %c0_8 = arith.constant 0 : index
    %c0_9 = arith.constant 0 : index
    %c0_10 = arith.constant 0 : index
    %8 = vector.load %arg3[%c0_8, %c0_9, %c0_10] : memref<3x384x128xbf16, #tpu.memory_space<vmem>>, vector<1x384x128xbf16>
    %9 = vector.shape_cast %8 : vector<1x384x128xbf16> to vector<384x128xbf16>
    %cst = arith.constant dense<0.000000e+00> : vector<320x128xf32>
    %10 = tpu.matmul %7, %9, %cst {dimension_numbers = #tpu.dot_dimension_numbers<[1], [0], [0], [1], [0, 0, 1, 1], [], []>} : vector<320x384xbf16>, vector<384x128xbf16>, vector<320x128xf32> -> vector<320x128xf32>
    %11 = vector.broadcast %0 : vector<1x128xf32> to vector<320x128xf32>
    %12 = arith.addf %11, %10 : vector<320x128xf32>
    %c0_11 = arith.constant 0 : index
    %c32 = arith.constant 32 : index
    %c0_12 = arith.constant 0 : index
    %13 = vector.load %arg2[%c0_11, %c32, %c0_12] : memref<1x400x128xbf16, #tpu.memory_space<vmem>>, vector<1x320x128xbf16>
    %14 = vector.shape_cast %13 : vector<1x320x128xbf16> to vector<320x128xbf16>
    %c0_13 = arith.constant 0 : index
    %c33 = arith.constant 33 : index
    %c0_14 = arith.constant 0 : index
    %15 = vector.load %arg2[%c0_13, %c33, %c0_14] : memref<1x400x128xbf16, #tpu.memory_space<vmem>>, vector<1x320x128xbf16>
    %16 = vector.shape_cast %15 : vector<1x320x128xbf16> to vector<320x128xbf16>
    %c0_15 = arith.constant 0 : index
    %c34 = arith.constant 34 : index
    %c0_16 = arith.constant 0 : index
    %17 = vector.load %arg2[%c0_15, %c34, %c0_16] : memref<1x400x128xbf16, #tpu.memory_space<vmem>>, vector<1x320x128xbf16>
    %18 = vector.shape_cast %17 : vector<1x320x128xbf16> to vector<320x128xbf16>
    %19 = tpu.concatenate %14, %16, %18 in 1 : vector<320x128xbf16>, vector<320x128xbf16>, vector<320x128xbf16> -> vector<320x384xbf16>
    %c1_17 = arith.constant 1 : index
    %c0_18 = arith.constant 0 : index
    %c0_19 = arith.constant 0 : index
    %20 = vector.load %arg3[%c1_17, %c0_18, %c0_19] : memref<3x384x128xbf16, #tpu.memory_space<vmem>>, vector<1x384x128xbf16>
    %21 = vector.shape_cast %20 : vector<1x384x128xbf16> to vector<384x128xbf16>
    %cst_20 = arith.constant dense<0.000000e+00> : vector<320x128xf32>
    %22 = tpu.matmul %19, %21, %cst_20 {dimension_numbers = #tpu.dot_dimension_numbers<[1], [0], [0], [1], [0, 0, 1, 1], [], []>} : vector<320x384xbf16>, vector<384x128xbf16>, vector<320x128xf32> -> vector<320x128xf32>
    %23 = arith.addf %12, %22 : vector<320x128xf32>
    %c0_21 = arith.constant 0 : index
    %c64 = arith.constant 64 : index
    %c0_22 = arith.constant 0 : index
    %24 = vector.load %arg2[%c0_21, %c64, %c0_22] : memref<1x400x128xbf16, #tpu.memory_space<vmem>>, vector<1x320x128xbf16>
    %25 = vector.shape_cast %24 : vector<1x320x128xbf16> to vector<320x128xbf16>
    %c0_23 = arith.constant 0 : index
    %c65 = arith.constant 65 : index
    %c0_24 = arith.constant 0 : index
    %26 = vector.load %arg2[%c0_23, %c65, %c0_24] : memref<1x400x128xbf16, #tpu.memory_space<vmem>>, vector<1x320x128xbf16>
    %27 = vector.shape_cast %26 : vector<1x320x128xbf16> to vector<320x128xbf16>
    %c0_25 = arith.constant 0 : index
    %c66 = arith.constant 66 : index
    %c0_26 = arith.constant 0 : index
    %28 = vector.load %arg2[%c0_25, %c66, %c0_26] : memref<1x400x128xbf16, #tpu.memory_space<vmem>>, vector<1x320x128xbf16>
    %29 = vector.shape_cast %28 : vector<1x320x128xbf16> to vector<320x128xbf16>
    %30 = tpu.concatenate %25, %27, %29 in 1 : vector<320x128xbf16>, vector<320x128xbf16>, vector<320x128xbf16> -> vector<320x384xbf16>
    %c2_27 = arith.constant 2 : index
    %c0_28 = arith.constant 0 : index
    %c0_29 = arith.constant 0 : index
    %31 = vector.load %arg3[%c2_27, %c0_28, %c0_29] : memref<3x384x128xbf16, #tpu.memory_space<vmem>>, vector<1x384x128xbf16>
    %32 = vector.shape_cast %31 : vector<1x384x128xbf16> to vector<384x128xbf16>
    %cst_30 = arith.constant dense<0.000000e+00> : vector<320x128xf32>
    %33 = tpu.matmul %30, %32, %cst_30 {dimension_numbers = #tpu.dot_dimension_numbers<[1], [0], [0], [1], [0, 0, 1, 1], [], []>} : vector<320x384xbf16>, vector<384x128xbf16>, vector<320x128xf32> -> vector<320x128xf32>
    %34 = arith.addf %23, %33 : vector<320x128xf32>
    %35 = tpu.iota {dimensions = array<i32: 0>} : vector<320x1xi32>
    %c31_i32 = arith.constant 31 : i32
    %36 = vector.broadcast %c31_i32 : i32 to vector<320x1xi32>
    %37 = arith.andi %35, %36 : vector<320x1xi32>
    %c16_i32 = arith.constant 16 : i32
    %38 = vector.broadcast %c16_i32 : i32 to vector<320x1xi32>
    %39 = arith.cmpi slt, %37, %38 : vector<320x1xi32>
    %c8_i32 = arith.constant 8 : i32
    %40 = arith.muli %arg1, %c8_i32 : i32
    %c1_i32 = arith.constant 1 : i32
    %41 = arith.subi %c1_i32, %40 : i32
    %c32_i32 = arith.constant 32 : i32
    %42 = arith.muli %41, %c32_i32 : i32
    %c8_i32_31 = arith.constant 8 : i32
    %43 = arith.muli %arg1, %c8_i32_31 : i32
    %c17_i32 = arith.constant 17 : i32
    %44 = arith.subi %c17_i32, %43 : i32
    %c32_i32_32 = arith.constant 32 : i32
    %45 = arith.muli %44, %c32_i32_32 : i32
    %46 = vector.broadcast %42 : i32 to vector<320x1xi32>
    %47 = arith.cmpi sge, %35, %46 : vector<320x1xi32>
    %48 = arith.andi %39, %47 : vector<320x1xi1>
    %49 = vector.broadcast %45 : i32 to vector<320x1xi32>
    %50 = arith.cmpi slt, %35, %49 : vector<320x1xi32>
    %51 = arith.andi %48, %50 : vector<320x1xi1>
    %52 = arith.extui %51 : vector<320x1xi1> to vector<320x1xi32>
    %53 = arith.sitofp %52 : vector<320x1xi32> to vector<320x1xf32>
    %cst_33 = arith.constant 0.00999999977 : f32
    %54 = vector.broadcast %cst_33 : f32 to vector<320x128xf32>
    %55 = arith.mulf %54, %34 : vector<320x128xf32>
    %56 = arith.maximumf %34, %55 : vector<320x128xf32>
    %57 = vector.broadcast %53 : vector<320x1xf32> to vector<320x128xf32>
    %58 = arith.mulf %56, %57 : vector<320x128xf32>
    %59 = arith.truncf %58 : vector<320x128xf32> to vector<320x128xbf16>
    %cst_34 = arith.constant 0.000000e+00 : bf16
    %60 = vector.broadcast %cst_34 : bf16 to vector<1x128xbf16>
    %c0_35 = arith.constant 0 : index
    %c0_36 = arith.constant 0 : index
    %61 = vector.load %arg10[%c0_35, %c0_36] : memref<336x128xbf16, #tpu.memory_space<vmem>>, vector<1x128xbf16>
    tpu.vector_store %arg10[%c0_35, %c0_36], %60 {strides = array<i32>} : memref<336x128xbf16, #tpu.memory_space<vmem>>, vector<1x128xbf16>,
    %cst_37 = arith.constant 0.000000e+00 : bf16
    %62 = vector.broadcast %cst_37 : bf16 to vector<15x128xbf16>
    %c321 = arith.constant 321 : index
    %c0_38 = arith.constant 0 : index
    %63 = vector.load %arg10[%c321, %c0_38] : memref<336x128xbf16, #tpu.memory_space<vmem>>, vector<15x128xbf16>
    tpu.vector_store %arg10[%c321, %c0_38], %62 {strides = array<i32>} : memref<336x128xbf16, #tpu.memory_space<vmem>>, vector<15x128xbf16>,
    %c1_39 = arith.constant 1 : index
    %c0_40 = arith.constant 0 : index
    %64 = vector.load %arg10[%c1_39, %c0_40] : memref<336x128xbf16, #tpu.memory_space<vmem>>, vector<320x128xbf16>
    tpu.vector_store %arg10[%c1_39, %c0_40], %59 {strides = array<i32>} : memref<336x128xbf16, #tpu.memory_space<vmem>>, vector<320x128xbf16>,
    %c0_41 = arith.constant 0 : index
    %c0_42 = arith.constant 0 : index
    %65 = vector.load %arg6[%c0_41, %c0_42] : memref<1x128xf32, #tpu.memory_space<vmem>>, vector<1x128xf32>
    %c0_43 = arith.constant 0 : index
    %c0_44 = arith.constant 0 : index
    %66 = vector.load %arg10[%c0_43, %c0_44] : memref<336x128xbf16, #tpu.memory_space<vmem>>, vector<256x128xbf16>
    %c1_45 = arith.constant 1 : index
    %c0_46 = arith.constant 0 : index
    %67 = vector.load %arg10[%c1_45, %c0_46] : memref<336x128xbf16, #tpu.memory_space<vmem>>, vector<256x128xbf16>
    %c2_47 = arith.constant 2 : index
    %c0_48 = arith.constant 0 : index
    %68 = vector.load %arg10[%c2_47, %c0_48] : memref<336x128xbf16, #tpu.memory_space<vmem>>, vector<256x128xbf16>
    %69 = tpu.concatenate %66, %67, %68 in 1 : vector<256x128xbf16>, vector<256x128xbf16>, vector<256x128xbf16> -> vector<256x384xbf16>
    %c0_49 = arith.constant 0 : index
    %c0_50 = arith.constant 0 : index
    %c0_51 = arith.constant 0 : index
    %70 = vector.load %arg5[%c0_49, %c0_50, %c0_51] : memref<3x384x128xbf16, #tpu.memory_space<vmem>>, vector<1x384x128xbf16>
    %71 = vector.shape_cast %70 : vector<1x384x128xbf16> to vector<384x128xbf16>
    %cst_52 = arith.constant dense<0.000000e+00> : vector<256x128xf32>
    %72 = tpu.matmul %69, %71, %cst_52 {dimension_numbers = #tpu.dot_dimension_numbers<[1], [0], [0], [1], [0, 0, 1, 1], [], []>} : vector<256x384xbf16>, vector<384x128xbf16>, vector<256x128xf32> -> vector<256x128xf32>
    %73 = vector.broadcast %65 : vector<1x128xf32> to vector<256x128xf32>
    %74 = arith.addf %73, %72 : vector<256x128xf32>
    %c32_53 = arith.constant 32 : index
    %c0_54 = arith.constant 0 : index
    %75 = vector.load %arg10[%c32_53, %c0_54] : memref<336x128xbf16, #tpu.memory_space<vmem>>, vector<256x128xbf16>
    %c33_55 = arith.constant 33 : index
    %c0_56 = arith.constant 0 : index
    %76 = vector.load %arg10[%c33_55, %c0_56] : memref<336x128xbf16, #tpu.memory_space<vmem>>, vector<256x128xbf16>
    %c34_57 = arith.constant 34 : index
    %c0_58 = arith.constant 0 : index
    %77 = vector.load %arg10[%c34_57, %c0_58] : memref<336x128xbf16, #tpu.memory_space<vmem>>, vector<256x128xbf16>
    %78 = tpu.concatenate %75, %76, %77 in 1 : vector<256x128xbf16>, vector<256x128xbf16>, vector<256x128xbf16> -> vector<256x384xbf16>
    %c1_59 = arith.constant 1 : index
    %c0_60 = arith.constant 0 : index
    %c0_61 = arith.constant 0 : index
    %79 = vector.load %arg5[%c1_59, %c0_60, %c0_61] : memref<3x384x128xbf16, #tpu.memory_space<vmem>>, vector<1x384x128xbf16>
    %80 = vector.shape_cast %79 : vector<1x384x128xbf16> to vector<384x128xbf16>
    %cst_62 = arith.constant dense<0.000000e+00> : vector<256x128xf32>
    %81 = tpu.matmul %78, %80, %cst_62 {dimension_numbers = #tpu.dot_dimension_numbers<[1], [0], [0], [1], [0, 0, 1, 1], [], []>} : vector<256x384xbf16>, vector<384x128xbf16>, vector<256x128xf32> -> vector<256x128xf32>
    %82 = arith.addf %74, %81 : vector<256x128xf32>
    %c64_63 = arith.constant 64 : index
    %c0_64 = arith.constant 0 : index
    %83 = vector.load %arg10[%c64_63, %c0_64] : memref<336x128xbf16, #tpu.memory_space<vmem>>, vector<256x128xbf16>
    %c65_65 = arith.constant 65 : index
    %c0_66 = arith.constant 0 : index
    %84 = vector.load %arg10[%c65_65, %c0_66] : memref<336x128xbf16, #tpu.memory_space<vmem>>, vector<256x128xbf16>
    %c66_67 = arith.constant 66 : index
    %c0_68 = arith.constant 0 : index
    %85 = vector.load %arg10[%c66_67, %c0_68] : memref<336x128xbf16, #tpu.memory_space<vmem>>, vector<256x128xbf16>
    %86 = tpu.concatenate %83, %84, %85 in 1 : vector<256x128xbf16>, vector<256x128xbf16>, vector<256x128xbf16> -> vector<256x384xbf16>
    %c2_69 = arith.constant 2 : index
    %c0_70 = arith.constant 0 : index
    %c0_71 = arith.constant 0 : index
    %87 = vector.load %arg5[%c2_69, %c0_70, %c0_71] : memref<3x384x128xbf16, #tpu.memory_space<vmem>>, vector<1x384x128xbf16>
    %88 = vector.shape_cast %87 : vector<1x384x128xbf16> to vector<384x128xbf16>
    %cst_72 = arith.constant dense<0.000000e+00> : vector<256x128xf32>
    %89 = tpu.matmul %86, %88, %cst_72 {dimension_numbers = #tpu.dot_dimension_numbers<[1], [0], [0], [1], [0, 0, 1, 1], [], []>} : vector<256x384xbf16>, vector<384x128xbf16>, vector<256x128xf32> -> vector<256x128xf32>
    %90 = arith.addf %82, %89 : vector<256x128xf32>
    %c0_73 = arith.constant 0 : index
    %c65_74 = arith.constant 65 : index
    %c0_75 = arith.constant 0 : index
    %91 = vector.load %arg2[%c0_73, %c65_74, %c0_75] : memref<1x400x128xbf16, #tpu.memory_space<vmem>>, vector<1x256x128xbf16>
    %92 = vector.shape_cast %91 : vector<1x256x128xbf16> to vector<256x128xbf16>
    %c0_76 = arith.constant 0 : index
    %c0_77 = arith.constant 0 : index
    %93 = vector.load %arg8[%c0_76, %c0_77] : memref<1x128xf32, #tpu.memory_space<vmem>>, vector<1x128xf32>
    %c0_78 = arith.constant 0 : index
    %c0_79 = arith.constant 0 : index
    %94 = vector.load %arg7[%c0_78, %c0_79] : memref<128x128xbf16, #tpu.memory_space<vmem>>, vector<128x128xbf16>
    %cst_80 = arith.constant dense<0.000000e+00> : vector<256x128xf32>
    %95 = tpu.matmul %92, %94, %cst_80 {dimension_numbers = #tpu.dot_dimension_numbers<[1], [0], [0], [1], [0, 0, 1, 1], [], []>} : vector<256x128xbf16>, vector<128x128xbf16>, vector<256x128xf32> -> vector<256x128xf32>
    %96 = vector.broadcast %93 : vector<1x128xf32> to vector<256x128xf32>
    %97 = arith.addf %96, %95 : vector<256x128xf32>
    %98 = arith.addf %90, %97 : vector<256x128xf32>
    %cst_81 = arith.constant 0.00999999977 : f32
    %99 = vector.broadcast %cst_81 : f32 to vector<256x128xf32>
    %100 = arith.mulf %99, %98 : vector<256x128xf32>
    %101 = arith.maximumf %98, %100 : vector<256x128xf32>
    %c0_82 = arith.constant 0 : index
    %c0_83 = arith.constant 0 : index
    %c0_84 = arith.constant 0 : index
    %102 = vector.load %arg9[%c0_82, %c0_83, %c0_84] : memref<1x256x128xf32, #tpu.memory_space<vmem>>, vector<1x256x128xf32>
    %103 = vector.shape_cast %102 : vector<1x256x128xf32> to vector<256x128xf32>
    %104 = vector.shape_cast %101 : vector<256x128xf32> to vector<1x256x128xf32>
    tpu.vector_store %arg9[%c0_82, %c0_83, %c0_84], %104 {strides = array<i32>} : memref<1x256x128xf32, #tpu.memory_space<vmem>>, vector<1x256x128xf32>,
    return
  }
  func.func @transform_0(%arg0: i32, %arg1: i32) -> (i32, i32, i32) {
    %c0_i32 = arith.constant 0 : i32
    %c0_i32_0 = arith.constant 0 : i32
    return %arg0, %arg1, %c0_i32 : i32, i32, i32
  }
  func.func @transform_1(%arg0: i32, %arg1: i32) -> (i32, i32, i32) {
    %c0_i32 = arith.constant 0 : i32
    %c0_i32_0 = arith.constant 0 : i32
    %c0_i32_1 = arith.constant 0 : i32
    %c0_i32_2 = arith.constant 0 : i32
    return %c0_i32, %c0_i32_0, %c0_i32_1 : i32, i32, i32
  }
  func.func @transform_2(%arg0: i32, %arg1: i32) -> (i32, i32) {
    %c0_i32 = arith.constant 0 : i32
    %c0_i32_0 = arith.constant 0 : i32
    %c0_i32_1 = arith.constant 0 : i32
    return %c0_i32, %c0_i32_0 : i32, i32
  }
  func.func @transform_3(%arg0: i32, %arg1: i32) -> (i32, i32, i32) {
    %c0_i32 = arith.constant 0 : i32
    %c0_i32_0 = arith.constant 0 : i32
    %c0_i32_1 = arith.constant 0 : i32
    %c0_i32_2 = arith.constant 0 : i32
    return %c0_i32, %c0_i32_0, %c0_i32_1 : i32, i32, i32
  }
  func.func @transform_4(%arg0: i32, %arg1: i32) -> (i32, i32) {
    %c0_i32 = arith.constant 0 : i32
    %c0_i32_0 = arith.constant 0 : i32
    %c0_i32_1 = arith.constant 0 : i32
    return %c0_i32, %c0_i32_0 : i32, i32
  }
  func.func @transform_5(%arg0: i32, %arg1: i32) -> (i32, i32) {
    %c0_i32 = arith.constant 0 : i32
    %c0_i32_0 = arith.constant 0 : i32
    %c0_i32_1 = arith.constant 0 : i32
    return %c0_i32, %c0_i32_0 : i32, i32
  }
  func.func @transform_6(%arg0: i32, %arg1: i32) -> (i32, i32) {
    %c0_i32 = arith.constant 0 : i32
    %c0_i32_0 = arith.constant 0 : i32
    %c0_i32_1 = arith.constant 0 : i32
    return %c0_i32, %c0_i32_0 : i32, i32
  }
  func.func @transform_7(%arg0: i32, %arg1: i32) -> (i32, i32, i32) {
    %c0_i32 = arith.constant 0 : i32
    %c0_i32_0 = arith.constant 0 : i32
    return %arg0, %arg1, %c0_i32 : i32, i32, i32
  }
}

</mosaic_0001>

<llo_original>
// kernel: tpu_custom_call.1
$region0: #{tpu_custom_call.1}
  #allocation0 [shape = 'u32[]', space=smem, size = 0x4, offset = 0x4, fixed_abs, tag = 'smem constant byte address 0x4 - core index']
  #allocation1 [shape = 'u32[72,128]{1,0:T(1,128)}', space=vmem, size = 0x9000, scoped, tag = 'internal scratch']
  #allocation2 [shape = 'bf16[336,128]{1,0:T(8,128)(2,1)}', space=vmem, size = 0x15000, scoped, tag = 'scratch operand']
  %s0 = inlined_call_operand.hbm [shape: bf16[2,800,128], index: 0, kind: input, shape index: {}]
  %s1 = inlined_call_operand.hbm [shape: bf16[3,384,128], index: 1, kind: input, shape index: {}]
  %s2 = inlined_call_operand.vmem [shape: f32[1,128], index: 2, kind: input, shape index: {}]
  %s3 = inlined_call_operand.hbm [shape: bf16[3,384,128], index: 3, kind: input, shape index: {}]
  %s4 = inlined_call_operand.vmem [shape: f32[1,128], index: 4, kind: input, shape index: {}]
  %s5 = inlined_call_operand.hbm [shape: bf16[128,128], index: 5, kind: input, shape index: {}]
  %s6 = inlined_call_operand.vmem [shape: f32[1,128], index: 6, kind: input, shape index: {}]
  %s7 = inlined_call_operand.hbm [shape: f32[2,512,128], index: 7, kind: output, shape index: {}]
  %s8 = sld [smem:[#allocation0]]
  $region77: #{tpu_custom_call.1} parent=0
    _
  %s10 = ssub.s32 1, %s8
  %s11 = scalar_select 0, %s10, %s8
  $region1: #{tpu_custom_call.1} parent=0
    #allocation3 [shape = 'u8[204800]{0}', space=vmem, size = 0x32000, scoped, tag = 'input window, operand 0']
    #allocation4 [shape = 's32[2]{0}', space=sflag, size = 0x8, scoped, tag = 'scoped memory for tpu_custom_call.1']
    #allocation5 [shape = 's32[2]{0}', space=sflag, size = 0x8, scoped, tag = 'scoped memory for tpu_custom_call.1']
    #allocation6 [shape = 'u8[294912]{0}', space=vmem, size = 0x48000, scoped, tag = 'input window, operand 1, single buffered']
    #allocation7 [shape = 's32[1]{0}', space=sflag, size = 0x4, scoped, tag = 'scoped memory for tpu_custom_call.1']
    #allocation8 [shape = 'u8[294912]{0}', space=vmem, size = 0x48000, scoped, tag = 'input window, operand 3, single buffered']
    #allocation9 [shape = 'u8[32768]{0}', space=vmem, size = 0x8000, scoped, tag = 'input window, operand 5, single buffered']
    #allocation10 [shape = 's32[1]{0}', space=sflag, size = 0x4, scoped, tag = 'scoped memory for tpu_custom_call.1']
    #allocation11 [shape = 'u8[262144]{0}', space=vmem, size = 0x40000, scoped, tag = 'output window, operand 0']
    %12 = vsyncpa [#allocation4], 0
    %s13 = scalar_lea.sflag [#allocation4], 1
    %14 = vsyncpa %s13, 0
    %15 = vsyncpa [#allocation7], 0
    %16 = vsyncpa [#allocation10], 0
    %17 = vsyncpa [#allocation5], 0
    %s18 = scalar_lea.sflag [#allocation5], 1
    %19 = vsyncpa %s18, 0
    loop: start=0, step=1, limit=6
    $region2: #{tpu_custom_call.1} parent=1 // loop_pre_header
      _
    $region3: #{tpu_custom_call.1} parent=1 // loop_header
      %s21 = sphi 0, %s25
      %p22 = scmp.ge.s32.totalorder %s21, 6
      %s28 = sphi 0, %s40
      %s29 = sphi 0, %s36
      %s30 = sphi 0, %s28
      %s31 = sphi 0, %s29
      %s32 = sphi 0, %s30
      %s33 = sphi 0, %s31
      %s45 = sphi 0, %s47
      %s48 = sphi 0, %s45
      %s49 = sphi 0, %s48
      %s65 = sphi 0, %s49
      %s69 = sphi 0, %s69
      %s71 = sphi 0, %s69
      %s72 = sphi 0, %s71
      %s86 = sphi 0, %s72
      %s90 = sphi 0, %s90
      %s92 = sphi 0, %s90
      %s93 = sphi 0, %s92
      %s107 = sphi 0, %s93
      %s111 = sphi 0, %s111
      %s113 = sphi 0, %s111
      %s114 = sphi 0, %s113
      %s128 = sphi 0, %s114
      %s132 = sphi 0, %s132
      %s134 = sphi 0, %s132
      %s135 = sphi 0, %s134
      %s149 = sphi 0, %s135
      %s153 = sphi 0, %s153
      %s155 = sphi 0, %s153
      %s156 = sphi 0, %s155
      %s170 = sphi 0, %s156
      %s174 = sphi 0, %s174
      %s176 = sphi 0, %s174
      %s177 = sphi 0, %s176
      %s191 = sphi 0, %s177
      %s199 = sphi 0, %s201
      %s202 = sphi 0, %s199
      %s203 = sphi 0, %s202
      %s219 = sphi 0, %s203
    $region4: #{tpu_custom_call.1} parent=1 // loop_header_branch
      %24 = sbr.rel (%p22) target = $region8
    $region5: #{tpu_custom_call.1} parent=1 // loop_body
      %s26 = ssub.s32 %s21, 1
      %s27 = ssub.s32 %s21, 2
      %s34 = sadd.s32 1, %s29
      %p35 = scmp.ge.s32.totalorder %s34, 2
      %s36 = scalar_select %p35, 0, %s34
      %s37 = sadd.s32 1, %s28
      %s38 = scalar_select %p35, %s37, %s28
      %p39 = scmp.ge.s32.totalorder %s38, 2
      %s40 = scalar_select %p39, 0, %s38
      %s41 = ssub.s32 %s28, %s40
      %s42 = ssub.s32 %s29, %s36
      %s43 = sor.u32 %s41, %s42
      %p44 = scmp.eq.s32.totalorder %s43, 0
      %s46 = sadd.s32 %s45, 1
      %s47 = scalar_select %p44, %s45, %s46
      %p50 = pneg %p44
      %p51 = scmp.eq.s32.totalorder %s21, 3
      %p52 = por %p50, %p51
      %p53 = scmp.ne.s32.totalorder %s45, %s48
      %p54 = scmp.eq.s32.totalorder %s21, 0
      %p55 = por %p53, %p54
      %p56 = scmp.ne.s32.totalorder %s45, %s48
      %p57 = scmp.eq.s32.totalorder %s26, 3
      %p58 = por %p56, %p57
      %p59 = scmp.ne.s32.totalorder %s48, %s49
      %p60 = scmp.eq.s32.totalorder %s26, 0
      %p61 = por %p59, %p60
      %p62 = scmp.ne.s32.totalorder %s48, %s49
      %p63 = scmp.eq.s32.totalorder %s27, 3
      %p64 = por %p62, %p63
      %p66 = scmp.ne.s32.totalorder %s49, %s65
      %p67 = scmp.eq.s32.totalorder %s27, 0
      %p68 = por %p66, %p67
      %s70 = sadd.s32 %s69, 1
      %p73 = scmp.eq.s32.totalorder %s21, 3
      %p74 = scmp.ne.s32.totalorder %s69, %s71
      %p75 = scmp.eq.s32.totalorder %s21, 0
      %p76 = por %p74, %p75
      %p77 = scmp.ne.s32.totalorder %s69, %s71
      %p78 = scmp.eq.s32.totalorder %s26, 3
      %p79 = por %p77, %p78
      %p80 = scmp.ne.s32.totalorder %s71, %s72
      %p81 = scmp.eq.s32.totalorder %s26, 0
      %p82 = por %p80, %p81
      %p83 = scmp.ne.s32.totalorder %s71, %s72
      %p84 = scmp.eq.s32.totalorder %s27, 3
      %p85 = por %p83, %p84
      %p87 = scmp.ne.s32.totalorder %s72, %s86
      %p88 = scmp.eq.s32.totalorder %s27, 0
      %p89 = por %p87, %p88
      %s91 = sadd.s32 %s90, 1
      %p94 = scmp.eq.s32.totalorder %s21, 3
      %p95 = scmp.ne.s32.totalorder %s90, %s92
      %p96 = scmp.eq.s32.totalorder %s21, 0
      %p97 = por %p95, %p96
      %p98 = scmp.ne.s32.totalorder %s90, %s92
      %p99 = scmp.eq.s32.totalorder %s26, 3
      %p100 = por %p98, %p99
      %p101 = scmp.ne.s32.totalorder %s92, %s93
      %p102 = scmp.eq.s32.totalorder %s26, 0
      %p103 = por %p101, %p102
      %p104 = scmp.ne.s32.totalorder %s92, %s93
      %p105 = scmp.eq.s32.totalorder %s27, 3
      %p106 = por %p104, %p105
      %p108 = scmp.ne.s32.totalorder %s93, %s107
      %p109 = scmp.eq.s32.totalorder %s27, 0
      %p110 = por %p108, %p109
      %s112 = sadd.s32 %s111, 1
      %p115 = scmp.eq.s32.totalorder %s21, 3
      %p116 = scmp.ne.s32.totalorder %s111, %s113
      %p117 = scmp.eq.s32.totalorder %s21, 0
      %p118 = por %p116, %p117
      %p119 = scmp.ne.s32.totalorder %s111, %s113
      %p120 = scmp.eq.s32.totalorder %s26, 3
      %p121 = por %p119, %p120
      %p122 = scmp.ne.s32.totalorder %s113, %s114
      %p123 = scmp.eq.s32.totalorder %s26, 0
      %p124 = por %p122, %p123
      %p125 = scmp.ne.s32.totalorder %s113, %s114
      %p126 = scmp.eq.s32.totalorder %s27, 3
      %p127 = por %p125, %p126
      %p129 = scmp.ne.s32.totalorder %s114, %s128
      %p130 = scmp.eq.s32.totalorder %s27, 0
      %p131 = por %p129, %p130
      %s133 = sadd.s32 %s132, 1
      %p136 = scmp.eq.s32.totalorder %s21, 3
      %p137 = scmp.ne.s32.totalorder %s132, %s134
      %p138 = scmp.eq.s32.totalorder %s21, 0
      %p139 = por %p137, %p138
      %p140 = scmp.ne.s32.totalorder %s132, %s134
      %p141 = scmp.eq.s32.totalorder %s26, 3
      %p142 = por %p140, %p141
      %p143 = scmp.ne.s32.totalorder %s134, %s135
      %p144 = scmp.eq.s32.totalorder %s26, 0
      %p145 = por %p143, %p144
      %p146 = scmp.ne.s32.totalorder %s134, %s135
      %p147 = scmp.eq.s32.totalorder %s27, 3
      %p148 = por %p146, %p147
      %p150 = scmp.ne.s32.totalorder %s135, %s149
      %p151 = scmp.eq.s32.totalorder %s27, 0
      %p152 = por %p150, %p151
      %s154 = sadd.s32 %s153, 1
      %p157 = scmp.eq.s32.totalorder %s21, 3
      %p158 = scmp.ne.s32.totalorder %s153, %s155
      %p159 = scmp.eq.s32.totalorder %s21, 0
      %p160 = por %p158, %p159
      %p161 = scmp.ne.s32.totalorder %s153, %s155
      %p162 = scmp.eq.s32.totalorder %s26, 3
      %p163 = por %p161, %p162
      %p164 = scmp.ne.s32.totalorder %s155, %s156
      %p165 = scmp.eq.s32.totalorder %s26, 0
      %p166 = por %p164, %p165
      %p167 = scmp.ne.s32.totalorder %s155, %s156
      %p168 = scmp.eq.s32.totalorder %s27, 3
      %p169 = por %p167, %p168
      %p171 = scmp.ne.s32.totalorder %s156, %s170
      %p172 = scmp.eq.s32.totalorder %s27, 0
      %p173 = por %p171, %p172
      %s175 = sadd.s32 %s174, 1
      %p178 = scmp.eq.s32.totalorder %s21, 3
      %p179 = scmp.ne.s32.totalorder %s174, %s176
      %p180 = scmp.eq.s32.totalorder %s21, 0
      %p181 = por %p179, %p180
      %p182 = scmp.ne.s32.totalorder %s174, %s176
      %p183 = scmp.eq.s32.totalorder %s26, 3
      %p184 = por %p182, %p183
      %p185 = scmp.ne.s32.totalorder %s176, %s177
      %p186 = scmp.eq.s32.totalorder %s26, 0
      %p187 = por %p185, %p186
      %p188 = scmp.ne.s32.totalorder %s176, %s177
      %p189 = scmp.eq.s32.totalorder %s27, 3
      %p190 = por %p188, %p189
      %p192 = scmp.ne.s32.totalorder %s177, %s191
      %p193 = scmp.eq.s32.totalorder %s27, 0
      %p194 = por %p192, %p193
      %s195 = ssub.s32 %s28, %s40
      %s196 = ssub.s32 %s29, %s36
      %s197 = sor.u32 %s195, %s196
      %p198 = scmp.eq.s32.totalorder %s197, 0
      %s200 = sadd.s32 %s199, 1
      %s201 = scalar_select %p198, %s199, %s200
      %p204 = pneg %p198
      %p205 = scmp.eq.s32.totalorder %s21, 3
      %p206 = por %p204, %p205
      %p207 = scmp.ne.s32.totalorder %s199, %s202
      %p208 = scmp.eq.s32.totalorder %s21, 0
      %p209 = por %p207, %p208
      %p210 = scmp.ne.s32.totalorder %s199, %s202
      %p211 = scmp.eq.s32.totalorder %s26, 3
      %p212 = por %p210, %p211
      %p213 = scmp.ne.s32.totalorder %s202, %s203
      %p214 = scmp.eq.s32.totalorder %s26, 0
      %p215 = por %p213, %p214
      %p216 = scmp.ne.s32.totalorder %s202, %s203
      %p217 = scmp.eq.s32.totalorder %s27, 3
      %p218 = por %p216, %p217
      %p220 = scmp.ne.s32.totalorder %s203, %s219
      %p221 = scmp.eq.s32.totalorder %s27, 0
      %p222 = por %p220, %p221
      %p223 = scmp.le.s32.totalorder 1, %s21
      %p224 = scmp.lt.s32.totalorder %s21, 5
      %p225 = pnand %p223, %p224
      %p226 = pneg %p225
      // Predicated region
      $region9: #{tpu_custom_call.1} parent=5 // pred_check
        _
      $region10: #{tpu_custom_call.1} parent=5 // pred_check_branch
        %228 = sbr.rel (%p225) target = $region12
      $region11: #{tpu_custom_call.1} parent=5 // pred_region
        %s229 = ssub.s32 %s21, 1
        // Predicated region
        $region13: #{tpu_custom_call.1} parent=11 // pred_check
          %p230 = pneg %p82
        $region14: #{tpu_custom_call.1} parent=11 // pred_check_branch
          %232 = sbr.rel (%p230) target = $region16
        $region15: #{tpu_custom_call.1} parent=11 // pred_region
          %234 = vsyncadd [#allocation7], 0
          %s235 = sshll.u32 %s1, 4
          %s236 = int_to_ptr.hbm [resolvable:$true] %s235
          %s237 = sshll.u32 [#allocation6], 4
          %s238 = int_to_ptr.vmem [resolvable:$true] %s237
          %243 = dma.hbm_to_vmem [thread:$0]  %s236, 9216, %s238, [#allocation7], 64, 64, 4
        $region16: #{tpu_custom_call.1} parent=11 // pred_fallthru
          _
        // Predicated region
        $region17: #{tpu_custom_call.1} parent=11 // pred_check
          %p244 = pneg %p103
        $region18: #{tpu_custom_call.1} parent=11 // pred_check_branch
          %246 = sbr.rel (%p244) target = $region20
        $region19: #{tpu_custom_call.1} parent=11 // pred_region
          _
        $region20: #{tpu_custom_call.1} parent=11 // pred_fallthru
          _
        // Predicated region
        $region21: #{tpu_custom_call.1} parent=11 // pred_check
          %p247 = pneg %p124
        $region22: #{tpu_custom_call.1} parent=11 // pred_check_branch
          %249 = sbr.rel (%p247) target = $region24
        $region23: #{tpu_custom_call.1} parent=11 // pred_region
          %251 = vsyncadd [#allocation7], 0
          %s252 = sshll.u32 %s3, 4
          %s253 = int_to_ptr.hbm [resolvable:$true] %s252
          %s254 = sshll.u32 [#allocation8], 4
          %s255 = int_to_ptr.vmem [resolvable:$true] %s254
          %260 = dma.hbm_to_vmem [thread:$0]  %s253, 9216, %s255, [#allocation7], 64, 64, 4
        $region24: #{tpu_custom_call.1} parent=11 // pred_fallthru
          _
        // Predicated region
        $region25: #{tpu_custom_call.1} parent=11 // pred_check
          %p261 = pneg %p145
        $region26: #{tpu_custom_call.1} parent=11 // pred_check_branch
          %263 = sbr.rel (%p261) target = $region28
        $region27: #{tpu_custom_call.1} parent=11 // pred_region
          _
        $region28: #{tpu_custom_call.1} parent=11 // pred_fallthru
          _
        // Predicated region
        $region29: #{tpu_custom_call.1} parent=11 // pred_check
          %p264 = pneg %p166
        $region30: #{tpu_custom_call.1} parent=11 // pred_check_branch
          %266 = sbr.rel (%p264) target = $region32
        $region31: #{tpu_custom_call.1} parent=11 // pred_region
          %268 = vsyncadd [#allocation10], 0
          %s269 = sshll.u32 %s5, 4
          %s270 = int_to_ptr.hbm [resolvable:$true] %s269
          %s271 = sshll.u32 [#allocation9], 4
          %s272 = int_to_ptr.vmem [resolvable:$true] %s271
          %277 = dma.hbm_to_vmem [thread:$0]  %s270, 1024, %s272, [#allocation10], 64, 64, 4
        $region32: #{tpu_custom_call.1} parent=11 // pred_fallthru
          _
        // Predicated region
        $region33: #{tpu_custom_call.1} parent=11 // pred_check
          %p278 = pneg %p187
        $region34: #{tpu_custom_call.1} parent=11 // pred_check_branch
          %280 = sbr.rel (%p278) target = $region36
        $region35: #{tpu_custom_call.1} parent=11 // pred_region
          _
        $region36: #{tpu_custom_call.1} parent=11 // pred_fallthru
          _
      $region12: #{tpu_custom_call.1} parent=5 // pred_fallthru
        _
      %p281 = scmp.lt.s32.totalorder %s21, 4
      // Predicated region
      $region37: #{tpu_custom_call.1} parent=5 // pred_check
        %p282 = pneg %p281
      $region38: #{tpu_custom_call.1} parent=5 // pred_check_branch
        %284 = sbr.rel (%p282) target = $region40
      $region39: #{tpu_custom_call.1} parent=5 // pred_region
        // Predicated region
        $region41: #{tpu_custom_call.1} parent=39 // pred_check
          %p285 = pneg %p55
        $region42: #{tpu_custom_call.1} parent=39 // pred_check_branch
          %287 = sbr.rel (%p285) target = $region44
        $region43: #{tpu_custom_call.1} parent=39 // pred_region
          %s288 = sand.u32 %s45, 1
          %s289 = scalar_lea.sflag [#allocation4], %s288
          %s290 = sand.u32 %s45, 1
          %s291 = smul.addr %s290, 200
          %s292 = scalar_lea.vmem [#allocation3], %s291
          %s293 = smul.u32 50, %s29
          %295 = vsyncadd %s289, 0
          %s296 = smul.addr %s28, 100
          %s297 = sadd.s32 %s293, %s296
          %s298 = smul.addr %s297, 4
          %s299 = scalar_lea.hbm %s0, %s298
          %s300 = sshll.u32 %s299, 4
          %s301 = int_to_ptr.hbm [resolvable:$true] %s300
          %s302 = sshll.u32 %s292, 4
          %s303 = int_to_ptr.vmem [resolvable:$true] %s302
          %308 = dma.hbm_to_vmem [thread:$0]  %s301, 3200, %s303, %s289, 64, 64, 4
        $region44: #{tpu_custom_call.1} parent=39 // pred_fallthru
          _
      $region40: #{tpu_custom_call.1} parent=5 // pred_fallthru
        _
      %p309 = scmp.le.s32.totalorder 1, %s21
      %p310 = scmp.lt.s32.totalorder %s21, 5
      %p311 = pnand %p309, %p310
      %p312 = pneg %p311
      // Predicated region
      $region45: #{tpu_custom_call.1} parent=5 // pred_check
        _
      $region46: #{tpu_custom_call.1} parent=5 // pred_check_branch
        %314 = sbr.rel (%p311) target = $region48
      $region47: #{tpu_custom_call.1} parent=5 // pred_region
        %s315 = ssub.s32 %s21, 1
        %s316 = sand.u32 %s48, 1
        %s317 = scalar_lea.sflag [#allocation4], %s316
        %s318 = sand.u32 %s48, 1
        %s319 = smul.addr %s318, 200
        %s320 = scalar_lea.vmem [#allocation3], %s319
        // Predicated region
        $region49: #{tpu_custom_call.1} parent=47 // pred_check
          %p321 = pneg %p61
        $region50: #{tpu_custom_call.1} parent=47 // pred_check_branch
          %323 = sbr.rel (%p321) target = $region52
        $region51: #{tpu_custom_call.1} parent=47 // pred_region
          %325 = dma.done %s317, 3200
        $region52: #{tpu_custom_call.1} parent=47 // pred_fallthru
          _
        // Predicated region
        $region53: #{tpu_custom_call.1} parent=47 // pred_check
          %p326 = pneg %p82
        $region54: #{tpu_custom_call.1} parent=47 // pred_check_branch
          %328 = sbr.rel (%p326) target = $region56
        $region55: #{tpu_custom_call.1} parent=47 // pred_region
          %330 = dma.done [#allocation7], 9216
        $region56: #{tpu_custom_call.1} parent=47 // pred_fallthru
          _
        // Predicated region
        $region57: #{tpu_custom_call.1} parent=47 // pred_check
          %p331 = pneg %p124
        $region58: #{tpu_custom_call.1} parent=47 // pred_check_branch
          %333 = sbr.rel (%p331) target = $region60
        $region59: #{tpu_custom_call.1} parent=47 // pred_region
          %335 = dma.done [#allocation7], 9216
        $region60: #{tpu_custom_call.1} parent=47 // pred_fallthru
          _
        // Predicated region
        $region61: #{tpu_custom_call.1} parent=47 // pred_check
          %p336 = pneg %p166
        $region62: #{tpu_custom_call.1} parent=47 // pred_check_branch
          %338 = sbr.rel (%p336) target = $region64
        $region63: #{tpu_custom_call.1} parent=47 // pred_region
          %340 = dma.done [#allocation10], 1024
        $region64: #{tpu_custom_call.1} parent=47 // pred_fallthru
          _
        %s341 = sand.u32 %s48, 1
        %s342 = scalar_lea.sflag [#allocation4], %s341
        %s343 = sand.u32 %s48, 1
        %s344 = smul.addr %s343, 200
        %s345 = scalar_lea.vmem [#allocation3], %s344
        %p346 = pneg %p61
        %p347 = pneg %p58
        %p348 = pneg %p82
        %p349 = pneg %p79
        %p350 = pneg %p103
        %p351 = pneg %p100
        %p352 = pneg %p124
        %p353 = pneg %p121
        %p354 = pneg %p145
        %p355 = pneg %p142
        %p356 = pneg %p166
        %p357 = pneg %p163
        %p358 = pneg %p187
        %p359 = pneg %p184
        %p360 = pneg %p215
        %p361 = pneg %p212
        %s362 = sand.u32 %s202, 1
        %s363 = scalar_lea.sflag [#allocation5], %s362
        %s364 = sand.u32 %s202, 1
        %s365 = smul.addr %s364, 256
        %s366 = scalar_lea.vmem [#allocation11], %s365
        %s367 = smul.u32 50, %s31
        %s368 = smul.u32 32, %s31
        %v370 = vld [vmem:[%s2] sm:$0x1]
        %v371 = vld [vmem:[%s320] sm:$0xf]
        %v372 = vld [vmem:[%s320 + $0x4] sm:$0xf]
        %v373 = vld [vmem:[%s320 + $0x8] sm:$0xf]
        %v374 = vld [vmem:[%s320 + $0xc] sm:$0xf]
        %v375 = vld [vmem:[%s320 + $0x10] sm:$0xf]
        %v376 = vld [vmem:[%s320 + $0x14] sm:$0xf]
        %v377 = vld [vmem:[%s320 + $0x18] sm:$0xf]
        %v378 = vld [vmem:[%s320 + $0x1c] sm:$0xf]
        %v379 = vld [vmem:[%s320 + $0x20] sm:$0xf]
        %v380 = vld [vmem:[%s320 + $0x24] sm:$0xf]
        %v381 = vld [vmem:[%s320 + $0x28] sm:$0xf]
        %v382 = vld [vmem:[%s320 + $0x2c] sm:$0xf]
        %v383 = vld [vmem:[%s320 + $0x30] sm:$0xf]
        %v384 = vld [vmem:[%s320 + $0x34] sm:$0xf]
        %v385 = vld [vmem:[%s320 + $0x38] sm:$0xf]
        %v386 = vld [vmem:[%s320 + $0x3c] sm:$0xf]
        %v387 = vld [vmem:[%s320 + $0x40] sm:$0xf]
        %v388 = vld [vmem:[%s320 + $0x44] sm:$0xf]
        %v389 = vld [vmem:[%s320 + $0x48] sm:$0xf]
        %v390 = vld [vmem:[%s320 + $0x4c] sm:$0xf]
        %v391 = vld [vmem:[%s320 + $0x50] sm:$0xf]
        %v392 = vld [vmem:[%s320 + $0x54] sm:$0xf]
        %v393 = vld [vmem:[%s320 + $0x58] sm:$0xf]
        %v394 = vld [vmem:[%s320 + $0x5c] sm:$0xf]
        %v395 = vld [vmem:[%s320 + $0x60] sm:$0xf]
        %v396 = vld [vmem:[%s320 + $0x64] sm:$0xf]
        %v397 = vld [vmem:[%s320 + $0x68] sm:$0xf]
        %v398 = vld [vmem:[%s320 + $0x6c] sm:$0xf]
        %v399 = vld [vmem:[%s320 + $0x70] sm:$0xf]
        %v400 = vld [vmem:[%s320 + $0x74] sm:$0xf]
        %v401 = vld [vmem:[%s320 + $0x78] sm:$0xf]
        %v402 = vld [vmem:[%s320 + $0x7c] sm:$0xf]
        %v403 = vld [vmem:[%s320 + $0x80] sm:$0xf]
        %v404 = vld [vmem:[%s320 + $0x84] sm:$0xf]
        %v405 = vld [vmem:[%s320 + $0x88] sm:$0xf]
        %v406 = vld [vmem:[%s320 + $0x8c] sm:$0xf]
        %v407 = vld [vmem:[%s320 + $0x90] sm:$0xf]
        %v408 = vld [vmem:[%s320 + $0x94] sm:$0xf]
        %v409 = vld [vmem:[%s320 + $0x98] sm:$0xf]
        %v410 = vld [vmem:[%s320 + $0x9c] sm:$0xf]
        %v411 = vld [vmem:[%s320 + $0xa0] sm:$0x1]
        %v412 = vld [vmem:[%s320] sm:$0xe]
        %v453 = vunpack.c.l.b16 %v371
        %v454 = vunpack.c.l.b16 %v372
        %v455 = vunpack.c.l.b16 %v373
        %v456 = vunpack.c.l.b16 %v374
        %v457 = vunpack.c.l.b16 %v375
        %v458 = vunpack.c.l.b16 %v376
        %v459 = vunpack.c.l.b16 %v377
        %v460 = vunpack.c.l.b16 %v378
        %v461 = vunpack.c.l.b16 %v379
        %v462 = vunpack.c.l.b16 %v380
        %v463 = vunpack.c.l.b16 %v381
        %v464 = vunpack.c.l.b16 %v382
        %v465 = vunpack.c.l.b16 %v383
        %v466 = vunpack.c.l.b16 %v384
        %v467 = vunpack.c.l.b16 %v385
        %v468 = vunpack.c.l.b16 %v386
        %v469 = vunpack.c.l.b16 %v387
        %v470 = vunpack.c.l.b16 %v388
        %v471 = vunpack.c.l.b16 %v389
        %v472 = vunpack.c.l.b16 %v390
        %v473 = vunpack.c.l.b16 %v391
        %v474 = vunpack.c.l.b16 %v392
        %v475 = vunpack.c.l.b16 %v393
        %v476 = vunpack.c.l.b16 %v394
        %v477 = vunpack.c.l.b16 %v395
        %v478 = vunpack.c.l.b16 %v396
        %v479 = vunpack.c.l.b16 %v397
        %v480 = vunpack.c.l.b16 %v398
        %v481 = vunpack.c.l.b16 %v399
        %v482 = vunpack.c.l.b16 %v400
        %v483 = vunpack.c.l.b16 %v401
        %v484 = vunpack.c.l.b16 %v402
        %v485 = vunpack.c.l.b16 %v403
        %v486 = vunpack.c.l.b16 %v404
        %v487 = vunpack.c.l.b16 %v405
        %v488 = vunpack.c.l.b16 %v406
        %v489 = vunpack.c.l.b16 %v407
        %v490 = vunpack.c.l.b16 %v408
        %v491 = vunpack.c.l.b16 %v409
        %v492 = vunpack.c.l.b16 %v410
        %v493 = vpack.c.b16 %v454, %v453
        %v494 = vpack.c.b16 %v456, %v455
        %v495 = vpack.c.b16 %v458, %v457
        %v496 = vpack.c.b16 %v460, %v459
        %v497 = vpack.c.b16 %v462, %v461
        %v498 = vpack.c.b16 %v464, %v463
        %v499 = vpack.c.b16 %v466, %v465
        %v500 = vpack.c.b16 %v468, %v467
        %v501 = vpack.c.b16 %v470, %v469
        %v502 = vpack.c.b16 %v472, %v471
        %v503 = vpack.c.b16 %v474, %v473
        %v504 = vpack.c.b16 %v476, %v475
        %v505 = vpack.c.b16 %v478, %v477
        %v506 = vpack.c.b16 %v480, %v479
        %v507 = vpack.c.b16 %v482, %v481
        %v508 = vpack.c.b16 %v484, %v483
        %v509 = vpack.c.b16 %v486, %v485
        %v510 = vpack.c.b16 %v488, %v487
        %v511 = vpack.c.b16 %v490, %v489
        %v512 = vpack.c.b16 %v492, %v491
        %v534 = vunpack.c.l.b16 %v411
        %v535 = vpack.c.b16 %v534, %v534
        %vm536 = vsmask.f32 7424
        %v538 = vshrl.u32 %v493, 16
        %v540 = vshll.u32 %v493, 16
        %v542 = vrot.slane %v540, 1
        %v543 = vor.u32 %v538, %v542
        %v545 = vshll.u32 %v494, 16
        %v547 = vrot.slane %v545, 1
        %v548 = vsel %vm536, %v543, %v547
        %v549 = vshrl.u32 %v494, 16
        %v551 = vor.u32 %v549, %v547
        %v553 = vshll.u32 %v495, 16
        %v555 = vrot.slane %v553, 1
        %v556 = vsel %vm536, %v551, %v555
        %v557 = vshrl.u32 %v495, 16
        %v559 = vor.u32 %v557, %v555
        %v561 = vshll.u32 %v496, 16
        %v563 = vrot.slane %v561, 1
        %v564 = vsel %vm536, %v559, %v563
        %v565 = vshrl.u32 %v496, 16
        %v567 = vor.u32 %v565, %v563
        %v569 = vshll.u32 %v497, 16
        %v571 = vrot.slane %v569, 1
        %v572 = vsel %vm536, %v567, %v571
        %v573 = vshrl.u32 %v497, 16
        %v575 = vor.u32 %v573, %v571
        %v577 = vshll.u32 %v498, 16
        %v579 = vrot.slane %v577, 1
        %v580 = vsel %vm536, %v575, %v579
        %v581 = vshrl.u32 %v498, 16
        %v583 = vor.u32 %v581, %v579
        %v585 = vshll.u32 %v499, 16
        %v587 = vrot.slane %v585, 1
        %v588 = vsel %vm536, %v583, %v587
        %v589 = vshrl.u32 %v499, 16
        %v591 = vor.u32 %v589, %v587
        %v593 = vshll.u32 %v500, 16
        %v595 = vrot.slane %v593, 1
        %v596 = vsel %vm536, %v591, %v595
        %v597 = vshrl.u32 %v500, 16
        %v599 = vor.u32 %v597, %v595
        %v601 = vshll.u32 %v501, 16
        %v603 = vrot.slane %v601, 1
        %v604 = vsel %vm536, %v599, %v603
        %v605 = vshrl.u32 %v501, 16
        %v607 = vor.u32 %v605, %v603
        %v609 = vshll.u32 %v502, 16
        %v611 = vrot.slane %v609, 1
        %v612 = vsel %vm536, %v607, %v611
        %v613 = vshrl.u32 %v502, 16
        %v615 = vor.u32 %v613, %v611
        %v617 = vshll.u32 %v503, 16
        %v619 = vrot.slane %v617, 1
        %v620 = vsel %vm536, %v615, %v619
        %v621 = vshrl.u32 %v503, 16
        %v623 = vor.u32 %v621, %v619
        %v625 = vshll.u32 %v504, 16
        %v627 = vrot.slane %v625, 1
        %v628 = vsel %vm536, %v623, %v627
        %v629 = vshrl.u32 %v504, 16
        %v631 = vor.u32 %v629, %v627
        %v633 = vshll.u32 %v505, 16
        %v635 = vrot.slane %v633, 1
        %v636 = vsel %vm536, %v631, %v635
        %v637 = vshrl.u32 %v505, 16
        %v639 = vor.u32 %v637, %v635
        %v641 = vshll.u32 %v506, 16
        %v643 = vrot.slane %v641, 1
        %v644 = vsel %vm536, %v639, %v643
        %v645 = vshrl.u32 %v506, 16
        %v647 = vor.u32 %v645, %v643
        %v649 = vshll.u32 %v507, 16
        %v651 = vrot.slane %v649, 1
        %v652 = vsel %vm536, %v647, %v651
        %v653 = vshrl.u32 %v507, 16
        %v655 = vor.u32 %v653, %v651
        %v657 = vshll.u32 %v508, 16
        %v659 = vrot.slane %v657, 1
        %v660 = vsel %vm536, %v655, %v659
        %v661 = vshrl.u32 %v508, 16
        %v663 = vor.u32 %v661, %v659
        %v665 = vshll.u32 %v509, 16
        %v667 = vrot.slane %v665, 1
        %v668 = vsel %vm536, %v663, %v667
        %v669 = vshrl.u32 %v509, 16
        %v671 = vor.u32 %v669, %v667
        %v673 = vshll.u32 %v510, 16
        %v675 = vrot.slane %v673, 1
        %v676 = vsel %vm536, %v671, %v675
        %v677 = vshrl.u32 %v510, 16
        %v679 = vor.u32 %v677, %v675
        %v681 = vshll.u32 %v511, 16
        %v683 = vrot.slane %v681, 1
        %v684 = vsel %vm536, %v679, %v683
        %v685 = vshrl.u32 %v511, 16
        %v687 = vor.u32 %v685, %v683
        %v689 = vshll.u32 %v512, 16
        %v691 = vrot.slane %v689, 1
        %v692 = vsel %vm536, %v687, %v691
        %v693 = vshrl.u32 %v512, 16
        %v695 = vor.u32 %v693, %v691
        %v697 = vshll.u32 %v535, 16
        %v699 = vrot.slane %v697, 1
        %v700 = vsel %vm536, %v695, %v699
        %v722 = vunpack.c.l.b16 %v412
        %v723 = vpack.c.b16 %v454, %v722
        %vm724 = vcmask 1046528
        %v725 = vrot.slane %v723, 1
        %v726 = vrot.slane %v494, 1
        %v727 = vsel %vm724, %v725, %v726
        %v728 = vrot.slane %v495, 1
        %v729 = vsel %vm724, %v726, %v728
        %v730 = vrot.slane %v496, 1
        %v731 = vsel %vm724, %v728, %v730
        %v732 = vrot.slane %v497, 1
        %v733 = vsel %vm724, %v730, %v732
        %v734 = vrot.slane %v498, 1
        %v735 = vsel %vm724, %v732, %v734
        %v736 = vrot.slane %v499, 1
        %v737 = vsel %vm724, %v734, %v736
        %v738 = vrot.slane %v500, 1
        %v739 = vsel %vm724, %v736, %v738
        %v740 = vrot.slane %v501, 1
        %v741 = vsel %vm724, %v738, %v740
        %v742 = vrot.slane %v502, 1
        %v743 = vsel %vm724, %v740, %v742
        %v744 = vrot.slane %v503, 1
        %v745 = vsel %vm724, %v742, %v744
        %v746 = vrot.slane %v504, 1
        %v747 = vsel %vm724, %v744, %v746
        %v748 = vrot.slane %v505, 1
        %v749 = vsel %vm724, %v746, %v748
        %v750 = vrot.slane %v506, 1
        %v751 = vsel %vm724, %v748, %v750
        %v752 = vrot.slane %v507, 1
        %v753 = vsel %vm724, %v750, %v752
        %v754 = vrot.slane %v508, 1
        %v755 = vsel %vm724, %v752, %v754
        %v756 = vrot.slane %v509, 1
        %v757 = vsel %vm724, %v754, %v756
        %v758 = vrot.slane %v510, 1
        %v759 = vsel %vm724, %v756, %v758
        %v760 = vrot.slane %v511, 1
        %v761 = vsel %vm724, %v758, %v760
        %v762 = vrot.slane %v512, 1
        %v763 = vsel %vm724, %v760, %v762
        %v764 = vrot.slane %v535, 1
        %v765 = vsel %vm724, %v762, %v764
        %v786 = vld [vmem:[#allocation6] sm:$0xf]
        %v787 = vld [vmem:[#allocation6 + $0x4] sm:$0xf]
        %v788 = vld [vmem:[#allocation6 + $0x8] sm:$0xf]
        %v789 = vld [vmem:[#allocation6 + $0xc] sm:$0xf]
        %v790 = vld [vmem:[#allocation6 + $0x10] sm:$0xf]
        %v791 = vld [vmem:[#allocation6 + $0x14] sm:$0xf]
        %v792 = vld [vmem:[#allocation6 + $0x18] sm:$0xf]
        %v793 = vld [vmem:[#allocation6 + $0x1c] sm:$0xf]
        %v794 = vld [vmem:[#allocation6 + $0x20] sm:$0xf]
        %v795 = vld [vmem:[#allocation6 + $0x24] sm:$0xf]
        %v796 = vld [vmem:[#allocation6 + $0x28] sm:$0xf]
        %v797 = vld [vmem:[#allocation6 + $0x2c] sm:$0xf]
        %v798 = vld [vmem:[#allocation6 + $0x30] sm:$0xf]
        %v799 = vld [vmem:[#allocation6 + $0x34] sm:$0xf]
        %v800 = vld [vmem:[#allocation6 + $0x38] sm:$0xf]
        %v801 = vld [vmem:[#allocation6 + $0x3c] sm:$0xf]
        %v802 = vld [vmem:[#allocation6 + $0x40] sm:$0xf]
        %v803 = vld [vmem:[#allocation6 + $0x44] sm:$0xf]
        %v804 = vld [vmem:[#allocation6 + $0x48] sm:$0xf]
        %v805 = vld [vmem:[#allocation6 + $0x4c] sm:$0xf]
        %v806 = vld [vmem:[#allocation6 + $0x50] sm:$0xf]
        %v807 = vld [vmem:[#allocation6 + $0x54] sm:$0xf]
        %v808 = vld [vmem:[#allocation6 + $0x58] sm:$0xf]
        %v809 = vld [vmem:[#allocation6 + $0x5c] sm:$0xf]
        %v810 = vld [vmem:[#allocation6 + $0x60] sm:$0xf]
        %v811 = vld [vmem:[#allocation6 + $0x64] sm:$0xf]
        %v812 = vld [vmem:[#allocation6 + $0x68] sm:$0xf]
        %v813 = vld [vmem:[#allocation6 + $0x6c] sm:$0xf]
        %v814 = vld [vmem:[#allocation6 + $0x70] sm:$0xf]
        %v815 = vld [vmem:[#allocation6 + $0x74] sm:$0xf]
        %v816 = vld [vmem:[#allocation6 + $0x78] sm:$0xf]
        %v817 = vld [vmem:[#allocation6 + $0x7c] sm:$0xf]
        %v818 = vld [vmem:[#allocation6 + $0x80] sm:$0xf]
        %v819 = vld [vmem:[#allocation6 + $0x84] sm:$0xf]
        %v820 = vld [vmem:[#allocation6 + $0x88] sm:$0xf]
        %v821 = vld [vmem:[#allocation6 + $0x8c] sm:$0xf]
        %v822 = vld [vmem:[#allocation6 + $0x90] sm:$0xf]
        %v823 = vld [vmem:[#allocation6 + $0x94] sm:$0xf]
        %v824 = vld [vmem:[#allocation6 + $0x98] sm:$0xf]
        %v825 = vld [vmem:[#allocation6 + $0x9c] sm:$0xf]
        %v826 = vld [vmem:[#allocation6 + $0xa0] sm:$0xf]
        %v827 = vld [vmem:[#allocation6 + $0xa4] sm:$0xf]
        %v828 = vld [vmem:[#allocation6 + $0xa8] sm:$0xf]
        %v829 = vld [vmem:[#allocation6 + $0xac] sm:$0xf]
        %v830 = vld [vmem:[#allocation6 + $0xb0] sm:$0xf]
        %v831 = vld [vmem:[#allocation6 + $0xb4] sm:$0xf]
        %v832 = vld [vmem:[#allocation6 + $0xb8] sm:$0xf]
        %v833 = vld [vmem:[#allocation6 + $0xbc] sm:$0xf]
        %v882 = vunpack.c.l.b16 %v786
        %v883 = vunpack.c.l.b16 %v787
        %v884 = vunpack.c.l.b16 %v788
        %v885 = vunpack.c.l.b16 %v789
        %v886 = vunpack.c.l.b16 %v790
        %v887 = vunpack.c.l.b16 %v791
        %v888 = vunpack.c.l.b16 %v792
        %v889 = vunpack.c.l.b16 %v793
        %v890 = vunpack.c.l.b16 %v794
        %v891 = vunpack.c.l.b16 %v795
        %v892 = vunpack.c.l.b16 %v796
        %v893 = vunpack.c.l.b16 %v797
        %v894 = vunpack.c.l.b16 %v798
        %v895 = vunpack.c.l.b16 %v799
        %v896 = vunpack.c.l.b16 %v800
        %v897 = vunpack.c.l.b16 %v801
        %v898 = vunpack.c.l.b16 %v802
        %v899 = vunpack.c.l.b16 %v803
        %v900 = vunpack.c.l.b16 %v804
        %v901 = vunpack.c.l.b16 %v805
        %v902 = vunpack.c.l.b16 %v806
        %v903 = vunpack.c.l.b16 %v807
        %v904 = vunpack.c.l.b16 %v808
        %v905 = vunpack.c.l.b16 %v809
        %v906 = vunpack.c.l.b16 %v810
        %v907 = vunpack.c.l.b16 %v811
        %v908 = vunpack.c.l.b16 %v812
        %v909 = vunpack.c.l.b16 %v813
        %v910 = vunpack.c.l.b16 %v814
        %v911 = vunpack.c.l.b16 %v815
        %v912 = vunpack.c.l.b16 %v816
        %v913 = vunpack.c.l.b16 %v817
        %v914 = vunpack.c.l.b16 %v818
        %v915 = vunpack.c.l.b16 %v819
        %v916 = vunpack.c.l.b16 %v820
        %v917 = vunpack.c.l.b16 %v821
        %v918 = vunpack.c.l.b16 %v822
        %v919 = vunpack.c.l.b16 %v823
        %v920 = vunpack.c.l.b16 %v824
        %v921 = vunpack.c.l.b16 %v825
        %v922 = vunpack.c.l.b16 %v826
        %v923 = vunpack.c.l.b16 %v827
        %v924 = vunpack.c.l.b16 %v828
        %v925 = vunpack.c.l.b16 %v829
        %v926 = vunpack.c.l.b16 %v830
        %v927 = vunpack.c.l.b16 %v831
        %v928 = vunpack.c.l.b16 %v832
        %v929 = vunpack.c.l.b16 %v833
        %v930 = vpack.c.b16 %v883, %v882
        %v931 = vpack.c.b16 %v885, %v884
        %v932 = vpack.c.b16 %v887, %v886
        %v933 = vpack.c.b16 %v889, %v888
        %v934 = vpack.c.b16 %v891, %v890
        %v935 = vpack.c.b16 %v893, %v892
        %v936 = vpack.c.b16 %v895, %v894
        %v937 = vpack.c.b16 %v897, %v896
        %v938 = vpack.c.b16 %v899, %v898
        %v939 = vpack.c.b16 %v901, %v900
        %v940 = vpack.c.b16 %v903, %v902
        %v941 = vpack.c.b16 %v905, %v904
        %v942 = vpack.c.b16 %v907, %v906
        %v943 = vpack.c.b16 %v909, %v908
        %v944 = vpack.c.b16 %v911, %v910
        %v945 = vpack.c.b16 %v913, %v912
        %v946 = vpack.c.b16 %v915, %v914
        %v947 = vpack.c.b16 %v917, %v916
        %v948 = vpack.c.b16 %v919, %v918
        %v949 = vpack.c.b16 %v921, %v920
        %v950 = vpack.c.b16 %v923, %v922
        %v951 = vpack.c.b16 %v925, %v924
        %v952 = vpack.c.b16 %v927, %v926
        %v953 = vpack.c.b16 %v929, %v928
        %978 = vmatpush.bf16.msra.mxu0 %v937
        %979 = vmatpush.bf16.msra.mxu0 %v936
        %980 = vmatpush.bf16.msra.mxu0 %v935
        %981 = vmatpush.bf16.msra.mxu0 %v934
        %982 = vmatpush.bf16.msra.mxu0 %v933
        %983 = vmatpush.bf16.msra.mxu0 %v932
        %984 = vmatpush.bf16.msra.mxu0 %v931
        %985 = vmatpush.bf16.msra.mxu0 %v930
        %986 = vmatmul.bf16.gmra.mxu0 %v493
        %v987 = vpop.f32.mrf.mxu0
        %v988 = vadd.f32 0.0, %v987
        %v989 = vpop.f32.mrf.mxu0
        %v990 = vadd.f32 0.0, %v989
        %991 = vmatmul.bf16.gmra.mxu0 %v494
        %v992 = vpop.f32.mrf.mxu0
        %v993 = vadd.f32 0.0, %v992
        %v994 = vpop.f32.mrf.mxu0
        %v995 = vadd.f32 0.0, %v994
        %996 = vmatmul.bf16.gmra.mxu0 %v495
        %v997 = vpop.f32.mrf.mxu0
        %v998 = vadd.f32 0.0, %v997
        %v999 = vpop.f32.mrf.mxu0
        %v1000 = vadd.f32 0.0, %v999
        %1001 = vmatmul.bf16.gmra.mxu0 %v496
        %v1002 = vpop.f32.mrf.mxu0
        %v1003 = vadd.f32 0.0, %v1002
        %v1004 = vpop.f32.mrf.mxu0
        %v1005 = vadd.f32 0.0, %v1004
        %1006 = vmatmul.bf16.gmra.mxu0 %v497
        %v1007 = vpop.f32.mrf.mxu0
        %v1008 = vadd.f32 0.0, %v1007
        %v1009 = vpop.f32.mrf.mxu0
        %v1010 = vadd.f32 0.0, %v1009
        %1011 = vmatmul.bf16.gmra.mxu0 %v498
        %v1012 = vpop.f32.mrf.mxu0
        %v1013 = vadd.f32 0.0, %v1012
        %v1014 = vpop.f32.mrf.mxu0
        %v1015 = vadd.f32 0.0, %v1014
        %1016 = vmatmul.bf16.gmra.mxu0 %v499
        %v1017 = vpop.f32.mrf.mxu0
        %v1018 = vadd.f32 0.0, %v1017
        %v1019 = vpop.f32.mrf.mxu0
        %v1020 = vadd.f32 0.0, %v1019
        %1021 = vmatmul.bf16.gmra.mxu0 %v500
        %v1022 = vpop.f32.mrf.mxu0
        %v1023 = vadd.f32 0.0, %v1022
        %v1024 = vpop.f32.mrf.mxu0
        %v1025 = vadd.f32 0.0, %v1024
        %1026 = vmatmul.bf16.gmra.mxu0 %v501
        %v1027 = vpop.f32.mrf.mxu0
        %v1028 = vadd.f32 0.0, %v1027
        %v1029 = vpop.f32.mrf.mxu0
        %v1030 = vadd.f32 0.0, %v1029
        %1031 = vmatmul.bf16.gmra.mxu0 %v502
        %v1032 = vpop.f32.mrf.mxu0
        %v1033 = vadd.f32 0.0, %v1032
        %v1034 = vpop.f32.mrf.mxu0
        %v1035 = vadd.f32 0.0, %v1034
        %1036 = vmatmul.bf16.gmra.mxu0 %v503
        %v1037 = vpop.f32.mrf.mxu0
        %v1038 = vadd.f32 0.0, %v1037
        %v1039 = vpop.f32.mrf.mxu0
        %v1040 = vadd.f32 0.0, %v1039
        %1041 = vmatmul.bf16.gmra.mxu0 %v504
        %v1042 = vpop.f32.mrf.mxu0
        %v1043 = vadd.f32 0.0, %v1042
        %v1044 = vpop.f32.mrf.mxu0
        %v1045 = vadd.f32 0.0, %v1044
        %1046 = vmatmul.bf16.gmra.mxu0 %v505
        %v1047 = vpop.f32.mrf.mxu0
        %v1048 = vadd.f32 0.0, %v1047
        %v1049 = vpop.f32.mrf.mxu0
        %v1050 = vadd.f32 0.0, %v1049
        %1051 = vmatmul.bf16.gmra.mxu0 %v506
        %v1052 = vpop.f32.mrf.mxu0
        %v1053 = vadd.f32 0.0, %v1052
        %v1054 = vpop.f32.mrf.mxu0
        %v1055 = vadd.f32 0.0, %v1054
        %1056 = vmatmul.bf16.gmra.mxu0 %v507
        %v1057 = vpop.f32.mrf.mxu0
        %v1058 = vadd.f32 0.0, %v1057
        %v1059 = vpop.f32.mrf.mxu0
        %v1060 = vadd.f32 0.0, %v1059
        %1061 = vmatmul.bf16.gmra.mxu0 %v508
        %v1062 = vpop.f32.mrf.mxu0
        %v1063 = vadd.f32 0.0, %v1062
        %v1064 = vpop.f32.mrf.mxu0
        %v1065 = vadd.f32 0.0, %v1064
        %1066 = vmatmul.bf16.gmra.mxu0 %v509
        %v1067 = vpop.f32.mrf.mxu0
        %v1068 = vadd.f32 0.0, %v1067
        %v1069 = vpop.f32.mrf.mxu0
        %v1070 = vadd.f32 0.0, %v1069
        %1071 = vmatmul.bf16.gmra.mxu0 %v510
        %v1072 = vpop.f32.mrf.mxu0
        %v1073 = vadd.f32 0.0, %v1072
        %v1074 = vpop.f32.mrf.mxu0
        %v1075 = vadd.f32 0.0, %v1074
        %1076 = vmatmul.bf16.gmra.mxu0 %v511
        %v1077 = vpop.f32.mrf.mxu0
        %v1078 = vadd.f32 0.0, %v1077
        %v1079 = vpop.f32.mrf.mxu0
        %v1080 = vadd.f32 0.0, %v1079
        %1081 = vmatmul.bf16.gmra.mxu0 %v512
        %v1082 = vpop.f32.mrf.mxu0
        %v1083 = vadd.f32 0.0, %v1082
        %v1084 = vpop.f32.mrf.mxu0
        %v1085 = vadd.f32 0.0, %v1084
        %1086 = vdwg.mxu0
        %1087 = vmatpush.bf16.msra.mxu0 %v945
        %1088 = vmatpush.bf16.msra.mxu0 %v944
        %1089 = vmatpush.bf16.msra.mxu0 %v943
        %1090 = vmatpush.bf16.msra.mxu0 %v942
        %1091 = vmatpush.bf16.msra.mxu0 %v941
        %1092 = vmatpush.bf16.msra.mxu0 %v940
        %1093 = vmatpush.bf16.msra.mxu0 %v939
        %1094 = vmatpush.bf16.msra.mxu0 %v938
        %1095 = vmatmul.bf16.gmra.mxu0 %v548
        %v1096 = vpop.f32.mrf.mxu0
        %v1097 = vadd.f32 %v988, %v1096
        %v1098 = vpop.f32.mrf.mxu0
        %v1099 = vadd.f32 %v990, %v1098
        %1100 = vmatmul.bf16.gmra.mxu0 %v556
        %v1101 = vpop.f32.mrf.mxu0
        %v1102 = vadd.f32 %v993, %v1101
        %v1103 = vpop.f32.mrf.mxu0
        %v1104 = vadd.f32 %v995, %v1103
        %1105 = vmatmul.bf16.gmra.mxu0 %v564
        %v1106 = vpop.f32.mrf.mxu0
        %v1107 = vadd.f32 %v998, %v1106
        %v1108 = vpop.f32.mrf.mxu0
        %v1109 = vadd.f32 %v1000, %v1108
        %1110 = vmatmul.bf16.gmra.mxu0 %v572
        %v1111 = vpop.f32.mrf.mxu0
        %v1112 = vadd.f32 %v1003, %v1111
        %v1113 = vpop.f32.mrf.mxu0
        %v1114 = vadd.f32 %v1005, %v1113
        %1115 = vmatmul.bf16.gmra.mxu0 %v580
        %v1116 = vpop.f32.mrf.mxu0
        %v1117 = vadd.f32 %v1008, %v1116
        %v1118 = vpop.f32.mrf.mxu0
        %v1119 = vadd.f32 %v1010, %v1118
        %1120 = vmatmul.bf16.gmra.mxu0 %v588
        %v1121 = vpop.f32.mrf.mxu0
        %v1122 = vadd.f32 %v1013, %v1121
        %v1123 = vpop.f32.mrf.mxu0
        %v1124 = vadd.f32 %v1015, %v1123
        %1125 = vmatmul.bf16.gmra.mxu0 %v596
        %v1126 = vpop.f32.mrf.mxu0
        %v1127 = vadd.f32 %v1018, %v1126
        %v1128 = vpop.f32.mrf.mxu0
        %v1129 = vadd.f32 %v1020, %v1128
        %1130 = vmatmul.bf16.gmra.mxu0 %v604
        %v1131 = vpop.f32.mrf.mxu0
        %v1132 = vadd.f32 %v1023, %v1131
        %v1133 = vpop.f32.mrf.mxu0
        %v1134 = vadd.f32 %v1025, %v1133
        %1135 = vmatmul.bf16.gmra.mxu0 %v612
        %v1136 = vpop.f32.mrf.mxu0
        %v1137 = vadd.f32 %v1028, %v1136
        %v1138 = vpop.f32.mrf.mxu0
        %v1139 = vadd.f32 %v1030, %v1138
        %1140 = vmatmul.bf16.gmra.mxu0 %v620
        %v1141 = vpop.f32.mrf.mxu0
        %v1142 = vadd.f32 %v1033, %v1141
        %v1143 = vpop.f32.mrf.mxu0
        %v1144 = vadd.f32 %v1035, %v1143
        %1145 = vmatmul.bf16.gmra.mxu0 %v628
        %v1146 = vpop.f32.mrf.mxu0
        %v1147 = vadd.f32 %v1038, %v1146
        %v1148 = vpop.f32.mrf.mxu0
        %v1149 = vadd.f32 %v1040, %v1148
        %1150 = vmatmul.bf16.gmra.mxu0 %v636
        %v1151 = vpop.f32.mrf.mxu0
        %v1152 = vadd.f32 %v1043, %v1151
        %v1153 = vpop.f32.mrf.mxu0
        %v1154 = vadd.f32 %v1045, %v1153
        %1155 = vmatmul.bf16.gmra.mxu0 %v644
        %v1156 = vpop.f32.mrf.mxu0
        %v1157 = vadd.f32 %v1048, %v1156
        %v1158 = vpop.f32.mrf.mxu0
        %v1159 = vadd.f32 %v1050, %v1158
        %1160 = vmatmul.bf16.gmra.mxu0 %v652
        %v1161 = vpop.f32.mrf.mxu0
        %v1162 = vadd.f32 %v1053, %v1161
        %v1163 = vpop.f32.mrf.mxu0
        %v1164 = vadd.f32 %v1055, %v1163
        %1165 = vmatmul.bf16.gmra.mxu0 %v660
        %v1166 = vpop.f32.mrf.mxu0
        %v1167 = vadd.f32 %v1058, %v1166
        %v1168 = vpop.f32.mrf.mxu0
        %v1169 = vadd.f32 %v1060, %v1168
        %1170 = vmatmul.bf16.gmra.mxu0 %v668
        %v1171 = vpop.f32.mrf.mxu0
        %v1172 = vadd.f32 %v1063, %v1171
        %v1173 = vpop.f32.mrf.mxu0
        %v1174 = vadd.f32 %v1065, %v1173
        %1175 = vmatmul.bf16.gmra.mxu0 %v676
        %v1176 = vpop.f32.mrf.mxu0
        %v1177 = vadd.f32 %v1068, %v1176
        %v1178 = vpop.f32.mrf.mxu0
        %v1179 = vadd.f32 %v1070, %v1178
        %1180 = vmatmul.bf16.gmra.mxu0 %v684
        %v1181 = vpop.f32.mrf.mxu0
        %v1182 = vadd.f32 %v1073, %v1181
        %v1183 = vpop.f32.mrf.mxu0
        %v1184 = vadd.f32 %v1075, %v1183
        %1185 = vmatmul.bf16.gmra.mxu0 %v692
        %v1186 = vpop.f32.mrf.mxu0
        %v1187 = vadd.f32 %v1078, %v1186
        %v1188 = vpop.f32.mrf.mxu0
        %v1189 = vadd.f32 %v1080, %v1188
        %1190 = vmatmul.bf16.gmra.mxu0 %v700
        %v1191 = vpop.f32.mrf.mxu0
        %v1192 = vadd.f32 %v1083, %v1191
        %v1193 = vpop.f32.mrf.mxu0
        %v1194 = vadd.f32 %v1085, %v1193
        %1195 = vdwg.mxu0
        %1196 = vmatpush.bf16.msra.mxu0 %v953
        %1197 = vmatpush.bf16.msra.mxu0 %v952
        %1198 = vmatpush.bf16.msra.mxu0 %v951
        %1199 = vmatpush.bf16.msra.mxu0 %v950
        %1200 = vmatpush.bf16.msra.mxu0 %v949
        %1201 = vmatpush.bf16.msra.mxu0 %v948
        %1202 = vmatpush.bf16.msra.mxu0 %v947
        %1203 = vmatpush.bf16.msra.mxu0 %v946
        %1204 = vmatmul.bf16.gmra.mxu0 %v727
        %v1205 = vpop.f32.mrf.mxu0
        %v1206 = vadd.f32 %v1097, %v1205
        %v1207 = vpop.f32.mrf.mxu0
        %v1208 = vadd.f32 %v1099, %v1207
        %1209 = vmatmul.bf16.gmra.mxu0 %v729
        %v1210 = vpop.f32.mrf.mxu0
        %v1211 = vadd.f32 %v1102, %v1210
        %v1212 = vpop.f32.mrf.mxu0
        %v1213 = vadd.f32 %v1104, %v1212
        %1214 = vmatmul.bf16.gmra.mxu0 %v731
        %v1215 = vpop.f32.mrf.mxu0
        %v1216 = vadd.f32 %v1107, %v1215
        %v1217 = vpop.f32.mrf.mxu0
        %v1218 = vadd.f32 %v1109, %v1217
        %1219 = vmatmul.bf16.gmra.mxu0 %v733
        %v1220 = vpop.f32.mrf.mxu0
        %v1221 = vadd.f32 %v1112, %v1220
        %v1222 = vpop.f32.mrf.mxu0
        %v1223 = vadd.f32 %v1114, %v1222
        %1224 = vmatmul.bf16.gmra.mxu0 %v735
        %v1225 = vpop.f32.mrf.mxu0
        %v1226 = vadd.f32 %v1117, %v1225
        %v1227 = vpop.f32.mrf.mxu0
        %v1228 = vadd.f32 %v1119, %v1227
        %1229 = vmatmul.bf16.gmra.mxu0 %v737
        %v1230 = vpop.f32.mrf.mxu0
        %v1231 = vadd.f32 %v1122, %v1230
        %v1232 = vpop.f32.mrf.mxu0
        %v1233 = vadd.f32 %v1124, %v1232
        %1234 = vmatmul.bf16.gmra.mxu0 %v739
        %v1235 = vpop.f32.mrf.mxu0
        %v1236 = vadd.f32 %v1127, %v1235
        %v1237 = vpop.f32.mrf.mxu0
        %v1238 = vadd.f32 %v1129, %v1237
        %1239 = vmatmul.bf16.gmra.mxu0 %v741
        %v1240 = vpop.f32.mrf.mxu0
        %v1241 = vadd.f32 %v1132, %v1240
        %v1242 = vpop.f32.mrf.mxu0
        %v1243 = vadd.f32 %v1134, %v1242
        %1244 = vmatmul.bf16.gmra.mxu0 %v743
        %v1245 = vpop.f32.mrf.mxu0
        %v1246 = vadd.f32 %v1137, %v1245
        %v1247 = vpop.f32.mrf.mxu0
        %v1248 = vadd.f32 %v1139, %v1247
        %1249 = vmatmul.bf16.gmra.mxu0 %v745
        %v1250 = vpop.f32.mrf.mxu0
        %v1251 = vadd.f32 %v1142, %v1250
        %v1252 = vpop.f32.mrf.mxu0
        %v1253 = vadd.f32 %v1144, %v1252
        %1254 = vmatmul.bf16.gmra.mxu0 %v747
        %v1255 = vpop.f32.mrf.mxu0
        %v1256 = vadd.f32 %v1147, %v1255
        %v1257 = vpop.f32.mrf.mxu0
        %v1258 = vadd.f32 %v1149, %v1257
        %1259 = vmatmul.bf16.gmra.mxu0 %v749
        %v1260 = vpop.f32.mrf.mxu0
        %v1261 = vadd.f32 %v1152, %v1260
        %v1262 = vpop.f32.mrf.mxu0
        %v1263 = vadd.f32 %v1154, %v1262
        %1264 = vmatmul.bf16.gmra.mxu0 %v751
        %v1265 = vpop.f32.mrf.mxu0
        %v1266 = vadd.f32 %v1157, %v1265
        %v1267 = vpop.f32.mrf.mxu0
        %v1268 = vadd.f32 %v1159, %v1267
        %1269 = vmatmul.bf16.gmra.mxu0 %v753
        %v1270 = vpop.f32.mrf.mxu0
        %v1271 = vadd.f32 %v1162, %v1270
        %v1272 = vpop.f32.mrf.mxu0
        %v1273 = vadd.f32 %v1164, %v1272
        %1274 = vmatmul.bf16.gmra.mxu0 %v755
        %v1275 = vpop.f32.mrf.mxu0
        %v1276 = vadd.f32 %v1167, %v1275
        %v1277 = vpop.f32.mrf.mxu0
        %v1278 = vadd.f32 %v1169, %v1277
        %1279 = vmatmul.bf16.gmra.mxu0 %v757
        %v1280 = vpop.f32.mrf.mxu0
        %v1281 = vadd.f32 %v1172, %v1280
        %v1282 = vpop.f32.mrf.mxu0
        %v1283 = vadd.f32 %v1174, %v1282
        %1284 = vmatmul.bf16.gmra.mxu0 %v759
        %v1285 = vpop.f32.mrf.mxu0
        %v1286 = vadd.f32 %v1177, %v1285
        %v1287 = vpop.f32.mrf.mxu0
        %v1288 = vadd.f32 %v1179, %v1287
        %1289 = vmatmul.bf16.gmra.mxu0 %v761
        %v1290 = vpop.f32.mrf.mxu0
        %v1291 = vadd.f32 %v1182, %v1290
        %v1292 = vpop.f32.mrf.mxu0
        %v1293 = vadd.f32 %v1184, %v1292
        %1294 = vmatmul.bf16.gmra.mxu0 %v763
        %v1295 = vpop.f32.mrf.mxu0
        %v1296 = vadd.f32 %v1187, %v1295
        %v1297 = vpop.f32.mrf.mxu0
        %v1298 = vadd.f32 %v1189, %v1297
        %1299 = vmatmul.bf16.gmra.mxu0 %v765
        %v1300 = vpop.f32.mrf.mxu0
        %v1301 = vadd.f32 %v1192, %v1300
        %v1302 = vpop.f32.mrf.mxu0
        %v1303 = vadd.f32 %v1194, %v1302
        %1304 = vdwg.mxu0
        %v1306 = vperm.slane %v370, 0
        %v1308 = vadd.f32 %v1306, %v1206
        %v1309 = vadd.f32 %v1306, %v1208
        %v1310 = vadd.f32 %v1306, %v1211
        %v1311 = vadd.f32 %v1306, %v1213
        %v1312 = vadd.f32 %v1306, %v1216
        %v1313 = vadd.f32 %v1306, %v1218
        %v1314 = vadd.f32 %v1306, %v1221
        %v1315 = vadd.f32 %v1306, %v1223
        %v1316 = vadd.f32 %v1306, %v1226
        %v1317 = vadd.f32 %v1306, %v1228
        %v1318 = vadd.f32 %v1306, %v1231
        %v1319 = vadd.f32 %v1306, %v1233
        %v1320 = vadd.f32 %v1306, %v1236
        %v1321 = vadd.f32 %v1306, %v1238
        %v1322 = vadd.f32 %v1306, %v1241
        %v1323 = vadd.f32 %v1306, %v1243
        %v1324 = vadd.f32 %v1306, %v1246
        %v1325 = vadd.f32 %v1306, %v1248
        %v1326 = vadd.f32 %v1306, %v1251
        %v1327 = vadd.f32 %v1306, %v1253
        %v1328 = vadd.f32 %v1306, %v1256
        %v1329 = vadd.f32 %v1306, %v1258
        %v1330 = vadd.f32 %v1306, %v1261
        %v1331 = vadd.f32 %v1306, %v1263
        %v1332 = vadd.f32 %v1306, %v1266
        %v1333 = vadd.f32 %v1306, %v1268
        %v1334 = vadd.f32 %v1306, %v1271
        %v1335 = vadd.f32 %v1306, %v1273
        %v1336 = vadd.f32 %v1306, %v1276
        %v1337 = vadd.f32 %v1306, %v1278
        %v1338 = vadd.f32 %v1306, %v1281
        %v1339 = vadd.f32 %v1306, %v1283
        %v1340 = vadd.f32 %v1306, %v1286
        %v1341 = vadd.f32 %v1306, %v1288
        %v1342 = vadd.f32 %v1306, %v1291
        %v1343 = vadd.f32 %v1306, %v1293
        %v1344 = vadd.f32 %v1306, %v1296
        %v1345 = vadd.f32 %v1306, %v1298
        %v1346 = vadd.f32 %v1306, %v1301
        %v1347 = vadd.f32 %v1306, %v1303
        %v1348 = vld [vmem:[%s320 + $0x10] sm:$0xf]
        %v1349 = vld [vmem:[%s320 + $0x14] sm:$0xf]
        %v1350 = vld [vmem:[%s320 + $0x18] sm:$0xf]
        %v1351 = vld [vmem:[%s320 + $0x1c] sm:$0xf]
        %v1352 = vld [vmem:[%s320 + $0x20] sm:$0xf]
        %v1353 = vld [vmem:[%s320 + $0x24] sm:$0xf]
        %v1354 = vld [vmem:[%s320 + $0x28] sm:$0xf]
        %v1355 = vld [vmem:[%s320 + $0x2c] sm:$0xf]
        %v1356 = vld [vmem:[%s320 + $0x30] sm:$0xf]
        %v1357 = vld [vmem:[%s320 + $0x34] sm:$0xf]
        %v1358 = vld [vmem:[%s320 + $0x38] sm:$0xf]
        %v1359 = vld [vmem:[%s320 + $0x3c] sm:$0xf]
        %v1360 = vld [vmem:[%s320 + $0x40] sm:$0xf]
        %v1361 = vld [vmem:[%s320 + $0x44] sm:$0xf]
        %v1362 = vld [vmem:[%s320 + $0x48] sm:$0xf]
        %v1363 = vld [vmem:[%s320 + $0x4c] sm:$0xf]
        %v1364 = vld [vmem:[%s320 + $0x50] sm:$0xf]
        %v1365 = vld [vmem:[%s320 + $0x54] sm:$0xf]
        %v1366 = vld [vmem:[%s320 + $0x58] sm:$0xf]
        %v1367 = vld [vmem:[%s320 + $0x5c] sm:$0xf]
        %v1368 = vld [vmem:[%s320 + $0x60] sm:$0xf]
        %v1369 = vld [vmem:[%s320 + $0x64] sm:$0xf]
        %v1370 = vld [vmem:[%s320 + $0x68] sm:$0xf]
        %v1371 = vld [vmem:[%s320 + $0x6c] sm:$0xf]
        %v1372 = vld [vmem:[%s320 + $0x70] sm:$0xf]
        %v1373 = vld [vmem:[%s320 + $0x74] sm:$0xf]
        %v1374 = vld [vmem:[%s320 + $0x78] sm:$0xf]
        %v1375 = vld [vmem:[%s320 + $0x7c] sm:$0xf]
        %v1376 = vld [vmem:[%s320 + $0x80] sm:$0xf]
        %v1377 = vld [vmem:[%s320 + $0x84] sm:$0xf]
        %v1378 = vld [vmem:[%s320 + $0x88] sm:$0xf]
        %v1379 = vld [vmem:[%s320 + $0x8c] sm:$0xf]
        %v1380 = vld [vmem:[%s320 + $0x90] sm:$0xf]
        %v1381 = vld [vmem:[%s320 + $0x94] sm:$0xf]
        %v1382 = vld [vmem:[%s320 + $0x98] sm:$0xf]
        %v1383 = vld [vmem:[%s320 + $0x9c] sm:$0xf]
        %v1384 = vld [vmem:[%s320 + $0xa0] sm:$0xf]
        %v1385 = vld [vmem:[%s320 + $0xa4] sm:$0xf]
        %v1386 = vld [vmem:[%s320 + $0xa8] sm:$0xf]
        %v1387 = vld [vmem:[%s320 + $0xac] sm:$0xf]
        %v1388 = vld [vmem:[%s320 + $0xb0] sm:$0x1]
        %v1389 = vld [vmem:[%s320 + $0x10] sm:$0xe]
        %v1430 = vunpack.c.l.b16 %v1348
        %v1431 = vunpack.c.l.b16 %v1349
        %v1432 = vunpack.c.l.b16 %v1350
        %v1433 = vunpack.c.l.b16 %v1351
        %v1434 = vunpack.c.l.b16 %v1352
        %v1435 = vunpack.c.l.b16 %v1353
        %v1436 = vunpack.c.l.b16 %v1354
        %v1437 = vunpack.c.l.b16 %v1355
        %v1438 = vunpack.c.l.b16 %v1356
        %v1439 = vunpack.c.l.b16 %v1357
        %v1440 = vunpack.c.l.b16 %v1358
        %v1441 = vunpack.c.l.b16 %v1359
        %v1442 = vunpack.c.l.b16 %v1360
        %v1443 = vunpack.c.l.b16 %v1361
        %v1444 = vunpack.c.l.b16 %v1362
        %v1445 = vunpack.c.l.b16 %v1363
        %v1446 = vunpack.c.l.b16 %v1364
        %v1447 = vunpack.c.l.b16 %v1365
        %v1448 = vunpack.c.l.b16 %v1366
        %v1449 = vunpack.c.l.b16 %v1367
        %v1450 = vunpack.c.l.b16 %v1368
        %v1451 = vunpack.c.l.b16 %v1369
        %v1452 = vunpack.c.l.b16 %v1370
        %v1453 = vunpack.c.l.b16 %v1371
        %v1454 = vunpack.c.l.b16 %v1372
        %v1455 = vunpack.c.l.b16 %v1373
        %v1456 = vunpack.c.l.b16 %v1374
        %v1457 = vunpack.c.l.b16 %v1375
        %v1458 = vunpack.c.l.b16 %v1376
        %v1459 = vunpack.c.l.b16 %v1377
        %v1460 = vunpack.c.l.b16 %v1378
        %v1461 = vunpack.c.l.b16 %v1379
        %v1462 = vunpack.c.l.b16 %v1380
        %v1463 = vunpack.c.l.b16 %v1381
        %v1464 = vunpack.c.l.b16 %v1382
        %v1465 = vunpack.c.l.b16 %v1383
        %v1466 = vunpack.c.l.b16 %v1384
        %v1467 = vunpack.c.l.b16 %v1385
        %v1468 = vunpack.c.l.b16 %v1386
        %v1469 = vunpack.c.l.b16 %v1387
        %v1470 = vpack.c.b16 %v1431, %v1430
        %v1471 = vpack.c.b16 %v1433, %v1432
        %v1472 = vpack.c.b16 %v1435, %v1434
        %v1473 = vpack.c.b16 %v1437, %v1436
        %v1474 = vpack.c.b16 %v1439, %v1438
        %v1475 = vpack.c.b16 %v1441, %v1440
        %v1476 = vpack.c.b16 %v1443, %v1442
        %v1477 = vpack.c.b16 %v1445, %v1444
        %v1478 = vpack.c.b16 %v1447, %v1446
        %v1479 = vpack.c.b16 %v1449, %v1448
        %v1480 = vpack.c.b16 %v1451, %v1450
        %v1481 = vpack.c.b16 %v1453, %v1452
        %v1482 = vpack.c.b16 %v1455, %v1454
        %v1483 = vpack.c.b16 %v1457, %v1456
        %v1484 = vpack.c.b16 %v1459, %v1458
        %v1485 = vpack.c.b16 %v1461, %v1460
        %v1486 = vpack.c.b16 %v1463, %v1462
        %v1487 = vpack.c.b16 %v1465, %v1464
        %v1488 = vpack.c.b16 %v1467, %v1466
        %v1489 = vpack.c.b16 %v1469, %v1468
        %v1511 = vunpack.c.l.b16 %v1388
        %v1512 = vpack.c.b16 %v1511, %v1511
        %v1514 = vshrl.u32 %v1470, 16
        %v1516 = vshll.u32 %v1470, 16
        %v1518 = vrot.slane %v1516, 1
        %v1519 = vor.u32 %v1514, %v1518
        %v1521 = vshll.u32 %v1471, 16
        %v1523 = vrot.slane %v1521, 1
        %v1524 = vsel %vm536, %v1519, %v1523
        %v1525 = vshrl.u32 %v1471, 16
        %v1527 = vor.u32 %v1525, %v1523
        %v1529 = vshll.u32 %v1472, 16
        %v1531 = vrot.slane %v1529, 1
        %v1532 = vsel %vm536, %v1527, %v1531
        %v1533 = vshrl.u32 %v1472, 16
        %v1535 = vor.u32 %v1533, %v1531
        %v1537 = vshll.u32 %v1473, 16
        %v1539 = vrot.slane %v1537, 1
        %v1540 = vsel %vm536, %v1535, %v1539
        %v1541 = vshrl.u32 %v1473, 16
        %v1543 = vor.u32 %v1541, %v1539
        %v1545 = vshll.u32 %v1474, 16
        %v1547 = vrot.slane %v1545, 1
        %v1548 = vsel %vm536, %v1543, %v1547
        %v1549 = vshrl.u32 %v1474, 16
        %v1551 = vor.u32 %v1549, %v1547
        %v1553 = vshll.u32 %v1475, 16
        %v1555 = vrot.slane %v1553, 1
        %v1556 = vsel %vm536, %v1551, %v1555
        %v1557 = vshrl.u32 %v1475, 16
        %v1559 = vor.u32 %v1557, %v1555
        %v1561 = vshll.u32 %v1476, 16
        %v1563 = vrot.slane %v1561, 1
        %v1564 = vsel %vm536, %v1559, %v1563
        %v1565 = vshrl.u32 %v1476, 16
        %v1567 = vor.u32 %v1565, %v1563
        %v1569 = vshll.u32 %v1477, 16
        %v1571 = vrot.slane %v1569, 1
        %v1572 = vsel %vm536, %v1567, %v1571
        %v1573 = vshrl.u32 %v1477, 16
        %v1575 = vor.u32 %v1573, %v1571
        %v1577 = vshll.u32 %v1478, 16
        %v1579 = vrot.slane %v1577, 1
        %v1580 = vsel %vm536, %v1575, %v1579
        %v1581 = vshrl.u32 %v1478, 16
        %v1583 = vor.u32 %v1581, %v1579
        %v1585 = vshll.u32 %v1479, 16
        %v1587 = vrot.slane %v1585, 1
        %v1588 = vsel %vm536, %v1583, %v1587
        %v1589 = vshrl.u32 %v1479, 16
        %v1591 = vor.u32 %v1589, %v1587
        %v1593 = vshll.u32 %v1480, 16
        %v1595 = vrot.slane %v1593, 1
        %v1596 = vsel %vm536, %v1591, %v1595
        %v1597 = vshrl.u32 %v1480, 16
        %v1599 = vor.u32 %v1597, %v1595
        %v1601 = vshll.u32 %v1481, 16
        %v1603 = vrot.slane %v1601, 1
        %v1604 = vsel %vm536, %v1599, %v1603
        %v1605 = vshrl.u32 %v1481, 16
        %v1607 = vor.u32 %v1605, %v1603
        %v1609 = vshll.u32 %v1482, 16
        %v1611 = vrot.slane %v1609, 1
        %v1612 = vsel %vm536, %v1607, %v1611
        %v1613 = vshrl.u32 %v1482, 16
        %v1615 = vor.u32 %v1613, %v1611
        %v1617 = vshll.u32 %v1483, 16
        %v1619 = vrot.slane %v1617, 1
        %v1620 = vsel %vm536, %v1615, %v1619
        %v1621 = vshrl.u32 %v1483, 16
        %v1623 = vor.u32 %v1621, %v1619
        %v1625 = vshll.u32 %v1484, 16
        %v1627 = vrot.slane %v1625, 1
        %v1628 = vsel %vm536, %v1623, %v1627
        %v1629 = vshrl.u32 %v1484, 16
        %v1631 = vor.u32 %v1629, %v1627
        %v1633 = vshll.u32 %v1485, 16
        %v1635 = vrot.slane %v1633, 1
        %v1636 = vsel %vm536, %v1631, %v1635
        %v1637 = vshrl.u32 %v1485, 16
        %v1639 = vor.u32 %v1637, %v1635
        %v1641 = vshll.u32 %v1486, 16
        %v1643 = vrot.slane %v1641, 1
        %v1644 = vsel %vm536, %v1639, %v1643
        %v1645 = vshrl.u32 %v1486, 16
        %v1647 = vor.u32 %v1645, %v1643
        %v1649 = vshll.u32 %v1487, 16
        %v1651 = vrot.slane %v1649, 1
        %v1652 = vsel %vm536, %v1647, %v1651
        %v1653 = vshrl.u32 %v1487, 16
        %v1655 = vor.u32 %v1653, %v1651
        %v1657 = vshll.u32 %v1488, 16
        %v1659 = vrot.slane %v1657, 1
        %v1660 = vsel %vm536, %v1655, %v1659
        %v1661 = vshrl.u32 %v1488, 16
        %v1663 = vor.u32 %v1661, %v1659
        %v1665 = vshll.u32 %v1489, 16
        %v1667 = vrot.slane %v1665, 1
        %v1668 = vsel %vm536, %v1663, %v1667
        %v1669 = vshrl.u32 %v1489, 16
        %v1671 = vor.u32 %v1669, %v1667
        %v1673 = vshll.u32 %v1512, 16
        %v1675 = vrot.slane %v1673, 1
        %v1676 = vsel %vm536, %v1671, %v1675
        %v1698 = vunpack.c.l.b16 %v1389
        %v1699 = vpack.c.b16 %v1431, %v1698
        %v1700 = vrot.slane %v1699, 1
        %v1701 = vrot.slane %v1471, 1
        %v1702 = vsel %vm724, %v1700, %v1701
        %v1703 = vrot.slane %v1472, 1
        %v1704 = vsel %vm724, %v1701, %v1703
        %v1705 = vrot.slane %v1473, 1
        %v1706 = vsel %vm724, %v1703, %v1705
        %v1707 = vrot.slane %v1474, 1
        %v1708 = vsel %vm724, %v1705, %v1707
        %v1709 = vrot.slane %v1475, 1
        %v1710 = vsel %vm724, %v1707, %v1709
        %v1711 = vrot.slane %v1476, 1
        %v1712 = vsel %vm724, %v1709, %v1711
        %v1713 = vrot.slane %v1477, 1
        %v1714 = vsel %vm724, %v1711, %v1713
        %v1715 = vrot.slane %v1478, 1
        %v1716 = vsel %vm724, %v1713, %v1715
        %v1717 = vrot.slane %v1479, 1
        %v1718 = vsel %vm724, %v1715, %v1717
        %v1719 = vrot.slane %v1480, 1
        %v1720 = vsel %vm724, %v1717, %v1719
        %v1721 = vrot.slane %v1481, 1
        %v1722 = vsel %vm724, %v1719, %v1721
        %v1723 = vrot.slane %v1482, 1
        %v1724 = vsel %vm724, %v1721, %v1723
        %v1725 = vrot.slane %v1483, 1
        %v1726 = vsel %vm724, %v1723, %v1725
        %v1727 = vrot.slane %v1484, 1
        %v1728 = vsel %vm724, %v1725, %v1727
        %v1729 = vrot.slane %v1485, 1
        %v1730 = vsel %vm724, %v1727, %v1729
        %v1731 = vrot.slane %v1486, 1
        %v1732 = vsel %vm724, %v1729, %v1731
        %v1733 = vrot.slane %v1487, 1
        %v1734 = vsel %vm724, %v1731, %v1733
        %v1735 = vrot.slane %v1488, 1
        %v1736 = vsel %vm724, %v1733, %v1735
        %v1737 = vrot.slane %v1489, 1
        %v1738 = vsel %vm724, %v1735, %v1737
        %v1739 = vrot.slane %v1512, 1
        %v1740 = vsel %vm724, %v1737, %v1739
        %s1761 = scalar_lea.vmem [#allocation6], 192
        %v1762 = vld [vmem:[%s1761] sm:$0xf]
        %v1763 = vld [vmem:[%s1761 + $0x4] sm:$0xf]
        %v1764 = vld [vmem:[%s1761 + $0x8] sm:$0xf]
        %v1765 = vld [vmem:[%s1761 + $0xc] sm:$0xf]
        %v1766 = vld [vmem:[%s1761 + $0x10] sm:$0xf]
        %v1767 = vld [vmem:[%s1761 + $0x14] sm:$0xf]
        %v1768 = vld [vmem:[%s1761 + $0x18] sm:$0xf]
        %v1769 = vld [vmem:[%s1761 + $0x1c] sm:$0xf]
        %v1770 = vld [vmem:[%s1761 + $0x20] sm:$0xf]
        %v1771 = vld [vmem:[%s1761 + $0x24] sm:$0xf]
        %v1772 = vld [vmem:[%s1761 + $0x28] sm:$0xf]
        %v1773 = vld [vmem:[%s1761 + $0x2c] sm:$0xf]
        %v1774 = vld [vmem:[%s1761 + $0x30] sm:$0xf]
        %v1775 = vld [vmem:[%s1761 + $0x34] sm:$0xf]
        %v1776 = vld [vmem:[%s1761 + $0x38] sm:$0xf]
        %v1777 = vld [vmem:[%s1761 + $0x3c] sm:$0xf]
        %v1778 = vld [vmem:[%s1761 + $0x40] sm:$0xf]
        %v1779 = vld [vmem:[%s1761 + $0x44] sm:$0xf]
        %v1780 = vld [vmem:[%s1761 + $0x48] sm:$0xf]
        %v1781 = vld [vmem:[%s1761 + $0x4c] sm:$0xf]
        %v1782 = vld [vmem:[%s1761 + $0x50] sm:$0xf]
        %v1783 = vld [vmem:[%s1761 + $0x54] sm:$0xf]
        %v1784 = vld [vmem:[%s1761 + $0x58] sm:$0xf]
        %v1785 = vld [vmem:[%s1761 + $0x5c] sm:$0xf]
        %v1786 = vld [vmem:[%s1761 + $0x60] sm:$0xf]
        %v1787 = vld [vmem:[%s1761 + $0x64] sm:$0xf]
        %v1788 = vld [vmem:[%s1761 + $0x68] sm:$0xf]
        %v1789 = vld [vmem:[%s1761 + $0x6c] sm:$0xf]
        %v1790 = vld [vmem:[%s1761 + $0x70] sm:$0xf]
        %v1791 = vld [vmem:[%s1761 + $0x74] sm:$0xf]
        %v1792 = vld [vmem:[%s1761 + $0x78] sm:$0xf]
        %v1793 = vld [vmem:[%s1761 + $0x7c] sm:$0xf]
        %v1794 = vld [vmem:[%s1761 + $0x80] sm:$0xf]
        %v1795 = vld [vmem:[%s1761 + $0x84] sm:$0xf]
        %v1796 = vld [vmem:[%s1761 + $0x88] sm:$0xf]
        %v1797 = vld [vmem:[%s1761 + $0x8c] sm:$0xf]
        %v1798 = vld [vmem:[%s1761 + $0x90] sm:$0xf]
        %v1799 = vld [vmem:[%s1761 + $0x94] sm:$0xf]
        %v1800 = vld [vmem:[%s1761 + $0x98] sm:$0xf]
        %v1801 = vld [vmem:[%s1761 + $0x9c] sm:$0xf]
        %v1802 = vld [vmem:[%s1761 + $0xa0] sm:$0xf]
        %v1803 = vld [vmem:[%s1761 + $0xa4] sm:$0xf]
        %v1804 = vld [vmem:[%s1761 + $0xa8] sm:$0xf]
        %v1805 = vld [vmem:[%s1761 + $0xac] sm:$0xf]
        %v1806 = vld [vmem:[%s1761 + $0xb0] sm:$0xf]
        %v1807 = vld [vmem:[%s1761 + $0xb4] sm:$0xf]
        %v1808 = vld [vmem:[%s1761 + $0xb8] sm:$0xf]
        %v1809 = vld [vmem:[%s1761 + $0xbc] sm:$0xf]
        %v1858 = vunpack.c.l.b16 %v1762
        %v1859 = vunpack.c.l.b16 %v1763
        %v1860 = vunpack.c.l.b16 %v1764
        %v1861 = vunpack.c.l.b16 %v1765
        %v1862 = vunpack.c.l.b16 %v1766
        %v1863 = vunpack.c.l.b16 %v1767
        %v1864 = vunpack.c.l.b16 %v1768
        %v1865 = vunpack.c.l.b16 %v1769
        %v1866 = vunpack.c.l.b16 %v1770
        %v1867 = vunpack.c.l.b16 %v1771
        %v1868 = vunpack.c.l.b16 %v1772
        %v1869 = vunpack.c.l.b16 %v1773
        %v1870 = vunpack.c.l.b16 %v1774
        %v1871 = vunpack.c.l.b16 %v1775
        %v1872 = vunpack.c.l.b16 %v1776
        %v1873 = vunpack.c.l.b16 %v1777
        %v1874 = vunpack.c.l.b16 %v1778
        %v1875 = vunpack.c.l.b16 %v1779
        %v1876 = vunpack.c.l.b16 %v1780
        %v1877 = vunpack.c.l.b16 %v1781
        %v1878 = vunpack.c.l.b16 %v1782
        %v1879 = vunpack.c.l.b16 %v1783
        %v1880 = vunpack.c.l.b16 %v1784
        %v1881 = vunpack.c.l.b16 %v1785
        %v1882 = vunpack.c.l.b16 %v1786
        %v1883 = vunpack.c.l.b16 %v1787
        %v1884 = vunpack.c.l.b16 %v1788
        %v1885 = vunpack.c.l.b16 %v1789
        %v1886 = vunpack.c.l.b16 %v1790
        %v1887 = vunpack.c.l.b16 %v1791
        %v1888 = vunpack.c.l.b16 %v1792
        %v1889 = vunpack.c.l.b16 %v1793
        %v1890 = vunpack.c.l.b16 %v1794
        %v1891 = vunpack.c.l.b16 %v1795
        %v1892 = vunpack.c.l.b16 %v1796
        %v1893 = vunpack.c.l.b16 %v1797
        %v1894 = vunpack.c.l.b16 %v1798
        %v1895 = vunpack.c.l.b16 %v1799
        %v1896 = vunpack.c.l.b16 %v1800
        %v1897 = vunpack.c.l.b16 %v1801
        %v1898 = vunpack.c.l.b16 %v1802
        %v1899 = vunpack.c.l.b16 %v1803
        %v1900 = vunpack.c.l.b16 %v1804
        %v1901 = vunpack.c.l.b16 %v1805
        %v1902 = vunpack.c.l.b16 %v1806
        %v1903 = vunpack.c.l.b16 %v1807
        %v1904 = vunpack.c.l.b16 %v1808
        %v1905 = vunpack.c.l.b16 %v1809
        %v1906 = vpack.c.b16 %v1859, %v1858
        %v1907 = vpack.c.b16 %v1861, %v1860
        %v1908 = vpack.c.b16 %v1863, %v1862
        %v1909 = vpack.c.b16 %v1865, %v1864
        %v1910 = vpack.c.b16 %v1867, %v1866
        %v1911 = vpack.c.b16 %v1869, %v1868
        %v1912 = vpack.c.b16 %v1871, %v1870
        %v1913 = vpack.c.b16 %v1873, %v1872
        %v1914 = vpack.c.b16 %v1875, %v1874
        %v1915 = vpack.c.b16 %v1877, %v1876
        %v1916 = vpack.c.b16 %v1879, %v1878
        %v1917 = vpack.c.b16 %v1881, %v1880
        %v1918 = vpack.c.b16 %v1883, %v1882
        %v1919 = vpack.c.b16 %v1885, %v1884
        %v1920 = vpack.c.b16 %v1887, %v1886
        %v1921 = vpack.c.b16 %v1889, %v1888
        %v1922 = vpack.c.b16 %v1891, %v1890
        %v1923 = vpack.c.b16 %v1893, %v1892
        %v1924 = vpack.c.b16 %v1895, %v1894
        %v1925 = vpack.c.b16 %v1897, %v1896
        %v1926 = vpack.c.b16 %v1899, %v1898
        %v1927 = vpack.c.b16 %v1901, %v1900
        %v1928 = vpack.c.b16 %v1903, %v1902
        %v1929 = vpack.c.b16 %v1905, %v1904
        %1954 = vmatpush.bf16.msra.mxu0 %v1913
        %1955 = vmatpush.bf16.msra.mxu0 %v1912
        %1956 = vmatpush.bf16.msra.mxu0 %v1911
        %1957 = vmatpush.bf16.msra.mxu0 %v1910
        %1958 = vmatpush.bf16.msra.mxu0 %v1909
        %1959 = vmatpush.bf16.msra.mxu0 %v1908
        %1960 = vmatpush.bf16.msra.mxu0 %v1907
        %1961 = vmatpush.bf16.msra.mxu0 %v1906
        %1962 = vmatmul.bf16.gmra.mxu0 %v1470
        %v1963 = vpop.f32.mrf.mxu0
        %v1964 = vadd.f32 0.0, %v1963
        %v1965 = vpop.f32.mrf.mxu0
        %v1966 = vadd.f32 0.0, %v1965
        %1967 = vmatmul.bf16.gmra.mxu0 %v1471
        %v1968 = vpop.f32.mrf.mxu0
        %v1969 = vadd.f32 0.0, %v1968
        %v1970 = vpop.f32.mrf.mxu0
        %v1971 = vadd.f32 0.0, %v1970
        %1972 = vmatmul.bf16.gmra.mxu0 %v1472
        %v1973 = vpop.f32.mrf.mxu0
        %v1974 = vadd.f32 0.0, %v1973
        %v1975 = vpop.f32.mrf.mxu0
        %v1976 = vadd.f32 0.0, %v1975
        %1977 = vmatmul.bf16.gmra.mxu0 %v1473
        %v1978 = vpop.f32.mrf.mxu0
        %v1979 = vadd.f32 0.0, %v1978
        %v1980 = vpop.f32.mrf.mxu0
        %v1981 = vadd.f32 0.0, %v1980
        %1982 = vmatmul.bf16.gmra.mxu0 %v1474
        %v1983 = vpop.f32.mrf.mxu0
        %v1984 = vadd.f32 0.0, %v1983
        %v1985 = vpop.f32.mrf.mxu0
        %v1986 = vadd.f32 0.0, %v1985
        %1987 = vmatmul.bf16.gmra.mxu0 %v1475
        %v1988 = vpop.f32.mrf.mxu0
        %v1989 = vadd.f32 0.0, %v1988
        %v1990 = vpop.f32.mrf.mxu0
        %v1991 = vadd.f32 0.0, %v1990
        %1992 = vmatmul.bf16.gmra.mxu0 %v1476
        %v1993 = vpop.f32.mrf.mxu0
        %v1994 = vadd.f32 0.0, %v1993
        %v1995 = vpop.f32.mrf.mxu0
        %v1996 = vadd.f32 0.0, %v1995
        %1997 = vmatmul.bf16.gmra.mxu0 %v1477
        %v1998 = vpop.f32.mrf.mxu0
        %v1999 = vadd.f32 0.0, %v1998
        %v2000 = vpop.f32.mrf.mxu0
        %v2001 = vadd.f32 0.0, %v2000
        %2002 = vmatmul.bf16.gmra.mxu0 %v1478
        %v2003 = vpop.f32.mrf.mxu0
        %v2004 = vadd.f32 0.0, %v2003
        %v2005 = vpop.f32.mrf.mxu0
        %v2006 = vadd.f32 0.0, %v2005
        %2007 = vmatmul.bf16.gmra.mxu0 %v1479
        %v2008 = vpop.f32.mrf.mxu0
        %v2009 = vadd.f32 0.0, %v2008
        %v2010 = vpop.f32.mrf.mxu0
        %v2011 = vadd.f32 0.0, %v2010
        %2012 = vmatmul.bf16.gmra.mxu0 %v1480
        %v2013 = vpop.f32.mrf.mxu0
        %v2014 = vadd.f32 0.0, %v2013
        %v2015 = vpop.f32.mrf.mxu0
        %v2016 = vadd.f32 0.0, %v2015
        %2017 = vmatmul.bf16.gmra.mxu0 %v1481
        %v2018 = vpop.f32.mrf.mxu0
        %v2019 = vadd.f32 0.0, %v2018
        %v2020 = vpop.f32.mrf.mxu0
        %v2021 = vadd.f32 0.0, %v2020
        %2022 = vmatmul.bf16.gmra.mxu0 %v1482
        %v2023 = vpop.f32.mrf.mxu0
        %v2024 = vadd.f32 0.0, %v2023
        %v2025 = vpop.f32.mrf.mxu0
        %v2026 = vadd.f32 0.0, %v2025
        %2027 = vmatmul.bf16.gmra.mxu0 %v1483
        %v2028 = vpop.f32.mrf.mxu0
        %v2029 = vadd.f32 0.0, %v2028
        %v2030 = vpop.f32.mrf.mxu0
        %v2031 = vadd.f32 0.0, %v2030
        %2032 = vmatmul.bf16.gmra.mxu0 %v1484
        %v2033 = vpop.f32.mrf.mxu0
        %v2034 = vadd.f32 0.0, %v2033
        %v2035 = vpop.f32.mrf.mxu0
        %v2036 = vadd.f32 0.0, %v2035
        %2037 = vmatmul.bf16.gmra.mxu0 %v1485
        %v2038 = vpop.f32.mrf.mxu0
        %v2039 = vadd.f32 0.0, %v2038
        %v2040 = vpop.f32.mrf.mxu0
        %v2041 = vadd.f32 0.0, %v2040
        %2042 = vmatmul.bf16.gmra.mxu0 %v1486
        %v2043 = vpop.f32.mrf.mxu0
        %v2044 = vadd.f32 0.0, %v2043
        %v2045 = vpop.f32.mrf.mxu0
        %v2046 = vadd.f32 0.0, %v2045
        %2047 = vmatmul.bf16.gmra.mxu0 %v1487
        %v2048 = vpop.f32.mrf.mxu0
        %v2049 = vadd.f32 0.0, %v2048
        %v2050 = vpop.f32.mrf.mxu0
        %v2051 = vadd.f32 0.0, %v2050
        %2052 = vmatmul.bf16.gmra.mxu0 %v1488
        %v2053 = vpop.f32.mrf.mxu0
        %v2054 = vadd.f32 0.0, %v2053
        %v2055 = vpop.f32.mrf.mxu0
        %v2056 = vadd.f32 0.0, %v2055
        %2057 = vmatmul.bf16.gmra.mxu0 %v1489
        %v2058 = vpop.f32.mrf.mxu0
        %v2059 = vadd.f32 0.0, %v2058
        %v2060 = vpop.f32.mrf.mxu0
        %v2061 = vadd.f32 0.0, %v2060
        %2062 = vdwg.mxu0
        %2063 = vmatpush.bf16.msra.mxu0 %v1921
        %2064 = vmatpush.bf16.msra.mxu0 %v1920
        %2065 = vmatpush.bf16.msra.mxu0 %v1919
        %2066 = vmatpush.bf16.msra.mxu0 %v1918
        %2067 = vmatpush.bf16.msra.mxu0 %v1917
        %2068 = vmatpush.bf16.msra.mxu0 %v1916
        %2069 = vmatpush.bf16.msra.mxu0 %v1915
        %2070 = vmatpush.bf16.msra.mxu0 %v1914
        %2071 = vmatmul.bf16.gmra.mxu0 %v1524
        %v2072 = vpop.f32.mrf.mxu0
        %v2073 = vadd.f32 %v1964, %v2072
        %v2074 = vpop.f32.mrf.mxu0
        %v2075 = vadd.f32 %v1966, %v2074
        %2076 = vmatmul.bf16.gmra.mxu0 %v1532
        %v2077 = vpop.f32.mrf.mxu0
        %v2078 = vadd.f32 %v1969, %v2077
        %v2079 = vpop.f32.mrf.mxu0
        %v2080 = vadd.f32 %v1971, %v2079
        %2081 = vmatmul.bf16.gmra.mxu0 %v1540
        %v2082 = vpop.f32.mrf.mxu0
        %v2083 = vadd.f32 %v1974, %v2082
        %v2084 = vpop.f32.mrf.mxu0
        %v2085 = vadd.f32 %v1976, %v2084
        %2086 = vmatmul.bf16.gmra.mxu0 %v1548
        %v2087 = vpop.f32.mrf.mxu0
        %v2088 = vadd.f32 %v1979, %v2087
        %v2089 = vpop.f32.mrf.mxu0
        %v2090 = vadd.f32 %v1981, %v2089
        %2091 = vmatmul.bf16.gmra.mxu0 %v1556
        %v2092 = vpop.f32.mrf.mxu0
        %v2093 = vadd.f32 %v1984, %v2092
        %v2094 = vpop.f32.mrf.mxu0
        %v2095 = vadd.f32 %v1986, %v2094
        %2096 = vmatmul.bf16.gmra.mxu0 %v1564
        %v2097 = vpop.f32.mrf.mxu0
        %v2098 = vadd.f32 %v1989, %v2097
        %v2099 = vpop.f32.mrf.mxu0
        %v2100 = vadd.f32 %v1991, %v2099
        %2101 = vmatmul.bf16.gmra.mxu0 %v1572
        %v2102 = vpop.f32.mrf.mxu0
        %v2103 = vadd.f32 %v1994, %v2102
        %v2104 = vpop.f32.mrf.mxu0
        %v2105 = vadd.f32 %v1996, %v2104
        %2106 = vmatmul.bf16.gmra.mxu0 %v1580
        %v2107 = vpop.f32.mrf.mxu0
        %v2108 = vadd.f32 %v1999, %v2107
        %v2109 = vpop.f32.mrf.mxu0
        %v2110 = vadd.f32 %v2001, %v2109
        %2111 = vmatmul.bf16.gmra.mxu0 %v1588
        %v2112 = vpop.f32.mrf.mxu0
        %v2113 = vadd.f32 %v2004, %v2112
        %v2114 = vpop.f32.mrf.mxu0
        %v2115 = vadd.f32 %v2006, %v2114
        %2116 = vmatmul.bf16.gmra.mxu0 %v1596
        %v2117 = vpop.f32.mrf.mxu0
        %v2118 = vadd.f32 %v2009, %v2117
        %v2119 = vpop.f32.mrf.mxu0
        %v2120 = vadd.f32 %v2011, %v2119
        %2121 = vmatmul.bf16.gmra.mxu0 %v1604
        %v2122 = vpop.f32.mrf.mxu0
        %v2123 = vadd.f32 %v2014, %v2122
        %v2124 = vpop.f32.mrf.mxu0
        %v2125 = vadd.f32 %v2016, %v2124
        %2126 = vmatmul.bf16.gmra.mxu0 %v1612
        %v2127 = vpop.f32.mrf.mxu0
        %v2128 = vadd.f32 %v2019, %v2127
        %v2129 = vpop.f32.mrf.mxu0
        %v2130 = vadd.f32 %v2021, %v2129
        %2131 = vmatmul.bf16.gmra.mxu0 %v1620
        %v2132 = vpop.f32.mrf.mxu0
        %v2133 = vadd.f32 %v2024, %v2132
        %v2134 = vpop.f32.mrf.mxu0
        %v2135 = vadd.f32 %v2026, %v2134
        %2136 = vmatmul.bf16.gmra.mxu0 %v1628
        %v2137 = vpop.f32.mrf.mxu0
        %v2138 = vadd.f32 %v2029, %v2137
        %v2139 = vpop.f32.mrf.mxu0
        %v2140 = vadd.f32 %v2031, %v2139
        %2141 = vmatmul.bf16.gmra.mxu0 %v1636
        %v2142 = vpop.f32.mrf.mxu0
        %v2143 = vadd.f32 %v2034, %v2142
        %v2144 = vpop.f32.mrf.mxu0
        %v2145 = vadd.f32 %v2036, %v2144
        %2146 = vmatmul.bf16.gmra.mxu0 %v1644
        %v2147 = vpop.f32.mrf.mxu0
        %v2148 = vadd.f32 %v2039, %v2147
        %v2149 = vpop.f32.mrf.mxu0
        %v2150 = vadd.f32 %v2041, %v2149
        %2151 = vmatmul.bf16.gmra.mxu0 %v1652
        %v2152 = vpop.f32.mrf.mxu0
        %v2153 = vadd.f32 %v2044, %v2152
        %v2154 = vpop.f32.mrf.mxu0
        %v2155 = vadd.f32 %v2046, %v2154
        %2156 = vmatmul.bf16.gmra.mxu0 %v1660
        %v2157 = vpop.f32.mrf.mxu0
        %v2158 = vadd.f32 %v2049, %v2157
        %v2159 = vpop.f32.mrf.mxu0
        %v2160 = vadd.f32 %v2051, %v2159
        %2161 = vmatmul.bf16.gmra.mxu0 %v1668
        %v2162 = vpop.f32.mrf.mxu0
        %v2163 = vadd.f32 %v2054, %v2162
        %v2164 = vpop.f32.mrf.mxu0
        %v2165 = vadd.f32 %v2056, %v2164
        %2166 = vmatmul.bf16.gmra.mxu0 %v1676
        %v2167 = vpop.f32.mrf.mxu0
        %v2168 = vadd.f32 %v2059, %v2167
        %v2169 = vpop.f32.mrf.mxu0
        %v2170 = vadd.f32 %v2061, %v2169
        %2171 = vdwg.mxu0
        %2172 = vmatpush.bf16.msra.mxu0 %v1929
        %2173 = vmatpush.bf16.msra.mxu0 %v1928
        %2174 = vmatpush.bf16.msra.mxu0 %v1927
        %2175 = vmatpush.bf16.msra.mxu0 %v1926
        %2176 = vmatpush.bf16.msra.mxu0 %v1925
        %2177 = vmatpush.bf16.msra.mxu0 %v1924
        %2178 = vmatpush.bf16.msra.mxu0 %v1923
        %2179 = vmatpush.bf16.msra.mxu0 %v1922
        %2180 = vmatmul.bf16.gmra.mxu0 %v1702
        %v2181 = vpop.f32.mrf.mxu0
        %v2182 = vadd.f32 %v2073, %v2181
        %v2183 = vpop.f32.mrf.mxu0
        %v2184 = vadd.f32 %v2075, %v2183
        %2185 = vmatmul.bf16.gmra.mxu0 %v1704
        %v2186 = vpop.f32.mrf.mxu0
        %v2187 = vadd.f32 %v2078, %v2186
        %v2188 = vpop.f32.mrf.mxu0
        %v2189 = vadd.f32 %v2080, %v2188
        %2190 = vmatmul.bf16.gmra.mxu0 %v1706
        %v2191 = vpop.f32.mrf.mxu0
        %v2192 = vadd.f32 %v2083, %v2191
        %v2193 = vpop.f32.mrf.mxu0
        %v2194 = vadd.f32 %v2085, %v2193
        %2195 = vmatmul.bf16.gmra.mxu0 %v1708
        %v2196 = vpop.f32.mrf.mxu0
        %v2197 = vadd.f32 %v2088, %v2196
        %v2198 = vpop.f32.mrf.mxu0
        %v2199 = vadd.f32 %v2090, %v2198
        %2200 = vmatmul.bf16.gmra.mxu0 %v1710
        %v2201 = vpop.f32.mrf.mxu0
        %v2202 = vadd.f32 %v2093, %v2201
        %v2203 = vpop.f32.mrf.mxu0
        %v2204 = vadd.f32 %v2095, %v2203
        %2205 = vmatmul.bf16.gmra.mxu0 %v1712
        %v2206 = vpop.f32.mrf.mxu0
        %v2207 = vadd.f32 %v2098, %v2206
        %v2208 = vpop.f32.mrf.mxu0
        %v2209 = vadd.f32 %v2100, %v2208
        %2210 = vmatmul.bf16.gmra.mxu0 %v1714
        %v2211 = vpop.f32.mrf.mxu0
        %v2212 = vadd.f32 %v2103, %v2211
        %v2213 = vpop.f32.mrf.mxu0
        %v2214 = vadd.f32 %v2105, %v2213
        %2215 = vmatmul.bf16.gmra.mxu0 %v1716
        %v2216 = vpop.f32.mrf.mxu0
        %v2217 = vadd.f32 %v2108, %v2216
        %v2218 = vpop.f32.mrf.mxu0
        %v2219 = vadd.f32 %v2110, %v2218
        %2220 = vmatmul.bf16.gmra.mxu0 %v1718
        %v2221 = vpop.f32.mrf.mxu0
        %v2222 = vadd.f32 %v2113, %v2221
        %v2223 = vpop.f32.mrf.mxu0
        %v2224 = vadd.f32 %v2115, %v2223
        %2225 = vmatmul.bf16.gmra.mxu0 %v1720
        %v2226 = vpop.f32.mrf.mxu0
        %v2227 = vadd.f32 %v2118, %v2226
        %v2228 = vpop.f32.mrf.mxu0
        %v2229 = vadd.f32 %v2120, %v2228
        %2230 = vmatmul.bf16.gmra.mxu0 %v1722
        %v2231 = vpop.f32.mrf.mxu0
        %v2232 = vadd.f32 %v2123, %v2231
        %v2233 = vpop.f32.mrf.mxu0
        %v2234 = vadd.f32 %v2125, %v2233
        %2235 = vmatmul.bf16.gmra.mxu0 %v1724
        %v2236 = vpop.f32.mrf.mxu0
        %v2237 = vadd.f32 %v2128, %v2236
        %v2238 = vpop.f32.mrf.mxu0
        %v2239 = vadd.f32 %v2130, %v2238
        %2240 = vmatmul.bf16.gmra.mxu0 %v1726
        %v2241 = vpop.f32.mrf.mxu0
        %v2242 = vadd.f32 %v2133, %v2241
        %v2243 = vpop.f32.mrf.mxu0
        %v2244 = vadd.f32 %v2135, %v2243
        %2245 = vmatmul.bf16.gmra.mxu0 %v1728
        %v2246 = vpop.f32.mrf.mxu0
        %v2247 = vadd.f32 %v2138, %v2246
        %v2248 = vpop.f32.mrf.mxu0
        %v2249 = vadd.f32 %v2140, %v2248
        %2250 = vmatmul.bf16.gmra.mxu0 %v1730
        %v2251 = vpop.f32.mrf.mxu0
        %v2252 = vadd.f32 %v2143, %v2251
        %v2253 = vpop.f32.mrf.mxu0
        %v2254 = vadd.f32 %v2145, %v2253
        %2255 = vmatmul.bf16.gmra.mxu0 %v1732
        %v2256 = vpop.f32.mrf.mxu0
        %v2257 = vadd.f32 %v2148, %v2256
        %v2258 = vpop.f32.mrf.mxu0
        %v2259 = vadd.f32 %v2150, %v2258
        %2260 = vmatmul.bf16.gmra.mxu0 %v1734
        %v2261 = vpop.f32.mrf.mxu0
        %v2262 = vadd.f32 %v2153, %v2261
        %v2263 = vpop.f32.mrf.mxu0
        %v2264 = vadd.f32 %v2155, %v2263
        %2265 = vmatmul.bf16.gmra.mxu0 %v1736
        %v2266 = vpop.f32.mrf.mxu0
        %v2267 = vadd.f32 %v2158, %v2266
        %v2268 = vpop.f32.mrf.mxu0
        %v2269 = vadd.f32 %v2160, %v2268
        %2270 = vmatmul.bf16.gmra.mxu0 %v1738
        %v2271 = vpop.f32.mrf.mxu0
        %v2272 = vadd.f32 %v2163, %v2271
        %v2273 = vpop.f32.mrf.mxu0
        %v2274 = vadd.f32 %v2165, %v2273
        %2275 = vmatmul.bf16.gmra.mxu0 %v1740
        %v2276 = vpop.f32.mrf.mxu0
        %v2277 = vadd.f32 %v2168, %v2276
        %v2278 = vpop.f32.mrf.mxu0
        %v2279 = vadd.f32 %v2170, %v2278
        %2280 = vdwg.mxu0
        %v2281 = vadd.f32 %v1308, %v2182
        %v2282 = vadd.f32 %v1309, %v2184
        %v2283 = vadd.f32 %v1310, %v2187
        %v2284 = vadd.f32 %v1311, %v2189
        %v2285 = vadd.f32 %v1312, %v2192
        %v2286 = vadd.f32 %v1313, %v2194
        %v2287 = vadd.f32 %v1314, %v2197
        %v2288 = vadd.f32 %v1315, %v2199
        %v2289 = vadd.f32 %v1316, %v2202
        %v2290 = vadd.f32 %v1317, %v2204
        %v2291 = vadd.f32 %v1318, %v2207
        %v2292 = vadd.f32 %v1319, %v2209
        %v2293 = vadd.f32 %v1320, %v2212
        %v2294 = vadd.f32 %v1321, %v2214
        %v2295 = vadd.f32 %v1322, %v2217
        %v2296 = vadd.f32 %v1323, %v2219
        %v2297 = vadd.f32 %v1324, %v2222
        %v2298 = vadd.f32 %v1325, %v2224
        %v2299 = vadd.f32 %v1326, %v2227
        %v2300 = vadd.f32 %v1327, %v2229
        %v2301 = vadd.f32 %v1328, %v2232
        %v2302 = vadd.f32 %v1329, %v2234
        %v2303 = vadd.f32 %v1330, %v2237
        %v2304 = vadd.f32 %v1331, %v2239
        %v2305 = vadd.f32 %v1332, %v2242
        %v2306 = vadd.f32 %v1333, %v2244
        %v2307 = vadd.f32 %v1334, %v2247
        %v2308 = vadd.f32 %v1335, %v2249
        %v2309 = vadd.f32 %v1336, %v2252
        %v2310 = vadd.f32 %v1337, %v2254
        %v2311 = vadd.f32 %v1338, %v2257
        %v2312 = vadd.f32 %v1339, %v2259
        %v2313 = vadd.f32 %v1340, %v2262
        %v2314 = vadd.f32 %v1341, %v2264
        %v2315 = vadd.f32 %v1342, %v2267
        %v2316 = vadd.f32 %v1343, %v2269
        %v2317 = vadd.f32 %v1344, %v2272
        %v2318 = vadd.f32 %v1345, %v2274
        %v2319 = vadd.f32 %v1346, %v2277
        %v2320 = vadd.f32 %v1347, %v2279
        %v2321 = vld [vmem:[%s320 + $0x20] sm:$0xf]
        %v2322 = vld [vmem:[%s320 + $0x24] sm:$0xf]
        %v2323 = vld [vmem:[%s320 + $0x28] sm:$0xf]
        %v2324 = vld [vmem:[%s320 + $0x2c] sm:$0xf]
        %v2325 = vld [vmem:[%s320 + $0x30] sm:$0xf]
        %v2326 = vld [vmem:[%s320 + $0x34] sm:$0xf]
        %v2327 = vld [vmem:[%s320 + $0x38] sm:$0xf]
        %v2328 = vld [vmem:[%s320 + $0x3c] sm:$0xf]
        %v2329 = vld [vmem:[%s320 + $0x40] sm:$0xf]
        %v2330 = vld [vmem:[%s320 + $0x44] sm:$0xf]
        %v2331 = vld [vmem:[%s320 + $0x48] sm:$0xf]
        %v2332 = vld [vmem:[%s320 + $0x4c] sm:$0xf]
        %v2333 = vld [vmem:[%s320 + $0x50] sm:$0xf]
        %v2334 = vld [vmem:[%s320 + $0x54] sm:$0xf]
        %v2335 = vld [vmem:[%s320 + $0x58] sm:$0xf]
        %v2336 = vld [vmem:[%s320 + $0x5c] sm:$0xf]
        %v2337 = vld [vmem:[%s320 + $0x60] sm:$0xf]
        %v2338 = vld [vmem:[%s320 + $0x64] sm:$0xf]
        %v2339 = vld [vmem:[%s320 + $0x68] sm:$0xf]
        %v2340 = vld [vmem:[%s320 + $0x6c] sm:$0xf]
        %v2341 = vld [vmem:[%s320 + $0x70] sm:$0xf]
        %v2342 = vld [vmem:[%s320 + $0x74] sm:$0xf]
        %v2343 = vld [vmem:[%s320 + $0x78] sm:$0xf]
        %v2344 = vld [vmem:[%s320 + $0x7c] sm:$0xf]
        %v2345 = vld [vmem:[%s320 + $0x80] sm:$0xf]
        %v2346 = vld [vmem:[%s320 + $0x84] sm:$0xf]
        %v2347 = vld [vmem:[%s320 + $0x88] sm:$0xf]
        %v2348 = vld [vmem:[%s320 + $0x8c] sm:$0xf]
        %v2349 = vld [vmem:[%s320 + $0x90] sm:$0xf]
        %v2350 = vld [vmem:[%s320 + $0x94] sm:$0xf]
        %v2351 = vld [vmem:[%s320 + $0x98] sm:$0xf]
        %v2352 = vld [vmem:[%s320 + $0x9c] sm:$0xf]
        %v2353 = vld [vmem:[%s320 + $0xa0] sm:$0xf]
        %v2354 = vld [vmem:[%s320 + $0xa4] sm:$0xf]
        %v2355 = vld [vmem:[%s320 + $0xa8] sm:$0xf]
        %v2356 = vld [vmem:[%s320 + $0xac] sm:$0xf]
        %v2357 = vld [vmem:[%s320 + $0xb0] sm:$0xf]
        %v2358 = vld [vmem:[%s320 + $0xb4] sm:$0xf]
        %v2359 = vld [vmem:[%s320 + $0xb8] sm:$0xf]
        %v2360 = vld [vmem:[%s320 + $0xbc] sm:$0xf]
        %v2361 = vld [vmem:[%s320 + $0xc0] sm:$0x1]
        %v2362 = vld [vmem:[%s320 + $0x20] sm:$0xe]
        %v2403 = vunpack.c.l.b16 %v2321
        %v2404 = vunpack.c.l.b16 %v2322
        %v2405 = vunpack.c.l.b16 %v2323
        %v2406 = vunpack.c.l.b16 %v2324
        %v2407 = vunpack.c.l.b16 %v2325
        %v2408 = vunpack.c.l.b16 %v2326
        %v2409 = vunpack.c.l.b16 %v2327
        %v2410 = vunpack.c.l.b16 %v2328
        %v2411 = vunpack.c.l.b16 %v2329
        %v2412 = vunpack.c.l.b16 %v2330
        %v2413 = vunpack.c.l.b16 %v2331
        %v2414 = vunpack.c.l.b16 %v2332
        %v2415 = vunpack.c.l.b16 %v2333
        %v2416 = vunpack.c.l.b16 %v2334
        %v2417 = vunpack.c.l.b16 %v2335
        %v2418 = vunpack.c.l.b16 %v2336
        %v2419 = vunpack.c.l.b16 %v2337
        %v2420 = vunpack.c.l.b16 %v2338
        %v2421 = vunpack.c.l.b16 %v2339
        %v2422 = vunpack.c.l.b16 %v2340
        %v2423 = vunpack.c.l.b16 %v2341
        %v2424 = vunpack.c.l.b16 %v2342
        %v2425 = vunpack.c.l.b16 %v2343
        %v2426 = vunpack.c.l.b16 %v2344
        %v2427 = vunpack.c.l.b16 %v2345
        %v2428 = vunpack.c.l.b16 %v2346
        %v2429 = vunpack.c.l.b16 %v2347
        %v2430 = vunpack.c.l.b16 %v2348
        %v2431 = vunpack.c.l.b16 %v2349
        %v2432 = vunpack.c.l.b16 %v2350
        %v2433 = vunpack.c.l.b16 %v2351
        %v2434 = vunpack.c.l.b16 %v2352
        %v2435 = vunpack.c.l.b16 %v2353
        %v2436 = vunpack.c.l.b16 %v2354
        %v2437 = vunpack.c.l.b16 %v2355
        %v2438 = vunpack.c.l.b16 %v2356
        %v2439 = vunpack.c.l.b16 %v2357
        %v2440 = vunpack.c.l.b16 %v2358
        %v2441 = vunpack.c.l.b16 %v2359
        %v2442 = vunpack.c.l.b16 %v2360
        %v2443 = vpack.c.b16 %v2404, %v2403
        %v2444 = vpack.c.b16 %v2406, %v2405
        %v2445 = vpack.c.b16 %v2408, %v2407
        %v2446 = vpack.c.b16 %v2410, %v2409
        %v2447 = vpack.c.b16 %v2412, %v2411
        %v2448 = vpack.c.b16 %v2414, %v2413
        %v2449 = vpack.c.b16 %v2416, %v2415
        %v2450 = vpack.c.b16 %v2418, %v2417
        %v2451 = vpack.c.b16 %v2420, %v2419
        %v2452 = vpack.c.b16 %v2422, %v2421
        %v2453 = vpack.c.b16 %v2424, %v2423
        %v2454 = vpack.c.b16 %v2426, %v2425
        %v2455 = vpack.c.b16 %v2428, %v2427
        %v2456 = vpack.c.b16 %v2430, %v2429
        %v2457 = vpack.c.b16 %v2432, %v2431
        %v2458 = vpack.c.b16 %v2434, %v2433
        %v2459 = vpack.c.b16 %v2436, %v2435
        %v2460 = vpack.c.b16 %v2438, %v2437
        %v2461 = vpack.c.b16 %v2440, %v2439
        %v2462 = vpack.c.b16 %v2442, %v2441
        %v2484 = vunpack.c.l.b16 %v2361
        %v2485 = vpack.c.b16 %v2484, %v2484
        %v2487 = vshrl.u32 %v2443, 16
        %v2489 = vshll.u32 %v2443, 16
        %v2491 = vrot.slane %v2489, 1
        %v2492 = vor.u32 %v2487, %v2491
        %v2494 = vshll.u32 %v2444, 16
        %v2496 = vrot.slane %v2494, 1
        %v2497 = vsel %vm536, %v2492, %v2496
        %v2498 = vshrl.u32 %v2444, 16
        %v2500 = vor.u32 %v2498, %v2496
        %v2502 = vshll.u32 %v2445, 16
        %v2504 = vrot.slane %v2502, 1
        %v2505 = vsel %vm536, %v2500, %v2504
        %v2506 = vshrl.u32 %v2445, 16
        %v2508 = vor.u32 %v2506, %v2504
        %v2510 = vshll.u32 %v2446, 16
        %v2512 = vrot.slane %v2510, 1
        %v2513 = vsel %vm536, %v2508, %v2512
        %v2514 = vshrl.u32 %v2446, 16
        %v2516 = vor.u32 %v2514, %v2512
        %v2518 = vshll.u32 %v2447, 16
        %v2520 = vrot.slane %v2518, 1
        %v2521 = vsel %vm536, %v2516, %v2520
        %v2522 = vshrl.u32 %v2447, 16
        %v2524 = vor.u32 %v2522, %v2520
        %v2526 = vshll.u32 %v2448, 16
        %v2528 = vrot.slane %v2526, 1
        %v2529 = vsel %vm536, %v2524, %v2528
        %v2530 = vshrl.u32 %v2448, 16
        %v2532 = vor.u32 %v2530, %v2528
        %v2534 = vshll.u32 %v2449, 16
        %v2536 = vrot.slane %v2534, 1
        %v2537 = vsel %vm536, %v2532, %v2536
        %v2538 = vshrl.u32 %v2449, 16
        %v2540 = vor.u32 %v2538, %v2536
        %v2542 = vshll.u32 %v2450, 16
        %v2544 = vrot.slane %v2542, 1
        %v2545 = vsel %vm536, %v2540, %v2544
        %v2546 = vshrl.u32 %v2450, 16
        %v2548 = vor.u32 %v2546, %v2544
        %v2550 = vshll.u32 %v2451, 16
        %v2552 = vrot.slane %v2550, 1
        %v2553 = vsel %vm536, %v2548, %v2552
        %v2554 = vshrl.u32 %v2451, 16
        %v2556 = vor.u32 %v2554, %v2552
        %v2558 = vshll.u32 %v2452, 16
        %v2560 = vrot.slane %v2558, 1
        %v2561 = vsel %vm536, %v2556, %v2560
        %v2562 = vshrl.u32 %v2452, 16
        %v2564 = vor.u32 %v2562, %v2560
        %v2566 = vshll.u32 %v2453, 16
        %v2568 = vrot.slane %v2566, 1
        %v2569 = vsel %vm536, %v2564, %v2568
        %v2570 = vshrl.u32 %v2453, 16
        %v2572 = vor.u32 %v2570, %v2568
        %v2574 = vshll.u32 %v2454, 16
        %v2576 = vrot.slane %v2574, 1
        %v2577 = vsel %vm536, %v2572, %v2576
        %v2578 = vshrl.u32 %v2454, 16
        %v2580 = vor.u32 %v2578, %v2576
        %v2582 = vshll.u32 %v2455, 16
        %v2584 = vrot.slane %v2582, 1
        %v2585 = vsel %vm536, %v2580, %v2584
        %v2586 = vshrl.u32 %v2455, 16
        %v2588 = vor.u32 %v2586, %v2584
        %v2590 = vshll.u32 %v2456, 16
        %v2592 = vrot.slane %v2590, 1
        %v2593 = vsel %vm536, %v2588, %v2592
        %v2594 = vshrl.u32 %v2456, 16
        %v2596 = vor.u32 %v2594, %v2592
        %v2598 = vshll.u32 %v2457, 16
        %v2600 = vrot.slane %v2598, 1
        %v2601 = vsel %vm536, %v2596, %v2600
        %v2602 = vshrl.u32 %v2457, 16
        %v2604 = vor.u32 %v2602, %v2600
        %v2606 = vshll.u32 %v2458, 16
        %v2608 = vrot.slane %v2606, 1
        %v2609 = vsel %vm536, %v2604, %v2608
        %v2610 = vshrl.u32 %v2458, 16
        %v2612 = vor.u32 %v2610, %v2608
        %v2614 = vshll.u32 %v2459, 16
        %v2616 = vrot.slane %v2614, 1
        %v2617 = vsel %vm536, %v2612, %v2616
        %v2618 = vshrl.u32 %v2459, 16
        %v2620 = vor.u32 %v2618, %v2616
        %v2622 = vshll.u32 %v2460, 16
        %v2624 = vrot.slane %v2622, 1
        %v2625 = vsel %vm536, %v2620, %v2624
        %v2626 = vshrl.u32 %v2460, 16
        %v2628 = vor.u32 %v2626, %v2624
        %v2630 = vshll.u32 %v2461, 16
        %v2632 = vrot.slane %v2630, 1
        %v2633 = vsel %vm536, %v2628, %v2632
        %v2634 = vshrl.u32 %v2461, 16
        %v2636 = vor.u32 %v2634, %v2632
        %v2638 = vshll.u32 %v2462, 16
        %v2640 = vrot.slane %v2638, 1
        %v2641 = vsel %vm536, %v2636, %v2640
        %v2642 = vshrl.u32 %v2462, 16
        %v2644 = vor.u32 %v2642, %v2640
        %v2646 = vshll.u32 %v2485, 16
        %v2648 = vrot.slane %v2646, 1
        %v2649 = vsel %vm536, %v2644, %v2648
        %v2671 = vunpack.c.l.b16 %v2362
        %v2672 = vpack.c.b16 %v2404, %v2671
        %v2673 = vrot.slane %v2672, 1
        %v2674 = vrot.slane %v2444, 1
        %v2675 = vsel %vm724, %v2673, %v2674
        %v2676 = vrot.slane %v2445, 1
        %v2677 = vsel %vm724, %v2674, %v2676
        %v2678 = vrot.slane %v2446, 1
        %v2679 = vsel %vm724, %v2676, %v2678
        %v2680 = vrot.slane %v2447, 1
        %v2681 = vsel %vm724, %v2678, %v2680
        %v2682 = vrot.slane %v2448, 1
        %v2683 = vsel %vm724, %v2680, %v2682
        %v2684 = vrot.slane %v2449, 1
        %v2685 = vsel %vm724, %v2682, %v2684
        %v2686 = vrot.slane %v2450, 1
        %v2687 = vsel %vm724, %v2684, %v2686
        %v2688 = vrot.slane %v2451, 1
        %v2689 = vsel %vm724, %v2686, %v2688
        %v2690 = vrot.slane %v2452, 1
        %v2691 = vsel %vm724, %v2688, %v2690
        %v2692 = vrot.slane %v2453, 1
        %v2693 = vsel %vm724, %v2690, %v2692
        %v2694 = vrot.slane %v2454, 1
        %v2695 = vsel %vm724, %v2692, %v2694
        %v2696 = vrot.slane %v2455, 1
        %v2697 = vsel %vm724, %v2694, %v2696
        %v2698 = vrot.slane %v2456, 1
        %v2699 = vsel %vm724, %v2696, %v2698
        %v2700 = vrot.slane %v2457, 1
        %v2701 = vsel %vm724, %v2698, %v2700
        %v2702 = vrot.slane %v2458, 1
        %v2703 = vsel %vm724, %v2700, %v2702
        %v2704 = vrot.slane %v2459, 1
        %v2705 = vsel %vm724, %v2702, %v2704
        %v2706 = vrot.slane %v2460, 1
        %v2707 = vsel %vm724, %v2704, %v2706
        %v2708 = vrot.slane %v2461, 1
        %v2709 = vsel %vm724, %v2706, %v2708
        %v2710 = vrot.slane %v2462, 1
        %v2711 = vsel %vm724, %v2708, %v2710
        %v2712 = vrot.slane %v2485, 1
        %v2713 = vsel %vm724, %v2710, %v2712
        %s2734 = scalar_lea.vmem [#allocation6], 384
        %v2735 = vld [vmem:[%s2734] sm:$0xf]
        %v2736 = vld [vmem:[%s2734 + $0x4] sm:$0xf]
        %v2737 = vld [vmem:[%s2734 + $0x8] sm:$0xf]
        %v2738 = vld [vmem:[%s2734 + $0xc] sm:$0xf]
        %v2739 = vld [vmem:[%s2734 + $0x10] sm:$0xf]
        %v2740 = vld [vmem:[%s2734 + $0x14] sm:$0xf]
        %v2741 = vld [vmem:[%s2734 + $0x18] sm:$0xf]
        %v2742 = vld [vmem:[%s2734 + $0x1c] sm:$0xf]
        %v2743 = vld [vmem:[%s2734 + $0x20] sm:$0xf]
        %v2744 = vld [vmem:[%s2734 + $0x24] sm:$0xf]
        %v2745 = vld [vmem:[%s2734 + $0x28] sm:$0xf]
        %v2746 = vld [vmem:[%s2734 + $0x2c] sm:$0xf]
        %v2747 = vld [vmem:[%s2734 + $0x30] sm:$0xf]
        %v2748 = vld [vmem:[%s2734 + $0x34] sm:$0xf]
        %v2749 = vld [vmem:[%s2734 + $0x38] sm:$0xf]
        %v2750 = vld [vmem:[%s2734 + $0x3c] sm:$0xf]
        %v2751 = vld [vmem:[%s2734 + $0x40] sm:$0xf]
        %v2752 = vld [vmem:[%s2734 + $0x44] sm:$0xf]
        %v2753 = vld [vmem:[%s2734 + $0x48] sm:$0xf]
        %v2754 = vld [vmem:[%s2734 + $0x4c] sm:$0xf]
        %v2755 = vld [vmem:[%s2734 + $0x50] sm:$0xf]
        %v2756 = vld [vmem:[%s2734 + $0x54] sm:$0xf]
        %v2757 = vld [vmem:[%s2734 + $0x58] sm:$0xf]
        %v2758 = vld [vmem:[%s2734 + $0x5c] sm:$0xf]
        %v2759 = vld [vmem:[%s2734 + $0x60] sm:$0xf]
        %v2760 = vld [vmem:[%s2734 + $0x64] sm:$0xf]
        %v2761 = vld [vmem:[%s2734 + $0x68] sm:$0xf]
        %v2762 = vld [vmem:[%s2734 + $0x6c] sm:$0xf]
        %v2763 = vld [vmem:[%s2734 + $0x70] sm:$0xf]
        %v2764 = vld [vmem:[%s2734 + $0x74] sm:$0xf]
        %v2765 = vld [vmem:[%s2734 + $0x78] sm:$0xf]
        %v2766 = vld [vmem:[%s2734 + $0x7c] sm:$0xf]
        %v2767 = vld [vmem:[%s2734 + $0x80] sm:$0xf]
        %v2768 = vld [vmem:[%s2734 + $0x84] sm:$0xf]
        %v2769 = vld [vmem:[%s2734 + $0x88] sm:$0xf]
        %v2770 = vld [vmem:[%s2734 + $0x8c] sm:$0xf]
        %v2771 = vld [vmem:[%s2734 + $0x90] sm:$0xf]
        %v2772 = vld [vmem:[%s2734 + $0x94] sm:$0xf]
        %v2773 = vld [vmem:[%s2734 + $0x98] sm:$0xf]
        %v2774 = vld [vmem:[%s2734 + $0x9c] sm:$0xf]
        %v2775 = vld [vmem:[%s2734 + $0xa0] sm:$0xf]
        %v2776 = vld [vmem:[%s2734 + $0xa4] sm:$0xf]
        %v2777 = vld [vmem:[%s2734 + $0xa8] sm:$0xf]
        %v2778 = vld [vmem:[%s2734 + $0xac] sm:$0xf]
        %v2779 = vld [vmem:[%s2734 + $0xb0] sm:$0xf]
        %v2780 = vld [vmem:[%s2734 + $0xb4] sm:$0xf]
        %v2781 = vld [vmem:[%s2734 + $0xb8] sm:$0xf]
        %v2782 = vld [vmem:[%s2734 + $0xbc] sm:$0xf]
        %v2831 = vunpack.c.l.b16 %v2735
        %v2832 = vunpack.c.l.b16 %v2736
        %v2833 = vunpack.c.l.b16 %v2737
        %v2834 = vunpack.c.l.b16 %v2738
        %v2835 = vunpack.c.l.b16 %v2739
        %v2836 = vunpack.c.l.b16 %v2740
        %v2837 = vunpack.c.l.b16 %v2741
        %v2838 = vunpack.c.l.b16 %v2742
        %v2839 = vunpack.c.l.b16 %v2743
        %v2840 = vunpack.c.l.b16 %v2744
        %v2841 = vunpack.c.l.b16 %v2745
        %v2842 = vunpack.c.l.b16 %v2746
        %v2843 = vunpack.c.l.b16 %v2747
        %v2844 = vunpack.c.l.b16 %v2748
        %v2845 = vunpack.c.l.b16 %v2749
        %v2846 = vunpack.c.l.b16 %v2750
        %v2847 = vunpack.c.l.b16 %v2751
        %v2848 = vunpack.c.l.b16 %v2752
        %v2849 = vunpack.c.l.b16 %v2753
        %v2850 = vunpack.c.l.b16 %v2754
        %v2851 = vunpack.c.l.b16 %v2755
        %v2852 = vunpack.c.l.b16 %v2756
        %v2853 = vunpack.c.l.b16 %v2757
        %v2854 = vunpack.c.l.b16 %v2758
        %v2855 = vunpack.c.l.b16 %v2759
        %v2856 = vunpack.c.l.b16 %v2760
        %v2857 = vunpack.c.l.b16 %v2761
        %v2858 = vunpack.c.l.b16 %v2762
        %v2859 = vunpack.c.l.b16 %v2763
        %v2860 = vunpack.c.l.b16 %v2764
        %v2861 = vunpack.c.l.b16 %v2765
        %v2862 = vunpack.c.l.b16 %v2766
        %v2863 = vunpack.c.l.b16 %v2767
        %v2864 = vunpack.c.l.b16 %v2768
        %v2865 = vunpack.c.l.b16 %v2769
        %v2866 = vunpack.c.l.b16 %v2770
        %v2867 = vunpack.c.l.b16 %v2771
        %v2868 = vunpack.c.l.b16 %v2772
        %v2869 = vunpack.c.l.b16 %v2773
        %v2870 = vunpack.c.l.b16 %v2774
        %v2871 = vunpack.c.l.b16 %v2775
        %v2872 = vunpack.c.l.b16 %v2776
        %v2873 = vunpack.c.l.b16 %v2777
        %v2874 = vunpack.c.l.b16 %v2778
        %v2875 = vunpack.c.l.b16 %v2779
        %v2876 = vunpack.c.l.b16 %v2780
        %v2877 = vunpack.c.l.b16 %v2781
        %v2878 = vunpack.c.l.b16 %v2782
        %v2879 = vpack.c.b16 %v2832, %v2831
        %v2880 = vpack.c.b16 %v2834, %v2833
        %v2881 = vpack.c.b16 %v2836, %v2835
        %v2882 = vpack.c.b16 %v2838, %v2837
        %v2883 = vpack.c.b16 %v2840, %v2839
        %v2884 = vpack.c.b16 %v2842, %v2841
        %v2885 = vpack.c.b16 %v2844, %v2843
        %v2886 = vpack.c.b16 %v2846, %v2845
        %v2887 = vpack.c.b16 %v2848, %v2847
        %v2888 = vpack.c.b16 %v2850, %v2849
        %v2889 = vpack.c.b16 %v2852, %v2851
        %v2890 = vpack.c.b16 %v2854, %v2853
        %v2891 = vpack.c.b16 %v2856, %v2855
        %v2892 = vpack.c.b16 %v2858, %v2857
        %v2893 = vpack.c.b16 %v2860, %v2859
        %v2894 = vpack.c.b16 %v2862, %v2861
        %v2895 = vpack.c.b16 %v2864, %v2863
        %v2896 = vpack.c.b16 %v2866, %v2865
        %v2897 = vpack.c.b16 %v2868, %v2867
        %v2898 = vpack.c.b16 %v2870, %v2869
        %v2899 = vpack.c.b16 %v2872, %v2871
        %v2900 = vpack.c.b16 %v2874, %v2873
        %v2901 = vpack.c.b16 %v2876, %v2875
        %v2902 = vpack.c.b16 %v2878, %v2877
        %2927 = vmatpush.bf16.msra.mxu0 %v2886
        %2928 = vmatpush.bf16.msra.mxu0 %v2885
        %2929 = vmatpush.bf16.msra.mxu0 %v2884
        %2930 = vmatpush.bf16.msra.mxu0 %v2883
        %2931 = vmatpush.bf16.msra.mxu0 %v2882
        %2932 = vmatpush.bf16.msra.mxu0 %v2881
        %2933 = vmatpush.bf16.msra.mxu0 %v2880
        %2934 = vmatpush.bf16.msra.mxu0 %v2879
        %2935 = vmatmul.bf16.gmra.mxu0 %v2443
        %v2936 = vpop.f32.mrf.mxu0
        %v2937 = vadd.f32 0.0, %v2936
        %v2938 = vpop.f32.mrf.mxu0
        %v2939 = vadd.f32 0.0, %v2938
        %2940 = vmatmul.bf16.gmra.mxu0 %v2444
        %v2941 = vpop.f32.mrf.mxu0
        %v2942 = vadd.f32 0.0, %v2941
        %v2943 = vpop.f32.mrf.mxu0
        %v2944 = vadd.f32 0.0, %v2943
        %2945 = vmatmul.bf16.gmra.mxu0 %v2445
        %v2946 = vpop.f32.mrf.mxu0
        %v2947 = vadd.f32 0.0, %v2946
        %v2948 = vpop.f32.mrf.mxu0
        %v2949 = vadd.f32 0.0, %v2948
        %2950 = vmatmul.bf16.gmra.mxu0 %v2446
        %v2951 = vpop.f32.mrf.mxu0
        %v2952 = vadd.f32 0.0, %v2951
        %v2953 = vpop.f32.mrf.mxu0
        %v2954 = vadd.f32 0.0, %v2953
        %2955 = vmatmul.bf16.gmra.mxu0 %v2447
        %v2956 = vpop.f32.mrf.mxu0
        %v2957 = vadd.f32 0.0, %v2956
        %v2958 = vpop.f32.mrf.mxu0
        %v2959 = vadd.f32 0.0, %v2958
        %2960 = vmatmul.bf16.gmra.mxu0 %v2448
        %v2961 = vpop.f32.mrf.mxu0
        %v2962 = vadd.f32 0.0, %v2961
        %v2963 = vpop.f32.mrf.mxu0
        %v2964 = vadd.f32 0.0, %v2963
        %2965 = vmatmul.bf16.gmra.mxu0 %v2449
        %v2966 = vpop.f32.mrf.mxu0
        %v2967 = vadd.f32 0.0, %v2966
        %v2968 = vpop.f32.mrf.mxu0
        %v2969 = vadd.f32 0.0, %v2968
        %2970 = vmatmul.bf16.gmra.mxu0 %v2450
        %v2971 = vpop.f32.mrf.mxu0
        %v2972 = vadd.f32 0.0, %v2971
        %v2973 = vpop.f32.mrf.mxu0
        %v2974 = vadd.f32 0.0, %v2973
        %2975 = vmatmul.bf16.gmra.mxu0 %v2451
        %v2976 = vpop.f32.mrf.mxu0
        %v2977 = vadd.f32 0.0, %v2976
        %v2978 = vpop.f32.mrf.mxu0
        %v2979 = vadd.f32 0.0, %v2978
        %2980 = vmatmul.bf16.gmra.mxu0 %v2452
        %v2981 = vpop.f32.mrf.mxu0
        %v2982 = vadd.f32 0.0, %v2981
        %v2983 = vpop.f32.mrf.mxu0
        %v2984 = vadd.f32 0.0, %v2983
        %2985 = vmatmul.bf16.gmra.mxu0 %v2453
        %v2986 = vpop.f32.mrf.mxu0
        %v2987 = vadd.f32 0.0, %v2986
        %v2988 = vpop.f32.mrf.mxu0
        %v2989 = vadd.f32 0.0, %v2988
        %2990 = vmatmul.bf16.gmra.mxu0 %v2454
        %v2991 = vpop.f32.mrf.mxu0
        %v2992 = vadd.f32 0.0, %v2991
        %v2993 = vpop.f32.mrf.mxu0
        %v2994 = vadd.f32 0.0, %v2993
        %2995 = vmatmul.bf16.gmra.mxu0 %v2455
        %v2996 = vpop.f32.mrf.mxu0
        %v2997 = vadd.f32 0.0, %v2996
        %v2998 = vpop.f32.mrf.mxu0
        %v2999 = vadd.f32 0.0, %v2998
        %3000 = vmatmul.bf16.gmra.mxu0 %v2456
        %v3001 = vpop.f32.mrf.mxu0
        %v3002 = vadd.f32 0.0, %v3001
        %v3003 = vpop.f32.mrf.mxu0
        %v3004 = vadd.f32 0.0, %v3003
        %3005 = vmatmul.bf16.gmra.mxu0 %v2457
        %v3006 = vpop.f32.mrf.mxu0
        %v3007 = vadd.f32 0.0, %v3006
        %v3008 = vpop.f32.mrf.mxu0
        %v3009 = vadd.f32 0.0, %v3008
        %3010 = vmatmul.bf16.gmra.mxu0 %v2458
        %v3011 = vpop.f32.mrf.mxu0
        %v3012 = vadd.f32 0.0, %v3011
        %v3013 = vpop.f32.mrf.mxu0
        %v3014 = vadd.f32 0.0, %v3013
        %3015 = vmatmul.bf16.gmra.mxu0 %v2459
        %v3016 = vpop.f32.mrf.mxu0
        %v3017 = vadd.f32 0.0, %v3016
        %v3018 = vpop.f32.mrf.mxu0
        %v3019 = vadd.f32 0.0, %v3018
        %3020 = vmatmul.bf16.gmra.mxu0 %v2460
        %v3021 = vpop.f32.mrf.mxu0
        %v3022 = vadd.f32 0.0, %v3021
        %v3023 = vpop.f32.mrf.mxu0
        %v3024 = vadd.f32 0.0, %v3023
        %3025 = vmatmul.bf16.gmra.mxu0 %v2461
        %v3026 = vpop.f32.mrf.mxu0
        %v3027 = vadd.f32 0.0, %v3026
        %v3028 = vpop.f32.mrf.mxu0
        %v3029 = vadd.f32 0.0, %v3028
        %3030 = vmatmul.bf16.gmra.mxu0 %v2462
        %v3031 = vpop.f32.mrf.mxu0
        %v3032 = vadd.f32 0.0, %v3031
        %v3033 = vpop.f32.mrf.mxu0
        %v3034 = vadd.f32 0.0, %v3033
        %3035 = vdwg.mxu0
        %3036 = vmatpush.bf16.msra.mxu0 %v2894
        %3037 = vmatpush.bf16.msra.mxu0 %v2893
        %3038 = vmatpush.bf16.msra.mxu0 %v2892
        %3039 = vmatpush.bf16.msra.mxu0 %v2891
        %3040 = vmatpush.bf16.msra.mxu0 %v2890
        %3041 = vmatpush.bf16.msra.mxu0 %v2889
        %3042 = vmatpush.bf16.msra.mxu0 %v2888
        %3043 = vmatpush.bf16.msra.mxu0 %v2887
        %3044 = vmatmul.bf16.gmra.mxu0 %v2497
        %v3045 = vpop.f32.mrf.mxu0
        %v3046 = vadd.f32 %v2937, %v3045
        %v3047 = vpop.f32.mrf.mxu0
        %v3048 = vadd.f32 %v2939, %v3047
        %3049 = vmatmul.bf16.gmra.mxu0 %v2505
        %v3050 = vpop.f32.mrf.mxu0
        %v3051 = vadd.f32 %v2942, %v3050
        %v3052 = vpop.f32.mrf.mxu0
        %v3053 = vadd.f32 %v2944, %v3052
        %3054 = vmatmul.bf16.gmra.mxu0 %v2513
        %v3055 = vpop.f32.mrf.mxu0
        %v3056 = vadd.f32 %v2947, %v3055
        %v3057 = vpop.f32.mrf.mxu0
        %v3058 = vadd.f32 %v2949, %v3057
        %3059 = vmatmul.bf16.gmra.mxu0 %v2521
        %v3060 = vpop.f32.mrf.mxu0
        %v3061 = vadd.f32 %v2952, %v3060
        %v3062 = vpop.f32.mrf.mxu0
        %v3063 = vadd.f32 %v2954, %v3062
        %3064 = vmatmul.bf16.gmra.mxu0 %v2529
        %v3065 = vpop.f32.mrf.mxu0
        %v3066 = vadd.f32 %v2957, %v3065
        %v3067 = vpop.f32.mrf.mxu0
        %v3068 = vadd.f32 %v2959, %v3067
        %3069 = vmatmul.bf16.gmra.mxu0 %v2537
        %v3070 = vpop.f32.mrf.mxu0
        %v3071 = vadd.f32 %v2962, %v3070
        %v3072 = vpop.f32.mrf.mxu0
        %v3073 = vadd.f32 %v2964, %v3072
        %3074 = vmatmul.bf16.gmra.mxu0 %v2545
        %v3075 = vpop.f32.mrf.mxu0
        %v3076 = vadd.f32 %v2967, %v3075
        %v3077 = vpop.f32.mrf.mxu0
        %v3078 = vadd.f32 %v2969, %v3077
        %3079 = vmatmul.bf16.gmra.mxu0 %v2553
        %v3080 = vpop.f32.mrf.mxu0
        %v3081 = vadd.f32 %v2972, %v3080
        %v3082 = vpop.f32.mrf.mxu0
        %v3083 = vadd.f32 %v2974, %v3082
        %3084 = vmatmul.bf16.gmra.mxu0 %v2561
        %v3085 = vpop.f32.mrf.mxu0
        %v3086 = vadd.f32 %v2977, %v3085
        %v3087 = vpop.f32.mrf.mxu0
        %v3088 = vadd.f32 %v2979, %v3087
        %3089 = vmatmul.bf16.gmra.mxu0 %v2569
        %v3090 = vpop.f32.mrf.mxu0
        %v3091 = vadd.f32 %v2982, %v3090
        %v3092 = vpop.f32.mrf.mxu0
        %v3093 = vadd.f32 %v2984, %v3092
        %3094 = vmatmul.bf16.gmra.mxu0 %v2577
        %v3095 = vpop.f32.mrf.mxu0
        %v3096 = vadd.f32 %v2987, %v3095
        %v3097 = vpop.f32.mrf.mxu0
        %v3098 = vadd.f32 %v2989, %v3097
        %3099 = vmatmul.bf16.gmra.mxu0 %v2585
        %v3100 = vpop.f32.mrf.mxu0
        %v3101 = vadd.f32 %v2992, %v3100
        %v3102 = vpop.f32.mrf.mxu0
        %v3103 = vadd.f32 %v2994, %v3102
        %3104 = vmatmul.bf16.gmra.mxu0 %v2593
        %v3105 = vpop.f32.mrf.mxu0
        %v3106 = vadd.f32 %v2997, %v3105
        %v3107 = vpop.f32.mrf.mxu0
        %v3108 = vadd.f32 %v2999, %v3107
        %3109 = vmatmul.bf16.gmra.mxu0 %v2601
        %v3110 = vpop.f32.mrf.mxu0
        %v3111 = vadd.f32 %v3002, %v3110
        %v3112 = vpop.f32.mrf.mxu0
        %v3113 = vadd.f32 %v3004, %v3112
        %3114 = vmatmul.bf16.gmra.mxu0 %v2609
        %v3115 = vpop.f32.mrf.mxu0
        %v3116 = vadd.f32 %v3007, %v3115
        %v3117 = vpop.f32.mrf.mxu0
        %v3118 = vadd.f32 %v3009, %v3117
        %3119 = vmatmul.bf16.gmra.mxu0 %v2617
        %v3120 = vpop.f32.mrf.mxu0
        %v3121 = vadd.f32 %v3012, %v3120
        %v3122 = vpop.f32.mrf.mxu0
        %v3123 = vadd.f32 %v3014, %v3122
        %3124 = vmatmul.bf16.gmra.mxu0 %v2625
        %v3125 = vpop.f32.mrf.mxu0
        %v3126 = vadd.f32 %v3017, %v3125
        %v3127 = vpop.f32.mrf.mxu0
        %v3128 = vadd.f32 %v3019, %v3127
        %3129 = vmatmul.bf16.gmra.mxu0 %v2633
        %v3130 = vpop.f32.mrf.mxu0
        %v3131 = vadd.f32 %v3022, %v3130
        %v3132 = vpop.f32.mrf.mxu0
        %v3133 = vadd.f32 %v3024, %v3132
        %3134 = vmatmul.bf16.gmra.mxu0 %v2641
        %v3135 = vpop.f32.mrf.mxu0
        %v3136 = vadd.f32 %v3027, %v3135
        %v3137 = vpop.f32.mrf.mxu0
        %v3138 = vadd.f32 %v3029, %v3137
        %3139 = vmatmul.bf16.gmra.mxu0 %v2649
        %v3140 = vpop.f32.mrf.mxu0
        %v3141 = vadd.f32 %v3032, %v3140
        %v3142 = vpop.f32.mrf.mxu0
        %v3143 = vadd.f32 %v3034, %v3142
        %3144 = vdwg.mxu0
        %3145 = vmatpush.bf16.msra.mxu0 %v2902
        %3146 = vmatpush.bf16.msra.mxu0 %v2901
        %3147 = vmatpush.bf16.msra.mxu0 %v2900
        %3148 = vmatpush.bf16.msra.mxu0 %v2899
        %3149 = vmatpush.bf16.msra.mxu0 %v2898
        %3150 = vmatpush.bf16.msra.mxu0 %v2897
        %3151 = vmatpush.bf16.msra.mxu0 %v2896
        %3152 = vmatpush.bf16.msra.mxu0 %v2895
        %3153 = vmatmul.bf16.gmra.mxu0 %v2675
        %v3154 = vpop.f32.mrf.mxu0
        %v3155 = vadd.f32 %v3046, %v3154
        %v3156 = vpop.f32.mrf.mxu0
        %v3157 = vadd.f32 %v3048, %v3156
        %3158 = vmatmul.bf16.gmra.mxu0 %v2677
        %v3159 = vpop.f32.mrf.mxu0
        %v3160 = vadd.f32 %v3051, %v3159
        %v3161 = vpop.f32.mrf.mxu0
        %v3162 = vadd.f32 %v3053, %v3161
        %3163 = vmatmul.bf16.gmra.mxu0 %v2679
        %v3164 = vpop.f32.mrf.mxu0
        %v3165 = vadd.f32 %v3056, %v3164
        %v3166 = vpop.f32.mrf.mxu0
        %v3167 = vadd.f32 %v3058, %v3166
        %3168 = vmatmul.bf16.gmra.mxu0 %v2681
        %v3169 = vpop.f32.mrf.mxu0
        %v3170 = vadd.f32 %v3061, %v3169
        %v3171 = vpop.f32.mrf.mxu0
        %v3172 = vadd.f32 %v3063, %v3171
        %3173 = vmatmul.bf16.gmra.mxu0 %v2683
        %v3174 = vpop.f32.mrf.mxu0
        %v3175 = vadd.f32 %v3066, %v3174
        %v3176 = vpop.f32.mrf.mxu0
        %v3177 = vadd.f32 %v3068, %v3176
        %3178 = vmatmul.bf16.gmra.mxu0 %v2685
        %v3179 = vpop.f32.mrf.mxu0
        %v3180 = vadd.f32 %v3071, %v3179
        %v3181 = vpop.f32.mrf.mxu0
        %v3182 = vadd.f32 %v3073, %v3181
        %3183 = vmatmul.bf16.gmra.mxu0 %v2687
        %v3184 = vpop.f32.mrf.mxu0
        %v3185 = vadd.f32 %v3076, %v3184
        %v3186 = vpop.f32.mrf.mxu0
        %v3187 = vadd.f32 %v3078, %v3186
        %3188 = vmatmul.bf16.gmra.mxu0 %v2689
        %v3189 = vpop.f32.mrf.mxu0
        %v3190 = vadd.f32 %v3081, %v3189
        %v3191 = vpop.f32.mrf.mxu0
        %v3192 = vadd.f32 %v3083, %v3191
        %3193 = vmatmul.bf16.gmra.mxu0 %v2691
        %v3194 = vpop.f32.mrf.mxu0
        %v3195 = vadd.f32 %v3086, %v3194
        %v3196 = vpop.f32.mrf.mxu0
        %v3197 = vadd.f32 %v3088, %v3196
        %3198 = vmatmul.bf16.gmra.mxu0 %v2693
        %v3199 = vpop.f32.mrf.mxu0
        %v3200 = vadd.f32 %v3091, %v3199
        %v3201 = vpop.f32.mrf.mxu0
        %v3202 = vadd.f32 %v3093, %v3201
        %3203 = vmatmul.bf16.gmra.mxu0 %v2695
        %v3204 = vpop.f32.mrf.mxu0
        %v3205 = vadd.f32 %v3096, %v3204
        %v3206 = vpop.f32.mrf.mxu0
        %v3207 = vadd.f32 %v3098, %v3206
        %3208 = vmatmul.bf16.gmra.mxu0 %v2697
        %v3209 = vpop.f32.mrf.mxu0
        %v3210 = vadd.f32 %v3101, %v3209
        %v3211 = vpop.f32.mrf.mxu0
        %v3212 = vadd.f32 %v3103, %v3211
        %3213 = vmatmul.bf16.gmra.mxu0 %v2699
        %v3214 = vpop.f32.mrf.mxu0
        %v3215 = vadd.f32 %v3106, %v3214
        %v3216 = vpop.f32.mrf.mxu0
        %v3217 = vadd.f32 %v3108, %v3216
        %3218 = vmatmul.bf16.gmra.mxu0 %v2701
        %v3219 = vpop.f32.mrf.mxu0
        %v3220 = vadd.f32 %v3111, %v3219
        %v3221 = vpop.f32.mrf.mxu0
        %v3222 = vadd.f32 %v3113, %v3221
        %3223 = vmatmul.bf16.gmra.mxu0 %v2703
        %v3224 = vpop.f32.mrf.mxu0
        %v3225 = vadd.f32 %v3116, %v3224
        %v3226 = vpop.f32.mrf.mxu0
        %v3227 = vadd.f32 %v3118, %v3226
        %3228 = vmatmul.bf16.gmra.mxu0 %v2705
        %v3229 = vpop.f32.mrf.mxu0
        %v3230 = vadd.f32 %v3121, %v3229
        %v3231 = vpop.f32.mrf.mxu0
        %v3232 = vadd.f32 %v3123, %v3231
        %3233 = vmatmul.bf16.gmra.mxu0 %v2707
        %v3234 = vpop.f32.mrf.mxu0
        %v3235 = vadd.f32 %v3126, %v3234
        %v3236 = vpop.f32.mrf.mxu0
        %v3237 = vadd.f32 %v3128, %v3236
        %3238 = vmatmul.bf16.gmra.mxu0 %v2709
        %v3239 = vpop.f32.mrf.mxu0
        %v3240 = vadd.f32 %v3131, %v3239
        %v3241 = vpop.f32.mrf.mxu0
        %v3242 = vadd.f32 %v3133, %v3241
        %3243 = vmatmul.bf16.gmra.mxu0 %v2711
        %v3244 = vpop.f32.mrf.mxu0
        %v3245 = vadd.f32 %v3136, %v3244
        %v3246 = vpop.f32.mrf.mxu0
        %v3247 = vadd.f32 %v3138, %v3246
        %3248 = vmatmul.bf16.gmra.mxu0 %v2713
        %v3249 = vpop.f32.mrf.mxu0
        %v3250 = vadd.f32 %v3141, %v3249
        %v3251 = vpop.f32.mrf.mxu0
        %v3252 = vadd.f32 %v3143, %v3251
        %3253 = vdwg.mxu0
        %v3254 = vadd.f32 %v2281, %v3155
        %v3255 = vadd.f32 %v2282, %v3157
        %v3256 = vadd.f32 %v2283, %v3160
        %v3257 = vadd.f32 %v2284, %v3162
        %v3258 = vadd.f32 %v2285, %v3165
        %v3259 = vadd.f32 %v2286, %v3167
        %v3260 = vadd.f32 %v2287, %v3170
        %v3261 = vadd.f32 %v2288, %v3172
        %v3262 = vadd.f32 %v2289, %v3175
        %v3263 = vadd.f32 %v2290, %v3177
        %v3264 = vadd.f32 %v2291, %v3180
        %v3265 = vadd.f32 %v2292, %v3182
        %v3266 = vadd.f32 %v2293, %v3185
        %v3267 = vadd.f32 %v2294, %v3187
        %v3268 = vadd.f32 %v2295, %v3190
        %v3269 = vadd.f32 %v2296, %v3192
        %v3270 = vadd.f32 %v2297, %v3195
        %v3271 = vadd.f32 %v2298, %v3197
        %v3272 = vadd.f32 %v2299, %v3200
        %v3273 = vadd.f32 %v2300, %v3202
        %v3274 = vadd.f32 %v2301, %v3205
        %v3275 = vadd.f32 %v2302, %v3207
        %v3276 = vadd.f32 %v2303, %v3210
        %v3277 = vadd.f32 %v2304, %v3212
        %v3278 = vadd.f32 %v2305, %v3215
        %v3279 = vadd.f32 %v2306, %v3217
        %v3280 = vadd.f32 %v2307, %v3220
        %v3281 = vadd.f32 %v2308, %v3222
        %v3282 = vadd.f32 %v2309, %v3225
        %v3283 = vadd.f32 %v2310, %v3227
        %v3284 = vadd.f32 %v2311, %v3230
        %v3285 = vadd.f32 %v2312, %v3232
        %v3286 = vadd.f32 %v2313, %v3235
        %v3287 = vadd.f32 %v2314, %v3237
        %v3288 = vadd.f32 %v2315, %v3240
        %v3289 = vadd.f32 %v2316, %v3242
        %v3290 = vadd.f32 %v2317, %v3245
        %v3291 = vadd.f32 %v2318, %v3247
        %v3292 = vadd.f32 %v2319, %v3250
        %v3293 = vadd.f32 %v2320, %v3252
        %v3294 = vlaneseq
        %v3295 = vshrl.u32 %v3294, 7
        %v3296 = vadd.s32 %v3295, 8
        %v3297 = vadd.s32 %v3295, 16
        %v3298 = vadd.s32 %v3295, 24
        %v3299 = vadd.s32 %v3295, 32
        %v3300 = vadd.s32 %v3295, 40
        %v3301 = vadd.s32 %v3295, 48
        %v3302 = vadd.s32 %v3295, 56
        %v3303 = vadd.s32 %v3295, 64
        %v3304 = vadd.s32 %v3295, 72
        %v3305 = vadd.s32 %v3295, 80
        %v3306 = vadd.s32 %v3295, 88
        %v3307 = vadd.s32 %v3295, 96
        %v3308 = vadd.s32 %v3295, 104
        %v3309 = vadd.s32 %v3295, 112
        %v3310 = vadd.s32 %v3295, 120
        %v3311 = vadd.s32 %v3295, 128
        %v3312 = vadd.s32 %v3295, 136
        %v3313 = vadd.s32 %v3295, 144
        %v3314 = vadd.s32 %v3295, 152
        %v3315 = vadd.s32 %v3295, 160
        %v3316 = vadd.s32 %v3295, 168
        %v3317 = vadd.s32 %v3295, 176
        %v3318 = vadd.s32 %v3295, 184
        %v3319 = vadd.s32 %v3295, 192
        %v3320 = vadd.s32 %v3295, 200
        %v3321 = vadd.s32 %v3295, 208
        %v3322 = vadd.s32 %v3295, 216
        %v3323 = vadd.s32 %v3295, 224
        %v3324 = vadd.s32 %v3295, 232
        %v3325 = vadd.s32 %v3295, 240
        %v3326 = vadd.s32 %v3295, 248
        %v3327 = vadd.s32 %v3295, 256
        %v3328 = vadd.s32 %v3295, 264
        %v3329 = vadd.s32 %v3295, 272
        %v3330 = vadd.s32 %v3295, 280
        %v3331 = vadd.s32 %v3295, 288
        %v3332 = vadd.s32 %v3295, 296
        %v3333 = vadd.s32 %v3295, 304
        %v3334 = vadd.s32 %v3295, 312
        %v3335 = vand.u32 %v3295, 31
        %v3336 = vand.u32 %v3296, 31
        %v3337 = vand.u32 %v3297, 31
        %v3338 = vand.u32 %v3298, 31
        %v3339 = vand.u32 %v3299, 31
        %v3340 = vand.u32 %v3300, 31
        %v3341 = vand.u32 %v3301, 31
        %v3342 = vand.u32 %v3302, 31
        %v3343 = vand.u32 %v3303, 31
        %v3344 = vand.u32 %v3304, 31
        %v3345 = vand.u32 %v3305, 31
        %v3346 = vand.u32 %v3306, 31
        %v3347 = vand.u32 %v3307, 31
        %v3348 = vand.u32 %v3308, 31
        %v3349 = vand.u32 %v3309, 31
        %v3350 = vand.u32 %v3310, 31
        %v3351 = vand.u32 %v3311, 31
        %v3352 = vand.u32 %v3312, 31
        %v3353 = vand.u32 %v3313, 31
        %v3354 = vand.u32 %v3314, 31
        %v3355 = vand.u32 %v3315, 31
        %v3356 = vand.u32 %v3316, 31
        %v3357 = vand.u32 %v3317, 31
        %v3358 = vand.u32 %v3318, 31
        %v3359 = vand.u32 %v3319, 31
        %v3360 = vand.u32 %v3320, 31
        %v3361 = vand.u32 %v3321, 31
        %v3362 = vand.u32 %v3322, 31
        %v3363 = vand.u32 %v3323, 31
        %v3364 = vand.u32 %v3324, 31
        %v3365 = vand.u32 %v3325, 31
        %v3366 = vand.u32 %v3326, 31
        %v3367 = vand.u32 %v3327, 31
        %v3368 = vand.u32 %v3328, 31
        %v3369 = vand.u32 %v3329, 31
        %v3370 = vand.u32 %v3330, 31
        %v3371 = vand.u32 %v3331, 31
        %v3372 = vand.u32 %v3332, 31
        %v3373 = vand.u32 %v3333, 31
        %v3374 = vand.u32 %v3334, 31
        %vm3375 = vcmp.lt.s32.totalorder %v3335, 16
        %vm3376 = vcmp.lt.s32.totalorder %v3336, 16
        %vm3377 = vcmp.lt.s32.totalorder %v3337, 16
        %vm3378 = vcmp.lt.s32.totalorder %v3338, 16
        %vm3379 = vcmp.lt.s32.totalorder %v3339, 16
        %vm3380 = vcmp.lt.s32.totalorder %v3340, 16
        %vm3381 = vcmp.lt.s32.totalorder %v3341, 16
        %vm3382 = vcmp.lt.s32.totalorder %v3342, 16
        %vm3383 = vcmp.lt.s32.totalorder %v3343, 16
        %vm3384 = vcmp.lt.s32.totalorder %v3344, 16
        %vm3385 = vcmp.lt.s32.totalorder %v3345, 16
        %vm3386 = vcmp.lt.s32.totalorder %v3346, 16
        %vm3387 = vcmp.lt.s32.totalorder %v3347, 16
        %vm3388 = vcmp.lt.s32.totalorder %v3348, 16
        %vm3389 = vcmp.lt.s32.totalorder %v3349, 16
        %vm3390 = vcmp.lt.s32.totalorder %v3350, 16
        %vm3391 = vcmp.lt.s32.totalorder %v3351, 16
        %vm3392 = vcmp.lt.s32.totalorder %v3352, 16
        %vm3393 = vcmp.lt.s32.totalorder %v3353, 16
        %vm3394 = vcmp.lt.s32.totalorder %v3354, 16
        %vm3395 = vcmp.lt.s32.totalorder %v3355, 16
        %vm3396 = vcmp.lt.s32.totalorder %v3356, 16
        %vm3397 = vcmp.lt.s32.totalorder %v3357, 16
        %vm3398 = vcmp.lt.s32.totalorder %v3358, 16
        %vm3399 = vcmp.lt.s32.totalorder %v3359, 16
        %vm3400 = vcmp.lt.s32.totalorder %v3360, 16
        %vm3401 = vcmp.lt.s32.totalorder %v3361, 16
        %vm3402 = vcmp.lt.s32.totalorder %v3362, 16
        %vm3403 = vcmp.lt.s32.totalorder %v3363, 16
        %vm3404 = vcmp.lt.s32.totalorder %v3364, 16
        %vm3405 = vcmp.lt.s32.totalorder %v3365, 16
        %vm3406 = vcmp.lt.s32.totalorder %v3366, 16
        %vm3407 = vcmp.lt.s32.totalorder %v3367, 16
        %vm3408 = vcmp.lt.s32.totalorder %v3368, 16
        %vm3409 = vcmp.lt.s32.totalorder %v3369, 16
        %vm3410 = vcmp.lt.s32.totalorder %v3370, 16
        %vm3411 = vcmp.lt.s32.totalorder %v3371, 16
        %vm3412 = vcmp.lt.s32.totalorder %v3372, 16
        %vm3413 = vcmp.lt.s32.totalorder %v3373, 16
        %vm3414 = vcmp.lt.s32.totalorder %v3374, 16
        %s3415 = smul.u32 %s31, 8
        %s3416 = ssub.s32 1, %s3415
        %s3417 = smul.u32 %s3416, 32
        %s3418 = ssub.s32 17, %s3415
        %s3419 = smul.u32 %s3418, 32
        %v3420 = vstv %s3417
        %vm3421 = vcmp.ge.s32.totalorder %v3295, %v3420
        %vm3422 = vcmp.ge.s32.totalorder %v3296, %v3420
        %vm3423 = vcmp.ge.s32.totalorder %v3297, %v3420
        %vm3424 = vcmp.ge.s32.totalorder %v3298, %v3420
        %vm3425 = vcmp.ge.s32.totalorder %v3299, %v3420
        %vm3426 = vcmp.ge.s32.totalorder %v3300, %v3420
        %vm3427 = vcmp.ge.s32.totalorder %v3301, %v3420
        %vm3428 = vcmp.ge.s32.totalorder %v3302, %v3420
        %vm3429 = vcmp.ge.s32.totalorder %v3303, %v3420
        %vm3430 = vcmp.ge.s32.totalorder %v3304, %v3420
        %vm3431 = vcmp.ge.s32.totalorder %v3305, %v3420
        %vm3432 = vcmp.ge.s32.totalorder %v3306, %v3420
        %vm3433 = vcmp.ge.s32.totalorder %v3307, %v3420
        %vm3434 = vcmp.ge.s32.totalorder %v3308, %v3420
        %vm3435 = vcmp.ge.s32.totalorder %v3309, %v3420
        %vm3436 = vcmp.ge.s32.totalorder %v3310, %v3420
        %vm3437 = vcmp.ge.s32.totalorder %v3311, %v3420
        %vm3438 = vcmp.ge.s32.totalorder %v3312, %v3420
        %vm3439 = vcmp.ge.s32.totalorder %v3313, %v3420
        %vm3440 = vcmp.ge.s32.totalorder %v3314, %v3420
        %vm3441 = vcmp.ge.s32.totalorder %v3315, %v3420
        %vm3442 = vcmp.ge.s32.totalorder %v3316, %v3420
        %vm3443 = vcmp.ge.s32.totalorder %v3317, %v3420
        %vm3444 = vcmp.ge.s32.totalorder %v3318, %v3420
        %vm3445 = vcmp.ge.s32.totalorder %v3319, %v3420
        %vm3446 = vcmp.ge.s32.totalorder %v3320, %v3420
        %vm3447 = vcmp.ge.s32.totalorder %v3321, %v3420
        %vm3448 = vcmp.ge.s32.totalorder %v3322, %v3420
        %vm3449 = vcmp.ge.s32.totalorder %v3323, %v3420
        %vm3450 = vcmp.ge.s32.totalorder %v3324, %v3420
        %vm3451 = vcmp.ge.s32.totalorder %v3325, %v3420
        %vm3452 = vcmp.ge.s32.totalorder %v3326, %v3420
        %vm3453 = vcmp.ge.s32.totalorder %v3327, %v3420
        %vm3454 = vcmp.ge.s32.totalorder %v3328, %v3420
        %vm3455 = vcmp.ge.s32.totalorder %v3329, %v3420
        %vm3456 = vcmp.ge.s32.totalorder %v3330, %v3420
        %vm3457 = vcmp.ge.s32.totalorder %v3331, %v3420
        %vm3458 = vcmp.ge.s32.totalorder %v3332, %v3420
        %vm3459 = vcmp.ge.s32.totalorder %v3333, %v3420
        %vm3460 = vcmp.ge.s32.totalorder %v3334, %v3420
        %vm3461 = vmand %vm3375, %vm3421
        %vm3462 = vmand %vm3376, %vm3422
        %vm3463 = vmand %vm3377, %vm3423
        %vm3464 = vmand %vm3378, %vm3424
        %vm3465 = vmand %vm3379, %vm3425
        %vm3466 = vmand %vm3380, %vm3426
        %vm3467 = vmand %vm3381, %vm3427
        %vm3468 = vmand %vm3382, %vm3428
        %vm3469 = vmand %vm3383, %vm3429
        %vm3470 = vmand %vm3384, %vm3430
        %vm3471 = vmand %vm3385, %vm3431
        %vm3472 = vmand %vm3386, %vm3432
        %vm3473 = vmand %vm3387, %vm3433
        %vm3474 = vmand %vm3388, %vm3434
        %vm3475 = vmand %vm3389, %vm3435
        %vm3476 = vmand %vm3390, %vm3436
        %vm3477 = vmand %vm3391, %vm3437
        %vm3478 = vmand %vm3392, %vm3438
        %vm3479 = vmand %vm3393, %vm3439
        %vm3480 = vmand %vm3394, %vm3440
        %vm3481 = vmand %vm3395, %vm3441
        %vm3482 = vmand %vm3396, %vm3442
        %vm3483 = vmand %vm3397, %vm3443
        %vm3484 = vmand %vm3398, %vm3444
        %vm3485 = vmand %vm3399, %vm3445
        %vm3486 = vmand %vm3400, %vm3446
        %vm3487 = vmand %vm3401, %vm3447
        %vm3488 = vmand %vm3402, %vm3448
        %vm3489 = vmand %vm3403, %vm3449
        %vm3490 = vmand %vm3404, %vm3450
        %vm3491 = vmand %vm3405, %vm3451
        %vm3492 = vmand %vm3406, %vm3452
        %vm3493 = vmand %vm3407, %vm3453
        %vm3494 = vmand %vm3408, %vm3454
        %vm3495 = vmand %vm3409, %vm3455
        %vm3496 = vmand %vm3410, %vm3456
        %vm3497 = vmand %vm3411, %vm3457
        %vm3498 = vmand %vm3412, %vm3458
        %vm3499 = vmand %vm3413, %vm3459
        %vm3500 = vmand %vm3414, %vm3460
        %v3501 = vstv %s3419
        %vm3502 = vcmp.lt.s32.totalorder %v3295, %v3501
        %vm3503 = vcmp.lt.s32.totalorder %v3296, %v3501
        %vm3504 = vcmp.lt.s32.totalorder %v3297, %v3501
        %vm3505 = vcmp.lt.s32.totalorder %v3298, %v3501
        %vm3506 = vcmp.lt.s32.totalorder %v3299, %v3501
        %vm3507 = vcmp.lt.s32.totalorder %v3300, %v3501
        %vm3508 = vcmp.lt.s32.totalorder %v3301, %v3501
        %vm3509 = vcmp.lt.s32.totalorder %v3302, %v3501
        %vm3510 = vcmp.lt.s32.totalorder %v3303, %v3501
        %vm3511 = vcmp.lt.s32.totalorder %v3304, %v3501
        %vm3512 = vcmp.lt.s32.totalorder %v3305, %v3501
        %vm3513 = vcmp.lt.s32.totalorder %v3306, %v3501
        %vm3514 = vcmp.lt.s32.totalorder %v3307, %v3501
        %vm3515 = vcmp.lt.s32.totalorder %v3308, %v3501
        %vm3516 = vcmp.lt.s32.totalorder %v3309, %v3501
        %vm3517 = vcmp.lt.s32.totalorder %v3310, %v3501
        %vm3518 = vcmp.lt.s32.totalorder %v3311, %v3501
        %vm3519 = vcmp.lt.s32.totalorder %v3312, %v3501
        %vm3520 = vcmp.lt.s32.totalorder %v3313, %v3501
        %vm3521 = vcmp.lt.s32.totalorder %v3314, %v3501
        %vm3522 = vcmp.lt.s32.totalorder %v3315, %v3501
        %vm3523 = vcmp.lt.s32.totalorder %v3316, %v3501
        %vm3524 = vcmp.lt.s32.totalorder %v3317, %v3501
        %vm3525 = vcmp.lt.s32.totalorder %v3318, %v3501
        %vm3526 = vcmp.lt.s32.totalorder %v3319, %v3501
        %vm3527 = vcmp.lt.s32.totalorder %v3320, %v3501
        %vm3528 = vcmp.lt.s32.totalorder %v3321, %v3501
        %vm3529 = vcmp.lt.s32.totalorder %v3322, %v3501
        %vm3530 = vcmp.lt.s32.totalorder %v3323, %v3501
        %vm3531 = vcmp.lt.s32.totalorder %v3324, %v3501
        %vm3532 = vcmp.lt.s32.totalorder %v3325, %v3501
        %vm3533 = vcmp.lt.s32.totalorder %v3326, %v3501
        %vm3534 = vcmp.lt.s32.totalorder %v3327, %v3501
        %vm3535 = vcmp.lt.s32.totalorder %v3328, %v3501
        %vm3536 = vcmp.lt.s32.totalorder %v3329, %v3501
        %vm3537 = vcmp.lt.s32.totalorder %v3330, %v3501
        %vm3538 = vcmp.lt.s32.totalorder %v3331, %v3501
        %vm3539 = vcmp.lt.s32.totalorder %v3332, %v3501
        %vm3540 = vcmp.lt.s32.totalorder %v3333, %v3501
        %vm3541 = vcmp.lt.s32.totalorder %v3334, %v3501
        %vm3542 = vmand %vm3461, %vm3502
        %vm3543 = vmand %vm3462, %vm3503
        %vm3544 = vmand %vm3463, %vm3504
        %vm3545 = vmand %vm3464, %vm3505
        %vm3546 = vmand %vm3465, %vm3506
        %vm3547 = vmand %vm3466, %vm3507
        %vm3548 = vmand %vm3467, %vm3508
        %vm3549 = vmand %vm3468, %vm3509
        %vm3550 = vmand %vm3469, %vm3510
        %vm3551 = vmand %vm3470, %vm3511
        %vm3552 = vmand %vm3471, %vm3512
        %vm3553 = vmand %vm3472, %vm3513
        %vm3554 = vmand %vm3473, %vm3514
        %vm3555 = vmand %vm3474, %vm3515
        %vm3556 = vmand %vm3475, %vm3516
        %vm3557 = vmand %vm3476, %vm3517
        %vm3558 = vmand %vm3477, %vm3518
        %vm3559 = vmand %vm3478, %vm3519
        %vm3560 = vmand %vm3479, %vm3520
        %vm3561 = vmand %vm3480, %vm3521
        %vm3562 = vmand %vm3481, %vm3522
        %vm3563 = vmand %vm3482, %vm3523
        %vm3564 = vmand %vm3483, %vm3524
        %vm3565 = vmand %vm3484, %vm3525
        %vm3566 = vmand %vm3485, %vm3526
        %vm3567 = vmand %vm3486, %vm3527
        %vm3568 = vmand %vm3487, %vm3528
        %vm3569 = vmand %vm3488, %vm3529
        %vm3570 = vmand %vm3489, %vm3530
        %vm3571 = vmand %vm3490, %vm3531
        %vm3572 = vmand %vm3491, %vm3532
        %vm3573 = vmand %vm3492, %vm3533
        %vm3574 = vmand %vm3493, %vm3534
        %vm3575 = vmand %vm3494, %vm3535
        %vm3576 = vmand %vm3495, %vm3536
        %vm3577 = vmand %vm3496, %vm3537
        %vm3578 = vmand %vm3497, %vm3538
        %vm3579 = vmand %vm3498, %vm3539
        %vm3580 = vmand %vm3499, %vm3540
        %vm3581 = vmand %vm3500, %vm3541
        %v3582 = vsel %vm3542, 1, 0
        %v3583 = vsel %vm3543, 1, 0
        %v3584 = vsel %vm3544, 1, 0
        %v3585 = vsel %vm3545, 1, 0
        %v3586 = vsel %vm3546, 1, 0
        %v3587 = vsel %vm3547, 1, 0
        %v3588 = vsel %vm3548, 1, 0
        %v3589 = vsel %vm3549, 1, 0
        %v3590 = vsel %vm3550, 1, 0
        %v3591 = vsel %vm3551, 1, 0
        %v3592 = vsel %vm3552, 1, 0
        %v3593 = vsel %vm3553, 1, 0
        %v3594 = vsel %vm3554, 1, 0
        %v3595 = vsel %vm3555, 1, 0
        %v3596 = vsel %vm3556, 1, 0
        %v3597 = vsel %vm3557, 1, 0
        %v3598 = vsel %vm3558, 1, 0
        %v3599 = vsel %vm3559, 1, 0
        %v3600 = vsel %vm3560, 1, 0
        %v3601 = vsel %vm3561, 1, 0
        %v3602 = vsel %vm3562, 1, 0
        %v3603 = vsel %vm3563, 1, 0
        %v3604 = vsel %vm3564, 1, 0
        %v3605 = vsel %vm3565, 1, 0
        %v3606 = vsel %vm3566, 1, 0
        %v3607 = vsel %vm3567, 1, 0
        %v3608 = vsel %vm3568, 1, 0
        %v3609 = vsel %vm3569, 1, 0
        %v3610 = vsel %vm3570, 1, 0
        %v3611 = vsel %vm3571, 1, 0
        %v3612 = vsel %vm3572, 1, 0
        %v3613 = vsel %vm3573, 1, 0
        %v3614 = vsel %vm3574, 1, 0
        %v3615 = vsel %vm3575, 1, 0
        %v3616 = vsel %vm3576, 1, 0
        %v3617 = vsel %vm3577, 1, 0
        %v3618 = vsel %vm3578, 1, 0
        %v3619 = vsel %vm3579, 1, 0
        %v3620 = vsel %vm3580, 1, 0
        %v3621 = vsel %vm3581, 1, 0
        %v3622 = vcvt.s32.f32 %v3582
        %v3623 = vcvt.s32.f32 %v3583
        %v3624 = vcvt.s32.f32 %v3584
        %v3625 = vcvt.s32.f32 %v3585
        %v3626 = vcvt.s32.f32 %v3586
        %v3627 = vcvt.s32.f32 %v3587
        %v3628 = vcvt.s32.f32 %v3588
        %v3629 = vcvt.s32.f32 %v3589
        %v3630 = vcvt.s32.f32 %v3590
        %v3631 = vcvt.s32.f32 %v3591
        %v3632 = vcvt.s32.f32 %v3592
        %v3633 = vcvt.s32.f32 %v3593
        %v3634 = vcvt.s32.f32 %v3594
        %v3635 = vcvt.s32.f32 %v3595
        %v3636 = vcvt.s32.f32 %v3596
        %v3637 = vcvt.s32.f32 %v3597
        %v3638 = vcvt.s32.f32 %v3598
        %v3639 = vcvt.s32.f32 %v3599
        %v3640 = vcvt.s32.f32 %v3600
        %v3641 = vcvt.s32.f32 %v3601
        %v3642 = vcvt.s32.f32 %v3602
        %v3643 = vcvt.s32.f32 %v3603
        %v3644 = vcvt.s32.f32 %v3604
        %v3645 = vcvt.s32.f32 %v3605
        %v3646 = vcvt.s32.f32 %v3606
        %v3647 = vcvt.s32.f32 %v3607
        %v3648 = vcvt.s32.f32 %v3608
        %v3649 = vcvt.s32.f32 %v3609
        %v3650 = vcvt.s32.f32 %v3610
        %v3651 = vcvt.s32.f32 %v3611
        %v3652 = vcvt.s32.f32 %v3612
        %v3653 = vcvt.s32.f32 %v3613
        %v3654 = vcvt.s32.f32 %v3614
        %v3655 = vcvt.s32.f32 %v3615
        %v3656 = vcvt.s32.f32 %v3616
        %v3657 = vcvt.s32.f32 %v3617
        %v3658 = vcvt.s32.f32 %v3618
        %v3659 = vcvt.s32.f32 %v3619
        %v3660 = vcvt.s32.f32 %v3620
        %v3661 = vcvt.s32.f32 %v3621
        %v3662 = vmul.f32 %v3254, 0.01
        %v3663 = vmul.f32 %v3255, 0.01
        %v3664 = vmul.f32 %v3256, 0.01
        %v3665 = vmul.f32 %v3257, 0.01
        %v3666 = vmul.f32 %v3258, 0.01
        %v3667 = vmul.f32 %v3259, 0.01
        %v3668 = vmul.f32 %v3260, 0.01
        %v3669 = vmul.f32 %v3261, 0.01
        %v3670 = vmul.f32 %v3262, 0.01
        %v3671 = vmul.f32 %v3263, 0.01
        %v3672 = vmul.f32 %v3264, 0.01
        %v3673 = vmul.f32 %v3265, 0.01
        %v3674 = vmul.f32 %v3266, 0.01
        %v3675 = vmul.f32 %v3267, 0.01
        %v3676 = vmul.f32 %v3268, 0.01
        %v3677 = vmul.f32 %v3269, 0.01
        %v3678 = vmul.f32 %v3270, 0.01
        %v3679 = vmul.f32 %v3271, 0.01
        %v3680 = vmul.f32 %v3272, 0.01
        %v3681 = vmul.f32 %v3273, 0.01
        %v3682 = vmul.f32 %v3274, 0.01
        %v3683 = vmul.f32 %v3275, 0.01
        %v3684 = vmul.f32 %v3276, 0.01
        %v3685 = vmul.f32 %v3277, 0.01
        %v3686 = vmul.f32 %v3278, 0.01
        %v3687 = vmul.f32 %v3279, 0.01
        %v3688 = vmul.f32 %v3280, 0.01
        %v3689 = vmul.f32 %v3281, 0.01
        %v3690 = vmul.f32 %v3282, 0.01
        %v3691 = vmul.f32 %v3283, 0.01
        %v3692 = vmul.f32 %v3284, 0.01
        %v3693 = vmul.f32 %v3285, 0.01
        %v3694 = vmul.f32 %v3286, 0.01
        %v3695 = vmul.f32 %v3287, 0.01
        %v3696 = vmul.f32 %v3288, 0.01
        %v3697 = vmul.f32 %v3289, 0.01
        %v3698 = vmul.f32 %v3290, 0.01
        %v3699 = vmul.f32 %v3291, 0.01
        %v3700 = vmul.f32 %v3292, 0.01
        %v3701 = vmul.f32 %v3293, 0.01
        %v3702 = vmax.f32 %v3254, %v3662
        %v3703 = vmax.f32 %v3255, %v3663
        %v3704 = vmax.f32 %v3256, %v3664
        %v3705 = vmax.f32 %v3257, %v3665
        %v3706 = vmax.f32 %v3258, %v3666
        %v3707 = vmax.f32 %v3259, %v3667
        %v3708 = vmax.f32 %v3260, %v3668
        %v3709 = vmax.f32 %v3261, %v3669
        %v3710 = vmax.f32 %v3262, %v3670
        %v3711 = vmax.f32 %v3263, %v3671
        %v3712 = vmax.f32 %v3264, %v3672
        %v3713 = vmax.f32 %v3265, %v3673
        %v3714 = vmax.f32 %v3266, %v3674
        %v3715 = vmax.f32 %v3267, %v3675
        %v3716 = vmax.f32 %v3268, %v3676
        %v3717 = vmax.f32 %v3269, %v3677
        %v3718 = vmax.f32 %v3270, %v3678
        %v3719 = vmax.f32 %v3271, %v3679
        %v3720 = vmax.f32 %v3272, %v3680
        %v3721 = vmax.f32 %v3273, %v3681
        %v3722 = vmax.f32 %v3274, %v3682
        %v3723 = vmax.f32 %v3275, %v3683
        %v3724 = vmax.f32 %v3276, %v3684
        %v3725 = vmax.f32 %v3277, %v3685
        %v3726 = vmax.f32 %v3278, %v3686
        %v3727 = vmax.f32 %v3279, %v3687
        %v3728 = vmax.f32 %v3280, %v3688
        %v3729 = vmax.f32 %v3281, %v3689
        %v3730 = vmax.f32 %v3282, %v3690
        %v3731 = vmax.f32 %v3283, %v3691
        %v3732 = vmax.f32 %v3284, %v3692
        %v3733 = vmax.f32 %v3285, %v3693
        %v3734 = vmax.f32 %v3286, %v3694
        %v3735 = vmax.f32 %v3287, %v3695
        %v3736 = vmax.f32 %v3288, %v3696
        %v3737 = vmax.f32 %v3289, %v3697
        %v3738 = vmax.f32 %v3290, %v3698
        %v3739 = vmax.f32 %v3291, %v3699
        %v3740 = vmax.f32 %v3292, %v3700
        %v3741 = vmax.f32 %v3293, %v3701
        %v3742 = vmul.f32 %v3702, %v3622
        %v3743 = vmul.f32 %v3703, %v3623
        %v3744 = vmul.f32 %v3704, %v3624
        %v3745 = vmul.f32 %v3705, %v3625
        %v3746 = vmul.f32 %v3706, %v3626
        %v3747 = vmul.f32 %v3707, %v3627
        %v3748 = vmul.f32 %v3708, %v3628
        %v3749 = vmul.f32 %v3709, %v3629
        %v3750 = vmul.f32 %v3710, %v3630
        %v3751 = vmul.f32 %v3711, %v3631
        %v3752 = vmul.f32 %v3712, %v3632
        %v3753 = vmul.f32 %v3713, %v3633
        %v3754 = vmul.f32 %v3714, %v3634
        %v3755 = vmul.f32 %v3715, %v3635
        %v3756 = vmul.f32 %v3716, %v3636
        %v3757 = vmul.f32 %v3717, %v3637
        %v3758 = vmul.f32 %v3718, %v3638
        %v3759 = vmul.f32 %v3719, %v3639
        %v3760 = vmul.f32 %v3720, %v3640
        %v3761 = vmul.f32 %v3721, %v3641
        %v3762 = vmul.f32 %v3722, %v3642
        %v3763 = vmul.f32 %v3723, %v3643
        %v3764 = vmul.f32 %v3724, %v3644
        %v3765 = vmul.f32 %v3725, %v3645
        %v3766 = vmul.f32 %v3726, %v3646
        %v3767 = vmul.f32 %v3727, %v3647
        %v3768 = vmul.f32 %v3728, %v3648
        %v3769 = vmul.f32 %v3729, %v3649
        %v3770 = vmul.f32 %v3730, %v3650
        %v3771 = vmul.f32 %v3731, %v3651
        %v3772 = vmul.f32 %v3732, %v3652
        %v3773 = vmul.f32 %v3733, %v3653
        %v3774 = vmul.f32 %v3734, %v3654
        %v3775 = vmul.f32 %v3735, %v3655
        %v3776 = vmul.f32 %v3736, %v3656
        %v3777 = vmul.f32 %v3737, %v3657
        %v3778 = vmul.f32 %v3738, %v3658
        %v3779 = vmul.f32 %v3739, %v3659
        %v3780 = vmul.f32 %v3740, %v3660
        %v3781 = vmul.f32 %v3741, %v3661
        %v3782 = vpack.c.bf16 %v3742, %v3742
        %v3783 = vpack.c.bf16 %v3743, %v3743
        %v3784 = vpack.c.bf16 %v3744, %v3744
        %v3785 = vpack.c.bf16 %v3745, %v3745
        %v3786 = vpack.c.bf16 %v3746, %v3746
        %v3787 = vpack.c.bf16 %v3747, %v3747
        %v3788 = vpack.c.bf16 %v3748, %v3748
        %v3789 = vpack.c.bf16 %v3749, %v3749
        %v3790 = vpack.c.bf16 %v3750, %v3750
        %v3791 = vpack.c.bf16 %v3751, %v3751
        %v3792 = vpack.c.bf16 %v3752, %v3752
        %v3793 = vpack.c.bf16 %v3753, %v3753
        %v3794 = vpack.c.bf16 %v3754, %v3754
        %v3795 = vpack.c.bf16 %v3755, %v3755
        %v3796 = vpack.c.bf16 %v3756, %v3756
        %v3797 = vpack.c.bf16 %v3757, %v3757
        %v3798 = vpack.c.bf16 %v3758, %v3758
        %v3799 = vpack.c.bf16 %v3759, %v3759
        %v3800 = vpack.c.bf16 %v3760, %v3760
        %v3801 = vpack.c.bf16 %v3761, %v3761
        %v3802 = vpack.c.bf16 %v3762, %v3762
        %v3803 = vpack.c.bf16 %v3763, %v3763
        %v3804 = vpack.c.bf16 %v3764, %v3764
        %v3805 = vpack.c.bf16 %v3765, %v3765
        %v3806 = vpack.c.bf16 %v3766, %v3766
        %v3807 = vpack.c.bf16 %v3767, %v3767
        %v3808 = vpack.c.bf16 %v3768, %v3768
        %v3809 = vpack.c.bf16 %v3769, %v3769
        %v3810 = vpack.c.bf16 %v3770, %v3770
        %v3811 = vpack.c.bf16 %v3771, %v3771
        %v3812 = vpack.c.bf16 %v3772, %v3772
        %v3813 = vpack.c.bf16 %v3773, %v3773
        %v3814 = vpack.c.bf16 %v3774, %v3774
        %v3815 = vpack.c.bf16 %v3775, %v3775
        %v3816 = vpack.c.bf16 %v3776, %v3776
        %v3817 = vpack.c.bf16 %v3777, %v3777
        %v3818 = vpack.c.bf16 %v3778, %v3778
        %v3819 = vpack.c.bf16 %v3779, %v3779
        %v3820 = vpack.c.bf16 %v3780, %v3780
        %v3821 = vpack.c.bf16 %v3781, %v3781
        %vm3822 = vcmask 1040384
        %vm3823 = vsmask.f32 256
        %vm3824 = vmand %vm3822, %vm3823
        %v3825 = vld [vmem:[#allocation2] sm:$0x1]
        %v3826 = vsel %vm3824, 0, %v3825
        %3827 = vst [vmem:[#allocation2] sm:$0x1] %v3826
        %vm3828 = vcmask 1043456
        %vm3829 = vsmask.f32 7938
        %vm3830 = vmand %vm3828, %vm3829
        %v3831 = vld [vmem:[#allocation2 + $0xa0] sm:$0xf]
        %v3832 = vsel %vm3830, 0, %v3831
        %3833 = vst [vmem:[#allocation2 + $0xa0] sm:$0xf] %v3832
        %3834 = vst [vmem:[#allocation2 + $0xa4] sm:$0xf] 0
        %vm3835 = vsmask.f32 4368
        %vm3836 = vmor %vm3823, %vm3835
        %v3838 = vshrl.u32 %v3782, 16
        %v3840 = vrot.slane %v3838, 7
        %v3841 = vshll.u32 %v3782, 16
        %v3843 = vor.u32 %v3840, %v3841
        %v3844 = vrot.slane %v3840, 4
        %v3846 = vshrl.u32 %v3783, 16
        %v3848 = vrot.slane %v3846, 7
        %v3849 = vshll.u32 %v3783, 16
        %v3851 = vor.u32 %v3848, %v3849
        %v3852 = vsel %vm3836, %v3844, %v3851
        %v3853 = vrot.slane %v3848, 4
        %v3855 = vshrl.u32 %v3784, 16
        %v3857 = vrot.slane %v3855, 7
        %v3858 = vshll.u32 %v3784, 16
        %v3860 = vor.u32 %v3857, %v3858
        %v3861 = vsel %vm3836, %v3853, %v3860
        %v3862 = vrot.slane %v3857, 4
        %v3864 = vshrl.u32 %v3785, 16
        %v3866 = vrot.slane %v3864, 7
        %v3867 = vshll.u32 %v3785, 16
        %v3869 = vor.u32 %v3866, %v3867
        %v3870 = vsel %vm3836, %v3862, %v3869
        %v3871 = vrot.slane %v3866, 4
        %v3873 = vshrl.u32 %v3786, 16
        %v3875 = vrot.slane %v3873, 7
        %v3876 = vshll.u32 %v3786, 16
        %v3878 = vor.u32 %v3875, %v3876
        %v3879 = vsel %vm3836, %v3871, %v3878
        %v3880 = vrot.slane %v3875, 4
        %v3882 = vshrl.u32 %v3787, 16
        %v3884 = vrot.slane %v3882, 7
        %v3885 = vshll.u32 %v3787, 16
        %v3887 = vor.u32 %v3884, %v3885
        %v3888 = vsel %vm3836, %v3880, %v3887
        %v3889 = vrot.slane %v3884, 4
        %v3891 = vshrl.u32 %v3788, 16
        %v3893 = vrot.slane %v3891, 7
        %v3894 = vshll.u32 %v3788, 16
        %v3896 = vor.u32 %v3893, %v3894
        %v3897 = vsel %vm3836, %v3889, %v3896
        %v3898 = vrot.slane %v3893, 4
        %v3900 = vshrl.u32 %v3789, 16
        %v3902 = vrot.slane %v3900, 7
        %v3903 = vshll.u32 %v3789, 16
        %v3905 = vor.u32 %v3902, %v3903
        %v3906 = vsel %vm3836, %v3898, %v3905
        %v3907 = vrot.slane %v3902, 4
        %v3909 = vshrl.u32 %v3790, 16
        %v3911 = vrot.slane %v3909, 7
        %v3912 = vshll.u32 %v3790, 16
        %v3914 = vor.u32 %v3911, %v3912
        %v3915 = vsel %vm3836, %v3907, %v3914
        %v3916 = vrot.slane %v3911, 4
        %v3918 = vshrl.u32 %v3791, 16
        %v3920 = vrot.slane %v3918, 7
        %v3921 = vshll.u32 %v3791, 16
        %v3923 = vor.u32 %v3920, %v3921
        %v3924 = vsel %vm3836, %v3916, %v3923
        %v3925 = vrot.slane %v3920, 4
        %v3927 = vshrl.u32 %v3792, 16
        %v3929 = vrot.slane %v3927, 7
        %v3930 = vshll.u32 %v3792, 16
        %v3932 = vor.u32 %v3929, %v3930
        %v3933 = vsel %vm3836, %v3925, %v3932
        %v3934 = vrot.slane %v3929, 4
        %v3936 = vshrl.u32 %v3793, 16
        %v3938 = vrot.slane %v3936, 7
        %v3939 = vshll.u32 %v3793, 16
        %v3941 = vor.u32 %v3938, %v3939
        %v3942 = vsel %vm3836, %v3934, %v3941
        %v3943 = vrot.slane %v3938, 4
        %v3945 = vshrl.u32 %v3794, 16
        %v3947 = vrot.slane %v3945, 7
        %v3948 = vshll.u32 %v3794, 16
        %v3950 = vor.u32 %v3947, %v3948
        %v3951 = vsel %vm3836, %v3943, %v3950
        %v3952 = vrot.slane %v3947, 4
        %v3954 = vshrl.u32 %v3795, 16
        %v3956 = vrot.slane %v3954, 7
        %v3957 = vshll.u32 %v3795, 16
        %v3959 = vor.u32 %v3956, %v3957
        %v3960 = vsel %vm3836, %v3952, %v3959
        %v3961 = vrot.slane %v3956, 4
        %v3963 = vshrl.u32 %v3796, 16
        %v3965 = vrot.slane %v3963, 7
        %v3966 = vshll.u32 %v3796, 16
        %v3968 = vor.u32 %v3965, %v3966
        %v3969 = vsel %vm3836, %v3961, %v3968
        %v3970 = vrot.slane %v3965, 4
        %v3972 = vshrl.u32 %v3797, 16
        %v3974 = vrot.slane %v3972, 7
        %v3975 = vshll.u32 %v3797, 16
        %v3977 = vor.u32 %v3974, %v3975
        %v3978 = vsel %vm3836, %v3970, %v3977
        %v3979 = vrot.slane %v3974, 4
        %v3981 = vshrl.u32 %v3798, 16
        %v3983 = vrot.slane %v3981, 7
        %v3984 = vshll.u32 %v3798, 16
        %v3986 = vor.u32 %v3983, %v3984
        %v3987 = vsel %vm3836, %v3979, %v3986
        %v3988 = vrot.slane %v3983, 4
        %v3990 = vshrl.u32 %v3799, 16
        %v3992 = vrot.slane %v3990, 7
        %v3993 = vshll.u32 %v3799, 16
        %v3995 = vor.u32 %v3992, %v3993
        %v3996 = vsel %vm3836, %v3988, %v3995
        %v3997 = vrot.slane %v3992, 4
        %v3999 = vshrl.u32 %v3800, 16
        %v4001 = vrot.slane %v3999, 7
        %v4002 = vshll.u32 %v3800, 16
        %v4004 = vor.u32 %v4001, %v4002
        %v4005 = vsel %vm3836, %v3997, %v4004
        %v4006 = vrot.slane %v4001, 4
        %v4008 = vshrl.u32 %v3801, 16
        %v4010 = vrot.slane %v4008, 7
        %v4011 = vshll.u32 %v3801, 16
        %v4013 = vor.u32 %v4010, %v4011
        %v4014 = vsel %vm3836, %v4006, %v4013
        %v4015 = vrot.slane %v4010, 4
        %v4017 = vshrl.u32 %v3802, 16
        %v4019 = vrot.slane %v4017, 7
        %v4020 = vshll.u32 %v3802, 16
        %v4022 = vor.u32 %v4019, %v4020
        %v4023 = vsel %vm3836, %v4015, %v4022
        %v4024 = vrot.slane %v4019, 4
        %v4026 = vshrl.u32 %v3803, 16
        %v4028 = vrot.slane %v4026, 7
        %v4029 = vshll.u32 %v3803, 16
        %v4031 = vor.u32 %v4028, %v4029
        %v4032 = vsel %vm3836, %v4024, %v4031
        %v4033 = vrot.slane %v4028, 4
        %v4035 = vshrl.u32 %v3804, 16
        %v4037 = vrot.slane %v4035, 7
        %v4038 = vshll.u32 %v3804, 16
        %v4040 = vor.u32 %v4037, %v4038
        %v4041 = vsel %vm3836, %v4033, %v4040
        %v4042 = vrot.slane %v4037, 4
        %v4044 = vshrl.u32 %v3805, 16
        %v4046 = vrot.slane %v4044, 7
        %v4047 = vshll.u32 %v3805, 16
        %v4049 = vor.u32 %v4046, %v4047
        %v4050 = vsel %vm3836, %v4042, %v4049
        %v4051 = vrot.slane %v4046, 4
        %v4053 = vshrl.u32 %v3806, 16
        %v4055 = vrot.slane %v4053, 7
        %v4056 = vshll.u32 %v3806, 16
        %v4058 = vor.u32 %v4055, %v4056
        %v4059 = vsel %vm3836, %v4051, %v4058
        %v4060 = vrot.slane %v4055, 4
        %v4062 = vshrl.u32 %v3807, 16
        %v4064 = vrot.slane %v4062, 7
        %v4065 = vshll.u32 %v3807, 16
        %v4067 = vor.u32 %v4064, %v4065
        %v4068 = vsel %vm3836, %v4060, %v4067
        %v4069 = vrot.slane %v4064, 4
        %v4071 = vshrl.u32 %v3808, 16
        %v4073 = vrot.slane %v4071, 7
        %v4074 = vshll.u32 %v3808, 16
        %v4076 = vor.u32 %v4073, %v4074
        %v4077 = vsel %vm3836, %v4069, %v4076
        %v4078 = vrot.slane %v4073, 4
        %v4080 = vshrl.u32 %v3809, 16
        %v4082 = vrot.slane %v4080, 7
        %v4083 = vshll.u32 %v3809, 16
        %v4085 = vor.u32 %v4082, %v4083
        %v4086 = vsel %vm3836, %v4078, %v4085
        %v4087 = vrot.slane %v4082, 4
        %v4089 = vshrl.u32 %v3810, 16
        %v4091 = vrot.slane %v4089, 7
        %v4092 = vshll.u32 %v3810, 16
        %v4094 = vor.u32 %v4091, %v4092
        %v4095 = vsel %vm3836, %v4087, %v4094
        %v4096 = vrot.slane %v4091, 4
        %v4098 = vshrl.u32 %v3811, 16
        %v4100 = vrot.slane %v4098, 7
        %v4101 = vshll.u32 %v3811, 16
        %v4103 = vor.u32 %v4100, %v4101
        %v4104 = vsel %vm3836, %v4096, %v4103
        %v4105 = vrot.slane %v4100, 4
        %v4107 = vshrl.u32 %v3812, 16
        %v4109 = vrot.slane %v4107, 7
        %v4110 = vshll.u32 %v3812, 16
        %v4112 = vor.u32 %v4109, %v4110
        %v4113 = vsel %vm3836, %v4105, %v4112
        %v4114 = vrot.slane %v4109, 4
        %v4116 = vshrl.u32 %v3813, 16
        %v4118 = vrot.slane %v4116, 7
        %v4119 = vshll.u32 %v3813, 16
        %v4121 = vor.u32 %v4118, %v4119
        %v4122 = vsel %vm3836, %v4114, %v4121
        %v4123 = vrot.slane %v4118, 4
        %v4125 = vshrl.u32 %v3814, 16
        %v4127 = vrot.slane %v4125, 7
        %v4128 = vshll.u32 %v3814, 16
        %v4130 = vor.u32 %v4127, %v4128
        %v4131 = vsel %vm3836, %v4123, %v4130
        %v4132 = vrot.slane %v4127, 4
        %v4134 = vshrl.u32 %v3815, 16
        %v4136 = vrot.slane %v4134, 7
        %v4137 = vshll.u32 %v3815, 16
        %v4139 = vor.u32 %v4136, %v4137
        %v4140 = vsel %vm3836, %v4132, %v4139
        %v4141 = vrot.slane %v4136, 4
        %v4143 = vshrl.u32 %v3816, 16
        %v4145 = vrot.slane %v4143, 7
        %v4146 = vshll.u32 %v3816, 16
        %v4148 = vor.u32 %v4145, %v4146
        %v4149 = vsel %vm3836, %v4141, %v4148
        %v4150 = vrot.slane %v4145, 4
        %v4152 = vshrl.u32 %v3817, 16
        %v4154 = vrot.slane %v4152, 7
        %v4155 = vshll.u32 %v3817, 16
        %v4157 = vor.u32 %v4154, %v4155
        %v4158 = vsel %vm3836, %v4150, %v4157
        %v4159 = vrot.slane %v4154, 4
        %v4161 = vshrl.u32 %v3818, 16
        %v4163 = vrot.slane %v4161, 7
        %v4164 = vshll.u32 %v3818, 16
        %v4166 = vor.u32 %v4163, %v4164
        %v4167 = vsel %vm3836, %v4159, %v4166
        %v4168 = vrot.slane %v4163, 4
        %v4170 = vshrl.u32 %v3819, 16
        %v4172 = vrot.slane %v4170, 7
        %v4173 = vshll.u32 %v3819, 16
        %v4175 = vor.u32 %v4172, %v4173
        %v4176 = vsel %vm3836, %v4168, %v4175
        %v4177 = vrot.slane %v4172, 4
        %v4179 = vshrl.u32 %v3820, 16
        %v4181 = vrot.slane %v4179, 7
        %v4182 = vshll.u32 %v3820, 16
        %v4184 = vor.u32 %v4181, %v4182
        %v4185 = vsel %vm3836, %v4177, %v4184
        %v4186 = vrot.slane %v4181, 4
        %v4188 = vshrl.u32 %v3821, 16
        %v4190 = vrot.slane %v4188, 7
        %v4191 = vshll.u32 %v3821, 16
        %v4193 = vor.u32 %v4190, %v4191
        %v4194 = vsel %vm3836, %v4186, %v4193
        %v4195 = vrot.slane %v4190, 4
        %v4237 = vld [vmem:[#allocation2] sm:$0xf]
        %v4238 = vsel %vm3830, %v3843, %v4237
        %4239 = vst [vmem:[#allocation2] sm:$0xf] %v4238
        %4240 = vst [vmem:[#allocation2 + $0x4] sm:$0xf] %v3852
        %4241 = vst [vmem:[#allocation2 + $0x8] sm:$0xf] %v3861
        %4242 = vst [vmem:[#allocation2 + $0xc] sm:$0xf] %v3870
        %4243 = vst [vmem:[#allocation2 + $0x10] sm:$0xf] %v3879
        %4244 = vst [vmem:[#allocation2 + $0x14] sm:$0xf] %v3888
        %4245 = vst [vmem:[#allocation2 + $0x18] sm:$0xf] %v3897
        %4246 = vst [vmem:[#allocation2 + $0x1c] sm:$0xf] %v3906
        %4247 = vst [vmem:[#allocation2 + $0x20] sm:$0xf] %v3915
        %4248 = vst [vmem:[#allocation2 + $0x24] sm:$0xf] %v3924
        %4249 = vst [vmem:[#allocation2 + $0x28] sm:$0xf] %v3933
        %4250 = vst [vmem:[#allocation2 + $0x2c] sm:$0xf] %v3942
        %4251 = vst [vmem:[#allocation2 + $0x30] sm:$0xf] %v3951
        %4252 = vst [vmem:[#allocation2 + $0x34] sm:$0xf] %v3960
        %4253 = vst [vmem:[#allocation2 + $0x38] sm:$0xf] %v3969
        %4254 = vst [vmem:[#allocation2 + $0x3c] sm:$0xf] %v3978
        %4255 = vst [vmem:[#allocation2 + $0x40] sm:$0xf] %v3987
        %4256 = vst [vmem:[#allocation2 + $0x44] sm:$0xf] %v3996
        %4257 = vst [vmem:[#allocation2 + $0x48] sm:$0xf] %v4005
        %4258 = vst [vmem:[#allocation2 + $0x4c] sm:$0xf] %v4014
        %4259 = vst [vmem:[#allocation2 + $0x50] sm:$0xf] %v4023
        %4260 = vst [vmem:[#allocation2 + $0x54] sm:$0xf] %v4032
        %4261 = vst [vmem:[#allocation2 + $0x58] sm:$0xf] %v4041
        %4262 = vst [vmem:[#allocation2 + $0x5c] sm:$0xf] %v4050
        %4263 = vst [vmem:[#allocation2 + $0x60] sm:$0xf] %v4059
        %4264 = vst [vmem:[#allocation2 + $0x64] sm:$0xf] %v4068
        %4265 = vst [vmem:[#allocation2 + $0x68] sm:$0xf] %v4077
        %4266 = vst [vmem:[#allocation2 + $0x6c] sm:$0xf] %v4086
        %4267 = vst [vmem:[#allocation2 + $0x70] sm:$0xf] %v4095
        %4268 = vst [vmem:[#allocation2 + $0x74] sm:$0xf] %v4104
        %4269 = vst [vmem:[#allocation2 + $0x78] sm:$0xf] %v4113
        %4270 = vst [vmem:[#allocation2 + $0x7c] sm:$0xf] %v4122
        %4271 = vst [vmem:[#allocation2 + $0x80] sm:$0xf] %v4131
        %4272 = vst [vmem:[#allocation2 + $0x84] sm:$0xf] %v4140
        %4273 = vst [vmem:[#allocation2 + $0x88] sm:$0xf] %v4149
        %4274 = vst [vmem:[#allocation2 + $0x8c] sm:$0xf] %v4158
        %4275 = vst [vmem:[#allocation2 + $0x90] sm:$0xf] %v4167
        %4276 = vst [vmem:[#allocation2 + $0x94] sm:$0xf] %v4176
        %4277 = vst [vmem:[#allocation2 + $0x98] sm:$0xf] %v4185
        %4278 = vst [vmem:[#allocation2 + $0x9c] sm:$0xf] %v4194
        %v4279 = vld [vmem:[#allocation2 + $0xa0] sm:$0x1]
        %v4280 = vsel %vm3824, %v4195, %v4279
        %4281 = vst [vmem:[#allocation2 + $0xa0] sm:$0x1] %v4280
        %v4282 = vld [vmem:[%s4] sm:$0x1]
        %v4283 = vld [vmem:[#allocation2] sm:$0xf]
        %v4284 = vld [vmem:[#allocation2 + $0x4] sm:$0xf]
        %v4285 = vld [vmem:[#allocation2 + $0x8] sm:$0xf]
        %v4286 = vld [vmem:[#allocation2 + $0xc] sm:$0xf]
        %v4287 = vld [vmem:[#allocation2 + $0x10] sm:$0xf]
        %v4288 = vld [vmem:[#allocation2 + $0x14] sm:$0xf]
        %v4289 = vld [vmem:[#allocation2 + $0x18] sm:$0xf]
        %v4290 = vld [vmem:[#allocation2 + $0x1c] sm:$0xf]
        %v4291 = vld [vmem:[#allocation2 + $0x20] sm:$0xf]
        %v4292 = vld [vmem:[#allocation2 + $0x24] sm:$0xf]
        %v4293 = vld [vmem:[#allocation2 + $0x28] sm:$0xf]
        %v4294 = vld [vmem:[#allocation2 + $0x2c] sm:$0xf]
        %v4295 = vld [vmem:[#allocation2 + $0x30] sm:$0xf]
        %v4296 = vld [vmem:[#allocation2 + $0x34] sm:$0xf]
        %v4297 = vld [vmem:[#allocation2 + $0x38] sm:$0xf]
        %v4298 = vld [vmem:[#allocation2 + $0x3c] sm:$0xf]
        %v4299 = vld [vmem:[#allocation2 + $0x40] sm:$0xf]
        %v4300 = vld [vmem:[#allocation2 + $0x44] sm:$0xf]
        %v4301 = vld [vmem:[#allocation2 + $0x48] sm:$0xf]
        %v4302 = vld [vmem:[#allocation2 + $0x4c] sm:$0xf]
        %v4303 = vld [vmem:[#allocation2 + $0x50] sm:$0xf]
        %v4304 = vld [vmem:[#allocation2 + $0x54] sm:$0xf]
        %v4305 = vld [vmem:[#allocation2 + $0x58] sm:$0xf]
        %v4306 = vld [vmem:[#allocation2 + $0x5c] sm:$0xf]
        %v4307 = vld [vmem:[#allocation2 + $0x60] sm:$0xf]
        %v4308 = vld [vmem:[#allocation2 + $0x64] sm:$0xf]
        %v4309 = vld [vmem:[#allocation2 + $0x68] sm:$0xf]
        %v4310 = vld [vmem:[#allocation2 + $0x6c] sm:$0xf]
        %v4311 = vld [vmem:[#allocation2 + $0x70] sm:$0xf]
        %v4312 = vld [vmem:[#allocation2 + $0x74] sm:$0xf]
        %v4313 = vld [vmem:[#allocation2 + $0x78] sm:$0xf]
        %v4314 = vld [vmem:[#allocation2 + $0x7c] sm:$0xf]
        %v4315 = vld [vmem:[#allocation2 + $0x80] sm:$0x1]
        %v4316 = vld [vmem:[#allocation2] sm:$0xe]
        %v4349 = vunpack.c.l.b16 %v4283
        %v4350 = vunpack.c.l.b16 %v4284
        %v4351 = vunpack.c.l.b16 %v4285
        %v4352 = vunpack.c.l.b16 %v4286
        %v4353 = vunpack.c.l.b16 %v4287
        %v4354 = vunpack.c.l.b16 %v4288
        %v4355 = vunpack.c.l.b16 %v4289
        %v4356 = vunpack.c.l.b16 %v4290
        %v4357 = vunpack.c.l.b16 %v4291
        %v4358 = vunpack.c.l.b16 %v4292
        %v4359 = vunpack.c.l.b16 %v4293
        %v4360 = vunpack.c.l.b16 %v4294
        %v4361 = vunpack.c.l.b16 %v4295
        %v4362 = vunpack.c.l.b16 %v4296
        %v4363 = vunpack.c.l.b16 %v4297
        %v4364 = vunpack.c.l.b16 %v4298
        %v4365 = vunpack.c.l.b16 %v4299
        %v4366 = vunpack.c.l.b16 %v4300
        %v4367 = vunpack.c.l.b16 %v4301
        %v4368 = vunpack.c.l.b16 %v4302
        %v4369 = vunpack.c.l.b16 %v4303
        %v4370 = vunpack.c.l.b16 %v4304
        %v4371 = vunpack.c.l.b16 %v4305
        %v4372 = vunpack.c.l.b16 %v4306
        %v4373 = vunpack.c.l.b16 %v4307
        %v4374 = vunpack.c.l.b16 %v4308
        %v4375 = vunpack.c.l.b16 %v4309
        %v4376 = vunpack.c.l.b16 %v4310
        %v4377 = vunpack.c.l.b16 %v4311
        %v4378 = vunpack.c.l.b16 %v4312
        %v4379 = vunpack.c.l.b16 %v4313
        %v4380 = vunpack.c.l.b16 %v4314
        %v4381 = vpack.c.b16 %v4350, %v4349
        %v4382 = vpack.c.b16 %v4352, %v4351
        %v4383 = vpack.c.b16 %v4354, %v4353
        %v4384 = vpack.c.b16 %v4356, %v4355
        %v4385 = vpack.c.b16 %v4358, %v4357
        %v4386 = vpack.c.b16 %v4360, %v4359
        %v4387 = vpack.c.b16 %v4362, %v4361
        %v4388 = vpack.c.b16 %v4364, %v4363
        %v4389 = vpack.c.b16 %v4366, %v4365
        %v4390 = vpack.c.b16 %v4368, %v4367
        %v4391 = vpack.c.b16 %v4370, %v4369
        %v4392 = vpack.c.b16 %v4372, %v4371
        %v4393 = vpack.c.b16 %v4374, %v4373
        %v4394 = vpack.c.b16 %v4376, %v4375
        %v4395 = vpack.c.b16 %v4378, %v4377
        %v4396 = vpack.c.b16 %v4380, %v4379
        %v4414 = vunpack.c.l.b16 %v4315
        %v4415 = vpack.c.b16 %v4414, %v4414
        %v4417 = vshrl.u32 %v4381, 16
        %v4419 = vshll.u32 %v4381, 16
        %v4421 = vrot.slane %v4419, 1
        %v4422 = vor.u32 %v4417, %v4421
        %v4424 = vshll.u32 %v4382, 16
        %v4426 = vrot.slane %v4424, 1
        %v4427 = vsel %vm536, %v4422, %v4426
        %v4428 = vshrl.u32 %v4382, 16
        %v4430 = vor.u32 %v4428, %v4426
        %v4432 = vshll.u32 %v4383, 16
        %v4434 = vrot.slane %v4432, 1
        %v4435 = vsel %vm536, %v4430, %v4434
        %v4436 = vshrl.u32 %v4383, 16
        %v4438 = vor.u32 %v4436, %v4434
        %v4440 = vshll.u32 %v4384, 16
        %v4442 = vrot.slane %v4440, 1
        %v4443 = vsel %vm536, %v4438, %v4442
        %v4444 = vshrl.u32 %v4384, 16
        %v4446 = vor.u32 %v4444, %v4442
        %v4448 = vshll.u32 %v4385, 16
        %v4450 = vrot.slane %v4448, 1
        %v4451 = vsel %vm536, %v4446, %v4450
        %v4452 = vshrl.u32 %v4385, 16
        %v4454 = vor.u32 %v4452, %v4450
        %v4456 = vshll.u32 %v4386, 16
        %v4458 = vrot.slane %v4456, 1
        %v4459 = vsel %vm536, %v4454, %v4458
        %v4460 = vshrl.u32 %v4386, 16
        %v4462 = vor.u32 %v4460, %v4458
        %v4464 = vshll.u32 %v4387, 16
        %v4466 = vrot.slane %v4464, 1
        %v4467 = vsel %vm536, %v4462, %v4466
        %v4468 = vshrl.u32 %v4387, 16
        %v4470 = vor.u32 %v4468, %v4466
        %v4472 = vshll.u32 %v4388, 16
        %v4474 = vrot.slane %v4472, 1
        %v4475 = vsel %vm536, %v4470, %v4474
        %v4476 = vshrl.u32 %v4388, 16
        %v4478 = vor.u32 %v4476, %v4474
        %v4480 = vshll.u32 %v4389, 16
        %v4482 = vrot.slane %v4480, 1
        %v4483 = vsel %vm536, %v4478, %v4482
        %v4484 = vshrl.u32 %v4389, 16
        %v4486 = vor.u32 %v4484, %v4482
        %v4488 = vshll.u32 %v4390, 16
        %v4490 = vrot.slane %v4488, 1
        %v4491 = vsel %vm536, %v4486, %v4490
        %v4492 = vshrl.u32 %v4390, 16
        %v4494 = vor.u32 %v4492, %v4490
        %v4496 = vshll.u32 %v4391, 16
        %v4498 = vrot.slane %v4496, 1
        %v4499 = vsel %vm536, %v4494, %v4498
        %v4500 = vshrl.u32 %v4391, 16
        %v4502 = vor.u32 %v4500, %v4498
        %v4504 = vshll.u32 %v4392, 16
        %v4506 = vrot.slane %v4504, 1
        %v4507 = vsel %vm536, %v4502, %v4506
        %v4508 = vshrl.u32 %v4392, 16
        %v4510 = vor.u32 %v4508, %v4506
        %v4512 = vshll.u32 %v4393, 16
        %v4514 = vrot.slane %v4512, 1
        %v4515 = vsel %vm536, %v4510, %v4514
        %v4516 = vshrl.u32 %v4393, 16
        %v4518 = vor.u32 %v4516, %v4514
        %v4520 = vshll.u32 %v4394, 16
        %v4522 = vrot.slane %v4520, 1
        %v4523 = vsel %vm536, %v4518, %v4522
        %v4524 = vshrl.u32 %v4394, 16
        %v4526 = vor.u32 %v4524, %v4522
        %v4528 = vshll.u32 %v4395, 16
        %v4530 = vrot.slane %v4528, 1
        %v4531 = vsel %vm536, %v4526, %v4530
        %v4532 = vshrl.u32 %v4395, 16
        %v4534 = vor.u32 %v4532, %v4530
        %v4536 = vshll.u32 %v4396, 16
        %v4538 = vrot.slane %v4536, 1
        %v4539 = vsel %vm536, %v4534, %v4538
        %v4540 = vshrl.u32 %v4396, 16
        %v4542 = vor.u32 %v4540, %v4538
        %v4544 = vshll.u32 %v4415, 16
        %v4546 = vrot.slane %v4544, 1
        %v4547 = vsel %vm536, %v4542, %v4546
        %v4565 = vunpack.c.l.b16 %v4316
        %v4566 = vpack.c.b16 %v4350, %v4565
        %v4567 = vrot.slane %v4566, 1
        %v4568 = vrot.slane %v4382, 1
        %v4569 = vsel %vm724, %v4567, %v4568
        %v4570 = vrot.slane %v4383, 1
        %v4571 = vsel %vm724, %v4568, %v4570
        %v4572 = vrot.slane %v4384, 1
        %v4573 = vsel %vm724, %v4570, %v4572
        %v4574 = vrot.slane %v4385, 1
        %v4575 = vsel %vm724, %v4572, %v4574
        %v4576 = vrot.slane %v4386, 1
        %v4577 = vsel %vm724, %v4574, %v4576
        %v4578 = vrot.slane %v4387, 1
        %v4579 = vsel %vm724, %v4576, %v4578
        %v4580 = vrot.slane %v4388, 1
        %v4581 = vsel %vm724, %v4578, %v4580
        %v4582 = vrot.slane %v4389, 1
        %v4583 = vsel %vm724, %v4580, %v4582
        %v4584 = vrot.slane %v4390, 1
        %v4585 = vsel %vm724, %v4582, %v4584
        %v4586 = vrot.slane %v4391, 1
        %v4587 = vsel %vm724, %v4584, %v4586
        %v4588 = vrot.slane %v4392, 1
        %v4589 = vsel %vm724, %v4586, %v4588
        %v4590 = vrot.slane %v4393, 1
        %v4591 = vsel %vm724, %v4588, %v4590
        %v4592 = vrot.slane %v4394, 1
        %v4593 = vsel %vm724, %v4590, %v4592
        %v4594 = vrot.slane %v4395, 1
        %v4595 = vsel %vm724, %v4592, %v4594
        %v4596 = vrot.slane %v4396, 1
        %v4597 = vsel %vm724, %v4594, %v4596
        %v4598 = vrot.slane %v4415, 1
        %v4599 = vsel %vm724, %v4596, %v4598
        %v4616 = vld [vmem:[#allocation8] sm:$0xf]
        %v4617 = vld [vmem:[#allocation8 + $0x4] sm:$0xf]
        %v4618 = vld [vmem:[#allocation8 + $0x8] sm:$0xf]
        %v4619 = vld [vmem:[#allocation8 + $0xc] sm:$0xf]
        %v4620 = vld [vmem:[#allocation8 + $0x10] sm:$0xf]
        %v4621 = vld [vmem:[#allocation8 + $0x14] sm:$0xf]
        %v4622 = vld [vmem:[#allocation8 + $0x18] sm:$0xf]
        %v4623 = vld [vmem:[#allocation8 + $0x1c] sm:$0xf]
        %v4624 = vld [vmem:[#allocation8 + $0x20] sm:$0xf]
        %v4625 = vld [vmem:[#allocation8 + $0x24] sm:$0xf]
        %v4626 = vld [vmem:[#allocation8 + $0x28] sm:$0xf]
        %v4627 = vld [vmem:[#allocation8 + $0x2c] sm:$0xf]
        %v4628 = vld [vmem:[#allocation8 + $0x30] sm:$0xf]
        %v4629 = vld [vmem:[#allocation8 + $0x34] sm:$0xf]
        %v4630 = vld [vmem:[#allocation8 + $0x38] sm:$0xf]
        %v4631 = vld [vmem:[#allocation8 + $0x3c] sm:$0xf]
        %v4632 = vld [vmem:[#allocation8 + $0x40] sm:$0xf]
        %v4633 = vld [vmem:[#allocation8 + $0x44] sm:$0xf]
        %v4634 = vld [vmem:[#allocation8 + $0x48] sm:$0xf]
        %v4635 = vld [vmem:[#allocation8 + $0x4c] sm:$0xf]
        %v4636 = vld [vmem:[#allocation8 + $0x50] sm:$0xf]
        %v4637 = vld [vmem:[#allocation8 + $0x54] sm:$0xf]
        %v4638 = vld [vmem:[#allocation8 + $0x58] sm:$0xf]
        %v4639 = vld [vmem:[#allocation8 + $0x5c] sm:$0xf]
        %v4640 = vld [vmem:[#allocation8 + $0x60] sm:$0xf]
        %v4641 = vld [vmem:[#allocation8 + $0x64] sm:$0xf]
        %v4642 = vld [vmem:[#allocation8 + $0x68] sm:$0xf]
        %v4643 = vld [vmem:[#allocation8 + $0x6c] sm:$0xf]
        %v4644 = vld [vmem:[#allocation8 + $0x70] sm:$0xf]
        %v4645 = vld [vmem:[#allocation8 + $0x74] sm:$0xf]
        %v4646 = vld [vmem:[#allocation8 + $0x78] sm:$0xf]
        %v4647 = vld [vmem:[#allocation8 + $0x7c] sm:$0xf]
        %v4648 = vld [vmem:[#allocation8 + $0x80] sm:$0xf]
        %v4649 = vld [vmem:[#allocation8 + $0x84] sm:$0xf]
        %v4650 = vld [vmem:[#allocation8 + $0x88] sm:$0xf]
        %v4651 = vld [vmem:[#allocation8 + $0x8c] sm:$0xf]
        %v4652 = vld [vmem:[#allocation8 + $0x90] sm:$0xf]
        %v4653 = vld [vmem:[#allocation8 + $0x94] sm:$0xf]
        %v4654 = vld [vmem:[#allocation8 + $0x98] sm:$0xf]
        %v4655 = vld [vmem:[#allocation8 + $0x9c] sm:$0xf]
        %v4656 = vld [vmem:[#allocation8 + $0xa0] sm:$0xf]
        %v4657 = vld [vmem:[#allocation8 + $0xa4] sm:$0xf]
        %v4658 = vld [vmem:[#allocation8 + $0xa8] sm:$0xf]
        %v4659 = vld [vmem:[#allocation8 + $0xac] sm:$0xf]
        %v4660 = vld [vmem:[#allocation8 + $0xb0] sm:$0xf]
        %v4661 = vld [vmem:[#allocation8 + $0xb4] sm:$0xf]
        %v4662 = vld [vmem:[#allocation8 + $0xb8] sm:$0xf]
        %v4663 = vld [vmem:[#allocation8 + $0xbc] sm:$0xf]
        %v4712 = vunpack.c.l.b16 %v4616
        %v4713 = vunpack.c.l.b16 %v4617
        %v4714 = vunpack.c.l.b16 %v4618
        %v4715 = vunpack.c.l.b16 %v4619
        %v4716 = vunpack.c.l.b16 %v4620
        %v4717 = vunpack.c.l.b16 %v4621
        %v4718 = vunpack.c.l.b16 %v4622
        %v4719 = vunpack.c.l.b16 %v4623
        %v4720 = vunpack.c.l.b16 %v4624
        %v4721 = vunpack.c.l.b16 %v4625
        %v4722 = vunpack.c.l.b16 %v4626
        %v4723 = vunpack.c.l.b16 %v4627
        %v4724 = vunpack.c.l.b16 %v4628
        %v4725 = vunpack.c.l.b16 %v4629
        %v4726 = vunpack.c.l.b16 %v4630
        %v4727 = vunpack.c.l.b16 %v4631
        %v4728 = vunpack.c.l.b16 %v4632
        %v4729 = vunpack.c.l.b16 %v4633
        %v4730 = vunpack.c.l.b16 %v4634
        %v4731 = vunpack.c.l.b16 %v4635
        %v4732 = vunpack.c.l.b16 %v4636
        %v4733 = vunpack.c.l.b16 %v4637
        %v4734 = vunpack.c.l.b16 %v4638
        %v4735 = vunpack.c.l.b16 %v4639
        %v4736 = vunpack.c.l.b16 %v4640
        %v4737 = vunpack.c.l.b16 %v4641
        %v4738 = vunpack.c.l.b16 %v4642
        %v4739 = vunpack.c.l.b16 %v4643
        %v4740 = vunpack.c.l.b16 %v4644
        %v4741 = vunpack.c.l.b16 %v4645
        %v4742 = vunpack.c.l.b16 %v4646
        %v4743 = vunpack.c.l.b16 %v4647
        %v4744 = vunpack.c.l.b16 %v4648
        %v4745 = vunpack.c.l.b16 %v4649
        %v4746 = vunpack.c.l.b16 %v4650
        %v4747 = vunpack.c.l.b16 %v4651
        %v4748 = vunpack.c.l.b16 %v4652
        %v4749 = vunpack.c.l.b16 %v4653
        %v4750 = vunpack.c.l.b16 %v4654
        %v4751 = vunpack.c.l.b16 %v4655
        %v4752 = vunpack.c.l.b16 %v4656
        %v4753 = vunpack.c.l.b16 %v4657
        %v4754 = vunpack.c.l.b16 %v4658
        %v4755 = vunpack.c.l.b16 %v4659
        %v4756 = vunpack.c.l.b16 %v4660
        %v4757 = vunpack.c.l.b16 %v4661
        %v4758 = vunpack.c.l.b16 %v4662
        %v4759 = vunpack.c.l.b16 %v4663
        %v4760 = vpack.c.b16 %v4713, %v4712
        %v4761 = vpack.c.b16 %v4715, %v4714
        %v4762 = vpack.c.b16 %v4717, %v4716
        %v4763 = vpack.c.b16 %v4719, %v4718
        %v4764 = vpack.c.b16 %v4721, %v4720
        %v4765 = vpack.c.b16 %v4723, %v4722
        %v4766 = vpack.c.b16 %v4725, %v4724
        %v4767 = vpack.c.b16 %v4727, %v4726
        %v4768 = vpack.c.b16 %v4729, %v4728
        %v4769 = vpack.c.b16 %v4731, %v4730
        %v4770 = vpack.c.b16 %v4733, %v4732
        %v4771 = vpack.c.b16 %v4735, %v4734
        %v4772 = vpack.c.b16 %v4737, %v4736
        %v4773 = vpack.c.b16 %v4739, %v4738
        %v4774 = vpack.c.b16 %v4741, %v4740
        %v4775 = vpack.c.b16 %v4743, %v4742
        %v4776 = vpack.c.b16 %v4745, %v4744
        %v4777 = vpack.c.b16 %v4747, %v4746
        %v4778 = vpack.c.b16 %v4749, %v4748
        %v4779 = vpack.c.b16 %v4751, %v4750
        %v4780 = vpack.c.b16 %v4753, %v4752
        %v4781 = vpack.c.b16 %v4755, %v4754
        %v4782 = vpack.c.b16 %v4757, %v4756
        %v4783 = vpack.c.b16 %v4759, %v4758
        %4808 = vmatpush.bf16.msra.mxu0 %v4767
        %4809 = vmatpush.bf16.msra.mxu0 %v4766
        %4810 = vmatpush.bf16.msra.mxu0 %v4765
        %4811 = vmatpush.bf16.msra.mxu0 %v4764
        %4812 = vmatpush.bf16.msra.mxu0 %v4763
        %4813 = vmatpush.bf16.msra.mxu0 %v4762
        %4814 = vmatpush.bf16.msra.mxu0 %v4761
        %4815 = vmatpush.bf16.msra.mxu0 %v4760
        %4816 = vmatmul.bf16.gmra.mxu0 %v4381
        %v4817 = vpop.f32.mrf.mxu0
        %v4818 = vadd.f32 0.0, %v4817
        %v4819 = vpop.f32.mrf.mxu0
        %v4820 = vadd.f32 0.0, %v4819
        %4821 = vmatmul.bf16.gmra.mxu0 %v4382
        %v4822 = vpop.f32.mrf.mxu0
        %v4823 = vadd.f32 0.0, %v4822
        %v4824 = vpop.f32.mrf.mxu0
        %v4825 = vadd.f32 0.0, %v4824
        %4826 = vmatmul.bf16.gmra.mxu0 %v4383
        %v4827 = vpop.f32.mrf.mxu0
        %v4828 = vadd.f32 0.0, %v4827
        %v4829 = vpop.f32.mrf.mxu0
        %v4830 = vadd.f32 0.0, %v4829
        %4831 = vmatmul.bf16.gmra.mxu0 %v4384
        %v4832 = vpop.f32.mrf.mxu0
        %v4833 = vadd.f32 0.0, %v4832
        %v4834 = vpop.f32.mrf.mxu0
        %v4835 = vadd.f32 0.0, %v4834
        %4836 = vmatmul.bf16.gmra.mxu0 %v4385
        %v4837 = vpop.f32.mrf.mxu0
        %v4838 = vadd.f32 0.0, %v4837
        %v4839 = vpop.f32.mrf.mxu0
        %v4840 = vadd.f32 0.0, %v4839
        %4841 = vmatmul.bf16.gmra.mxu0 %v4386
        %v4842 = vpop.f32.mrf.mxu0
        %v4843 = vadd.f32 0.0, %v4842
        %v4844 = vpop.f32.mrf.mxu0
        %v4845 = vadd.f32 0.0, %v4844
        %4846 = vmatmul.bf16.gmra.mxu0 %v4387
        %v4847 = vpop.f32.mrf.mxu0
        %v4848 = vadd.f32 0.0, %v4847
        %v4849 = vpop.f32.mrf.mxu0
        %v4850 = vadd.f32 0.0, %v4849
        %4851 = vmatmul.bf16.gmra.mxu0 %v4388
        %v4852 = vpop.f32.mrf.mxu0
        %v4853 = vadd.f32 0.0, %v4852
        %v4854 = vpop.f32.mrf.mxu0
        %v4855 = vadd.f32 0.0, %v4854
        %4856 = vmatmul.bf16.gmra.mxu0 %v4389
        %v4857 = vpop.f32.mrf.mxu0
        %v4858 = vadd.f32 0.0, %v4857
        %v4859 = vpop.f32.mrf.mxu0
        %v4860 = vadd.f32 0.0, %v4859
        %4861 = vmatmul.bf16.gmra.mxu0 %v4390
        %v4862 = vpop.f32.mrf.mxu0
        %v4863 = vadd.f32 0.0, %v4862
        %v4864 = vpop.f32.mrf.mxu0
        %v4865 = vadd.f32 0.0, %v4864
        %4866 = vmatmul.bf16.gmra.mxu0 %v4391
        %v4867 = vpop.f32.mrf.mxu0
        %v4868 = vadd.f32 0.0, %v4867
        %v4869 = vpop.f32.mrf.mxu0
        %v4870 = vadd.f32 0.0, %v4869
        %4871 = vmatmul.bf16.gmra.mxu0 %v4392
        %v4872 = vpop.f32.mrf.mxu0
        %v4873 = vadd.f32 0.0, %v4872
        %v4874 = vpop.f32.mrf.mxu0
        %v4875 = vadd.f32 0.0, %v4874
        %4876 = vmatmul.bf16.gmra.mxu0 %v4393
        %v4877 = vpop.f32.mrf.mxu0
        %v4878 = vadd.f32 0.0, %v4877
        %v4879 = vpop.f32.mrf.mxu0
        %v4880 = vadd.f32 0.0, %v4879
        %4881 = vmatmul.bf16.gmra.mxu0 %v4394
        %v4882 = vpop.f32.mrf.mxu0
        %v4883 = vadd.f32 0.0, %v4882
        %v4884 = vpop.f32.mrf.mxu0
        %v4885 = vadd.f32 0.0, %v4884
        %4886 = vmatmul.bf16.gmra.mxu0 %v4395
        %v4887 = vpop.f32.mrf.mxu0
        %v4888 = vadd.f32 0.0, %v4887
        %v4889 = vpop.f32.mrf.mxu0
        %v4890 = vadd.f32 0.0, %v4889
        %4891 = vmatmul.bf16.gmra.mxu0 %v4396
        %v4892 = vpop.f32.mrf.mxu0
        %v4893 = vadd.f32 0.0, %v4892
        %v4894 = vpop.f32.mrf.mxu0
        %v4895 = vadd.f32 0.0, %v4894
        %4896 = vdwg.mxu0
        %4897 = vmatpush.bf16.msra.mxu0 %v4775
        %4898 = vmatpush.bf16.msra.mxu0 %v4774
        %4899 = vmatpush.bf16.msra.mxu0 %v4773
        %4900 = vmatpush.bf16.msra.mxu0 %v4772
        %4901 = vmatpush.bf16.msra.mxu0 %v4771
        %4902 = vmatpush.bf16.msra.mxu0 %v4770
        %4903 = vmatpush.bf16.msra.mxu0 %v4769
        %4904 = vmatpush.bf16.msra.mxu0 %v4768
        %4905 = vmatmul.bf16.gmra.mxu0 %v4427
        %v4906 = vpop.f32.mrf.mxu0
        %v4907 = vadd.f32 %v4818, %v4906
        %v4908 = vpop.f32.mrf.mxu0
        %v4909 = vadd.f32 %v4820, %v4908
        %4910 = vmatmul.bf16.gmra.mxu0 %v4435
        %v4911 = vpop.f32.mrf.mxu0
        %v4912 = vadd.f32 %v4823, %v4911
        %v4913 = vpop.f32.mrf.mxu0
        %v4914 = vadd.f32 %v4825, %v4913
        %4915 = vmatmul.bf16.gmra.mxu0 %v4443
        %v4916 = vpop.f32.mrf.mxu0
        %v4917 = vadd.f32 %v4828, %v4916
        %v4918 = vpop.f32.mrf.mxu0
        %v4919 = vadd.f32 %v4830, %v4918
        %4920 = vmatmul.bf16.gmra.mxu0 %v4451
        %v4921 = vpop.f32.mrf.mxu0
        %v4922 = vadd.f32 %v4833, %v4921
        %v4923 = vpop.f32.mrf.mxu0
        %v4924 = vadd.f32 %v4835, %v4923
        %4925 = vmatmul.bf16.gmra.mxu0 %v4459
        %v4926 = vpop.f32.mrf.mxu0
        %v4927 = vadd.f32 %v4838, %v4926
        %v4928 = vpop.f32.mrf.mxu0
        %v4929 = vadd.f32 %v4840, %v4928
        %4930 = vmatmul.bf16.gmra.mxu0 %v4467
        %v4931 = vpop.f32.mrf.mxu0
        %v4932 = vadd.f32 %v4843, %v4931
        %v4933 = vpop.f32.mrf.mxu0
        %v4934 = vadd.f32 %v4845, %v4933
        %4935 = vmatmul.bf16.gmra.mxu0 %v4475
        %v4936 = vpop.f32.mrf.mxu0
        %v4937 = vadd.f32 %v4848, %v4936
        %v4938 = vpop.f32.mrf.mxu0
        %v4939 = vadd.f32 %v4850, %v4938
        %4940 = vmatmul.bf16.gmra.mxu0 %v4483
        %v4941 = vpop.f32.mrf.mxu0
        %v4942 = vadd.f32 %v4853, %v4941
        %v4943 = vpop.f32.mrf.mxu0
        %v4944 = vadd.f32 %v4855, %v4943
        %4945 = vmatmul.bf16.gmra.mxu0 %v4491
        %v4946 = vpop.f32.mrf.mxu0
        %v4947 = vadd.f32 %v4858, %v4946
        %v4948 = vpop.f32.mrf.mxu0
        %v4949 = vadd.f32 %v4860, %v4948
        %4950 = vmatmul.bf16.gmra.mxu0 %v4499
        %v4951 = vpop.f32.mrf.mxu0
        %v4952 = vadd.f32 %v4863, %v4951
        %v4953 = vpop.f32.mrf.mxu0
        %v4954 = vadd.f32 %v4865, %v4953
        %4955 = vmatmul.bf16.gmra.mxu0 %v4507
        %v4956 = vpop.f32.mrf.mxu0
        %v4957 = vadd.f32 %v4868, %v4956
        %v4958 = vpop.f32.mrf.mxu0
        %v4959 = vadd.f32 %v4870, %v4958
        %4960 = vmatmul.bf16.gmra.mxu0 %v4515
        %v4961 = vpop.f32.mrf.mxu0
        %v4962 = vadd.f32 %v4873, %v4961
        %v4963 = vpop.f32.mrf.mxu0
        %v4964 = vadd.f32 %v4875, %v4963
        %4965 = vmatmul.bf16.gmra.mxu0 %v4523
        %v4966 = vpop.f32.mrf.mxu0
        %v4967 = vadd.f32 %v4878, %v4966
        %v4968 = vpop.f32.mrf.mxu0
        %v4969 = vadd.f32 %v4880, %v4968
        %4970 = vmatmul.bf16.gmra.mxu0 %v4531
        %v4971 = vpop.f32.mrf.mxu0
        %v4972 = vadd.f32 %v4883, %v4971
        %v4973 = vpop.f32.mrf.mxu0
        %v4974 = vadd.f32 %v4885, %v4973
        %4975 = vmatmul.bf16.gmra.mxu0 %v4539
        %v4976 = vpop.f32.mrf.mxu0
        %v4977 = vadd.f32 %v4888, %v4976
        %v4978 = vpop.f32.mrf.mxu0
        %v4979 = vadd.f32 %v4890, %v4978
        %4980 = vmatmul.bf16.gmra.mxu0 %v4547
        %v4981 = vpop.f32.mrf.mxu0
        %v4982 = vadd.f32 %v4893, %v4981
        %v4983 = vpop.f32.mrf.mxu0
        %v4984 = vadd.f32 %v4895, %v4983
        %4985 = vdwg.mxu0
        %4986 = vmatpush.bf16.msra.mxu0 %v4783
        %4987 = vmatpush.bf16.msra.mxu0 %v4782
        %4988 = vmatpush.bf16.msra.mxu0 %v4781
        %4989 = vmatpush.bf16.msra.mxu0 %v4780
        %4990 = vmatpush.bf16.msra.mxu0 %v4779
        %4991 = vmatpush.bf16.msra.mxu0 %v4778
        %4992 = vmatpush.bf16.msra.mxu0 %v4777
        %4993 = vmatpush.bf16.msra.mxu0 %v4776
        %4994 = vmatmul.bf16.gmra.mxu0 %v4569
        %v4995 = vpop.f32.mrf.mxu0
        %v4996 = vadd.f32 %v4907, %v4995
        %v4997 = vpop.f32.mrf.mxu0
        %v4998 = vadd.f32 %v4909, %v4997
        %4999 = vmatmul.bf16.gmra.mxu0 %v4571
        %v5000 = vpop.f32.mrf.mxu0
        %v5001 = vadd.f32 %v4912, %v5000
        %v5002 = vpop.f32.mrf.mxu0
        %v5003 = vadd.f32 %v4914, %v5002
        %5004 = vmatmul.bf16.gmra.mxu0 %v4573
        %v5005 = vpop.f32.mrf.mxu0
        %v5006 = vadd.f32 %v4917, %v5005
        %v5007 = vpop.f32.mrf.mxu0
        %v5008 = vadd.f32 %v4919, %v5007
        %5009 = vmatmul.bf16.gmra.mxu0 %v4575
        %v5010 = vpop.f32.mrf.mxu0
        %v5011 = vadd.f32 %v4922, %v5010
        %v5012 = vpop.f32.mrf.mxu0
        %v5013 = vadd.f32 %v4924, %v5012
        %5014 = vmatmul.bf16.gmra.mxu0 %v4577
        %v5015 = vpop.f32.mrf.mxu0
        %v5016 = vadd.f32 %v4927, %v5015
        %v5017 = vpop.f32.mrf.mxu0
        %v5018 = vadd.f32 %v4929, %v5017
        %5019 = vmatmul.bf16.gmra.mxu0 %v4579
        %v5020 = vpop.f32.mrf.mxu0
        %v5021 = vadd.f32 %v4932, %v5020
        %v5022 = vpop.f32.mrf.mxu0
        %v5023 = vadd.f32 %v4934, %v5022
        %5024 = vmatmul.bf16.gmra.mxu0 %v4581
        %v5025 = vpop.f32.mrf.mxu0
        %v5026 = vadd.f32 %v4937, %v5025
        %v5027 = vpop.f32.mrf.mxu0
        %v5028 = vadd.f32 %v4939, %v5027
        %5029 = vmatmul.bf16.gmra.mxu0 %v4583
        %v5030 = vpop.f32.mrf.mxu0
        %v5031 = vadd.f32 %v4942, %v5030
        %v5032 = vpop.f32.mrf.mxu0
        %v5033 = vadd.f32 %v4944, %v5032
        %5034 = vmatmul.bf16.gmra.mxu0 %v4585
        %v5035 = vpop.f32.mrf.mxu0
        %v5036 = vadd.f32 %v4947, %v5035
        %v5037 = vpop.f32.mrf.mxu0
        %v5038 = vadd.f32 %v4949, %v5037
        %5039 = vmatmul.bf16.gmra.mxu0 %v4587
        %v5040 = vpop.f32.mrf.mxu0
        %v5041 = vadd.f32 %v4952, %v5040
        %v5042 = vpop.f32.mrf.mxu0
        %v5043 = vadd.f32 %v4954, %v5042
        %5044 = vmatmul.bf16.gmra.mxu0 %v4589
        %v5045 = vpop.f32.mrf.mxu0
        %v5046 = vadd.f32 %v4957, %v5045
        %v5047 = vpop.f32.mrf.mxu0
        %v5048 = vadd.f32 %v4959, %v5047
        %5049 = vmatmul.bf16.gmra.mxu0 %v4591
        %v5050 = vpop.f32.mrf.mxu0
        %v5051 = vadd.f32 %v4962, %v5050
        %v5052 = vpop.f32.mrf.mxu0
        %v5053 = vadd.f32 %v4964, %v5052
        %5054 = vmatmul.bf16.gmra.mxu0 %v4593
        %v5055 = vpop.f32.mrf.mxu0
        %v5056 = vadd.f32 %v4967, %v5055
        %v5057 = vpop.f32.mrf.mxu0
        %v5058 = vadd.f32 %v4969, %v5057
        %5059 = vmatmul.bf16.gmra.mxu0 %v4595
        %v5060 = vpop.f32.mrf.mxu0
        %v5061 = vadd.f32 %v4972, %v5060
        %v5062 = vpop.f32.mrf.mxu0
        %v5063 = vadd.f32 %v4974, %v5062
        %5064 = vmatmul.bf16.gmra.mxu0 %v4597
        %v5065 = vpop.f32.mrf.mxu0
        %v5066 = vadd.f32 %v4977, %v5065
        %v5067 = vpop.f32.mrf.mxu0
        %v5068 = vadd.f32 %v4979, %v5067
        %5069 = vmatmul.bf16.gmra.mxu0 %v4599
        %v5070 = vpop.f32.mrf.mxu0
        %v5071 = vadd.f32 %v4982, %v5070
        %v5072 = vpop.f32.mrf.mxu0
        %v5073 = vadd.f32 %v4984, %v5072
        %5074 = vdwg.mxu0
        %v5076 = vperm.slane %v4282, 0
        %v5078 = vadd.f32 %v5076, %v4996
        %v5079 = vadd.f32 %v5076, %v4998
        %v5080 = vadd.f32 %v5076, %v5001
        %v5081 = vadd.f32 %v5076, %v5003
        %v5082 = vadd.f32 %v5076, %v5006
        %v5083 = vadd.f32 %v5076, %v5008
        %v5084 = vadd.f32 %v5076, %v5011
        %v5085 = vadd.f32 %v5076, %v5013
        %v5086 = vadd.f32 %v5076, %v5016
        %v5087 = vadd.f32 %v5076, %v5018
        %v5088 = vadd.f32 %v5076, %v5021
        %v5089 = vadd.f32 %v5076, %v5023
        %v5090 = vadd.f32 %v5076, %v5026
        %v5091 = vadd.f32 %v5076, %v5028
        %v5092 = vadd.f32 %v5076, %v5031
        %v5093 = vadd.f32 %v5076, %v5033
        %v5094 = vadd.f32 %v5076, %v5036
        %v5095 = vadd.f32 %v5076, %v5038
        %v5096 = vadd.f32 %v5076, %v5041
        %v5097 = vadd.f32 %v5076, %v5043
        %v5098 = vadd.f32 %v5076, %v5046
        %v5099 = vadd.f32 %v5076, %v5048
        %v5100 = vadd.f32 %v5076, %v5051
        %v5101 = vadd.f32 %v5076, %v5053
        %v5102 = vadd.f32 %v5076, %v5056
        %v5103 = vadd.f32 %v5076, %v5058
        %v5104 = vadd.f32 %v5076, %v5061
        %v5105 = vadd.f32 %v5076, %v5063
        %v5106 = vadd.f32 %v5076, %v5066
        %v5107 = vadd.f32 %v5076, %v5068
        %v5108 = vadd.f32 %v5076, %v5071
        %v5109 = vadd.f32 %v5076, %v5073
        %v5110 = vld [vmem:[#allocation2 + $0x10] sm:$0xf]
        %v5111 = vld [vmem:[#allocation2 + $0x14] sm:$0xf]
        %v5112 = vld [vmem:[#allocation2 + $0x18] sm:$0xf]
        %v5113 = vld [vmem:[#allocation2 + $0x1c] sm:$0xf]
        %v5114 = vld [vmem:[#allocation2 + $0x20] sm:$0xf]
        %v5115 = vld [vmem:[#allocation2 + $0x24] sm:$0xf]
        %v5116 = vld [vmem:[#allocation2 + $0x28] sm:$0xf]
        %v5117 = vld [vmem:[#allocation2 + $0x2c] sm:$0xf]
        %v5118 = vld [vmem:[#allocation2 + $0x30] sm:$0xf]
        %v5119 = vld [vmem:[#allocation2 + $0x34] sm:$0xf]
        %v5120 = vld [vmem:[#allocation2 + $0x38] sm:$0xf]
        %v5121 = vld [vmem:[#allocation2 + $0x3c] sm:$0xf]
        %v5122 = vld [vmem:[#allocation2 + $0x40] sm:$0xf]
        %v5123 = vld [vmem:[#allocation2 + $0x44] sm:$0xf]
        %v5124 = vld [vmem:[#allocation2 + $0x48] sm:$0xf]
        %v5125 = vld [vmem:[#allocation2 + $0x4c] sm:$0xf]
        %v5126 = vld [vmem:[#allocation2 + $0x50] sm:$0xf]
        %v5127 = vld [vmem:[#allocation2 + $0x54] sm:$0xf]
        %v5128 = vld [vmem:[#allocation2 + $0x58] sm:$0xf]
        %v5129 = vld [vmem:[#allocation2 + $0x5c] sm:$0xf]
        %v5130 = vld [vmem:[#allocation2 + $0x60] sm:$0xf]
        %v5131 = vld [vmem:[#allocation2 + $0x64] sm:$0xf]
        %v5132 = vld [vmem:[#allocation2 + $0x68] sm:$0xf]
        %v5133 = vld [vmem:[#allocation2 + $0x6c] sm:$0xf]
        %v5134 = vld [vmem:[#allocation2 + $0x70] sm:$0xf]
        %v5135 = vld [vmem:[#allocation2 + $0x74] sm:$0xf]
        %v5136 = vld [vmem:[#allocation2 + $0x78] sm:$0xf]
        %v5137 = vld [vmem:[#allocation2 + $0x7c] sm:$0xf]
        %v5138 = vld [vmem:[#allocation2 + $0x80] sm:$0xf]
        %v5139 = vld [vmem:[#allocation2 + $0x84] sm:$0xf]
        %v5140 = vld [vmem:[#allocation2 + $0x88] sm:$0xf]
        %v5141 = vld [vmem:[#allocation2 + $0x8c] sm:$0xf]
        %v5142 = vld [vmem:[#allocation2 + $0x90] sm:$0x1]
        %v5143 = vld [vmem:[#allocation2 + $0x10] sm:$0xe]
        %v5176 = vunpack.c.l.b16 %v5110
        %v5177 = vunpack.c.l.b16 %v5111
        %v5178 = vunpack.c.l.b16 %v5112
        %v5179 = vunpack.c.l.b16 %v5113
        %v5180 = vunpack.c.l.b16 %v5114
        %v5181 = vunpack.c.l.b16 %v5115
        %v5182 = vunpack.c.l.b16 %v5116
        %v5183 = vunpack.c.l.b16 %v5117
        %v5184 = vunpack.c.l.b16 %v5118
        %v5185 = vunpack.c.l.b16 %v5119
        %v5186 = vunpack.c.l.b16 %v5120
        %v5187 = vunpack.c.l.b16 %v5121
        %v5188 = vunpack.c.l.b16 %v5122
        %v5189 = vunpack.c.l.b16 %v5123
        %v5190 = vunpack.c.l.b16 %v5124
        %v5191 = vunpack.c.l.b16 %v5125
        %v5192 = vunpack.c.l.b16 %v5126
        %v5193 = vunpack.c.l.b16 %v5127
        %v5194 = vunpack.c.l.b16 %v5128
        %v5195 = vunpack.c.l.b16 %v5129
        %v5196 = vunpack.c.l.b16 %v5130
        %v5197 = vunpack.c.l.b16 %v5131
        %v5198 = vunpack.c.l.b16 %v5132
        %v5199 = vunpack.c.l.b16 %v5133
        %v5200 = vunpack.c.l.b16 %v5134
        %v5201 = vunpack.c.l.b16 %v5135
        %v5202 = vunpack.c.l.b16 %v5136
        %v5203 = vunpack.c.l.b16 %v5137
        %v5204 = vunpack.c.l.b16 %v5138
        %v5205 = vunpack.c.l.b16 %v5139
        %v5206 = vunpack.c.l.b16 %v5140
        %v5207 = vunpack.c.l.b16 %v5141
        %v5208 = vpack.c.b16 %v5177, %v5176
        %v5209 = vpack.c.b16 %v5179, %v5178
        %v5210 = vpack.c.b16 %v5181, %v5180
        %v5211 = vpack.c.b16 %v5183, %v5182
        %v5212 = vpack.c.b16 %v5185, %v5184
        %v5213 = vpack.c.b16 %v5187, %v5186
        %v5214 = vpack.c.b16 %v5189, %v5188
        %v5215 = vpack.c.b16 %v5191, %v5190
        %v5216 = vpack.c.b16 %v5193, %v5192
        %v5217 = vpack.c.b16 %v5195, %v5194
        %v5218 = vpack.c.b16 %v5197, %v5196
        %v5219 = vpack.c.b16 %v5199, %v5198
        %v5220 = vpack.c.b16 %v5201, %v5200
        %v5221 = vpack.c.b16 %v5203, %v5202
        %v5222 = vpack.c.b16 %v5205, %v5204
        %v5223 = vpack.c.b16 %v5207, %v5206
        %v5241 = vunpack.c.l.b16 %v5142
        %v5242 = vpack.c.b16 %v5241, %v5241
        %v5244 = vshrl.u32 %v5208, 16
        %v5246 = vshll.u32 %v5208, 16
        %v5248 = vrot.slane %v5246, 1
        %v5249 = vor.u32 %v5244, %v5248
        %v5251 = vshll.u32 %v5209, 16
        %v5253 = vrot.slane %v5251, 1
        %v5254 = vsel %vm536, %v5249, %v5253
        %v5255 = vshrl.u32 %v5209, 16
        %v5257 = vor.u32 %v5255, %v5253
        %v5259 = vshll.u32 %v5210, 16
        %v5261 = vrot.slane %v5259, 1
        %v5262 = vsel %vm536, %v5257, %v5261
        %v5263 = vshrl.u32 %v5210, 16
        %v5265 = vor.u32 %v5263, %v5261
        %v5267 = vshll.u32 %v5211, 16
        %v5269 = vrot.slane %v5267, 1
        %v5270 = vsel %vm536, %v5265, %v5269
        %v5271 = vshrl.u32 %v5211, 16
        %v5273 = vor.u32 %v5271, %v5269
        %v5275 = vshll.u32 %v5212, 16
        %v5277 = vrot.slane %v5275, 1
        %v5278 = vsel %vm536, %v5273, %v5277
        %v5279 = vshrl.u32 %v5212, 16
        %v5281 = vor.u32 %v5279, %v5277
        %v5283 = vshll.u32 %v5213, 16
        %v5285 = vrot.slane %v5283, 1
        %v5286 = vsel %vm536, %v5281, %v5285
        %v5287 = vshrl.u32 %v5213, 16
        %v5289 = vor.u32 %v5287, %v5285
        %v5291 = vshll.u32 %v5214, 16
        %v5293 = vrot.slane %v5291, 1
        %v5294 = vsel %vm536, %v5289, %v5293
        %v5295 = vshrl.u32 %v5214, 16
        %v5297 = vor.u32 %v5295, %v5293
        %v5299 = vshll.u32 %v5215, 16
        %v5301 = vrot.slane %v5299, 1
        %v5302 = vsel %vm536, %v5297, %v5301
        %v5303 = vshrl.u32 %v5215, 16
        %v5305 = vor.u32 %v5303, %v5301
        %v5307 = vshll.u32 %v5216, 16
        %v5309 = vrot.slane %v5307, 1
        %v5310 = vsel %vm536, %v5305, %v5309
        %v5311 = vshrl.u32 %v5216, 16
        %v5313 = vor.u32 %v5311, %v5309
        %v5315 = vshll.u32 %v5217, 16
        %v5317 = vrot.slane %v5315, 1
        %v5318 = vsel %vm536, %v5313, %v5317
        %v5319 = vshrl.u32 %v5217, 16
        %v5321 = vor.u32 %v5319, %v5317
        %v5323 = vshll.u32 %v5218, 16
        %v5325 = vrot.slane %v5323, 1
        %v5326 = vsel %vm536, %v5321, %v5325
        %v5327 = vshrl.u32 %v5218, 16
        %v5329 = vor.u32 %v5327, %v5325
        %v5331 = vshll.u32 %v5219, 16
        %v5333 = vrot.slane %v5331, 1
        %v5334 = vsel %vm536, %v5329, %v5333
        %v5335 = vshrl.u32 %v5219, 16
        %v5337 = vor.u32 %v5335, %v5333
        %v5339 = vshll.u32 %v5220, 16
        %v5341 = vrot.slane %v5339, 1
        %v5342 = vsel %vm536, %v5337, %v5341
        %v5343 = vshrl.u32 %v5220, 16
        %v5345 = vor.u32 %v5343, %v5341
        %v5347 = vshll.u32 %v5221, 16
        %v5349 = vrot.slane %v5347, 1
        %v5350 = vsel %vm536, %v5345, %v5349
        %v5351 = vshrl.u32 %v5221, 16
        %v5353 = vor.u32 %v5351, %v5349
        %v5355 = vshll.u32 %v5222, 16
        %v5357 = vrot.slane %v5355, 1
        %v5358 = vsel %vm536, %v5353, %v5357
        %v5359 = vshrl.u32 %v5222, 16
        %v5361 = vor.u32 %v5359, %v5357
        %v5363 = vshll.u32 %v5223, 16
        %v5365 = vrot.slane %v5363, 1
        %v5366 = vsel %vm536, %v5361, %v5365
        %v5367 = vshrl.u32 %v5223, 16
        %v5369 = vor.u32 %v5367, %v5365
        %v5371 = vshll.u32 %v5242, 16
        %v5373 = vrot.slane %v5371, 1
        %v5374 = vsel %vm536, %v5369, %v5373
        %v5392 = vunpack.c.l.b16 %v5143
        %v5393 = vpack.c.b16 %v5177, %v5392
        %v5394 = vrot.slane %v5393, 1
        %v5395 = vrot.slane %v5209, 1
        %v5396 = vsel %vm724, %v5394, %v5395
        %v5397 = vrot.slane %v5210, 1
        %v5398 = vsel %vm724, %v5395, %v5397
        %v5399 = vrot.slane %v5211, 1
        %v5400 = vsel %vm724, %v5397, %v5399
        %v5401 = vrot.slane %v5212, 1
        %v5402 = vsel %vm724, %v5399, %v5401
        %v5403 = vrot.slane %v5213, 1
        %v5404 = vsel %vm724, %v5401, %v5403
        %v5405 = vrot.slane %v5214, 1
        %v5406 = vsel %vm724, %v5403, %v5405
        %v5407 = vrot.slane %v5215, 1
        %v5408 = vsel %vm724, %v5405, %v5407
        %v5409 = vrot.slane %v5216, 1
        %v5410 = vsel %vm724, %v5407, %v5409
        %v5411 = vrot.slane %v5217, 1
        %v5412 = vsel %vm724, %v5409, %v5411
        %v5413 = vrot.slane %v5218, 1
        %v5414 = vsel %vm724, %v5411, %v5413
        %v5415 = vrot.slane %v5219, 1
        %v5416 = vsel %vm724, %v5413, %v5415
        %v5417 = vrot.slane %v5220, 1
        %v5418 = vsel %vm724, %v5415, %v5417
        %v5419 = vrot.slane %v5221, 1
        %v5420 = vsel %vm724, %v5417, %v5419
        %v5421 = vrot.slane %v5222, 1
        %v5422 = vsel %vm724, %v5419, %v5421
        %v5423 = vrot.slane %v5223, 1
        %v5424 = vsel %vm724, %v5421, %v5423
        %v5425 = vrot.slane %v5242, 1
        %v5426 = vsel %vm724, %v5423, %v5425
        %s5443 = scalar_lea.vmem [#allocation8], 192
        %v5444 = vld [vmem:[%s5443] sm:$0xf]
        %v5445 = vld [vmem:[%s5443 + $0x4] sm:$0xf]
        %v5446 = vld [vmem:[%s5443 + $0x8] sm:$0xf]
        %v5447 = vld [vmem:[%s5443 + $0xc] sm:$0xf]
        %v5448 = vld [vmem:[%s5443 + $0x10] sm:$0xf]
        %v5449 = vld [vmem:[%s5443 + $0x14] sm:$0xf]
        %v5450 = vld [vmem:[%s5443 + $0x18] sm:$0xf]
        %v5451 = vld [vmem:[%s5443 + $0x1c] sm:$0xf]
        %v5452 = vld [vmem:[%s5443 + $0x20] sm:$0xf]
        %v5453 = vld [vmem:[%s5443 + $0x24] sm:$0xf]
        %v5454 = vld [vmem:[%s5443 + $0x28] sm:$0xf]
        %v5455 = vld [vmem:[%s5443 + $0x2c] sm:$0xf]
        %v5456 = vld [vmem:[%s5443 + $0x30] sm:$0xf]
        %v5457 = vld [vmem:[%s5443 + $0x34] sm:$0xf]
        %v5458 = vld [vmem:[%s5443 + $0x38] sm:$0xf]
        %v5459 = vld [vmem:[%s5443 + $0x3c] sm:$0xf]
        %v5460 = vld [vmem:[%s5443 + $0x40] sm:$0xf]
        %v5461 = vld [vmem:[%s5443 + $0x44] sm:$0xf]
        %v5462 = vld [vmem:[%s5443 + $0x48] sm:$0xf]
        %v5463 = vld [vmem:[%s5443 + $0x4c] sm:$0xf]
        %v5464 = vld [vmem:[%s5443 + $0x50] sm:$0xf]
        %v5465 = vld [vmem:[%s5443 + $0x54] sm:$0xf]
        %v5466 = vld [vmem:[%s5443 + $0x58] sm:$0xf]
        %v5467 = vld [vmem:[%s5443 + $0x5c] sm:$0xf]
        %v5468 = vld [vmem:[%s5443 + $0x60] sm:$0xf]
        %v5469 = vld [vmem:[%s5443 + $0x64] sm:$0xf]
        %v5470 = vld [vmem:[%s5443 + $0x68] sm:$0xf]
        %v5471 = vld [vmem:[%s5443 + $0x6c] sm:$0xf]
        %v5472 = vld [vmem:[%s5443 + $0x70] sm:$0xf]
        %v5473 = vld [vmem:[%s5443 + $0x74] sm:$0xf]
        %v5474 = vld [vmem:[%s5443 + $0x78] sm:$0xf]
        %v5475 = vld [vmem:[%s5443 + $0x7c] sm:$0xf]
        %v5476 = vld [vmem:[%s5443 + $0x80] sm:$0xf]
        %v5477 = vld [vmem:[%s5443 + $0x84] sm:$0xf]
        %v5478 = vld [vmem:[%s5443 + $0x88] sm:$0xf]
        %v5479 = vld [vmem:[%s5443 + $0x8c] sm:$0xf]
        %v5480 = vld [vmem:[%s5443 + $0x90] sm:$0xf]
        %v5481 = vld [vmem:[%s5443 + $0x94] sm:$0xf]
        %v5482 = vld [vmem:[%s5443 + $0x98] sm:$0xf]
        %v5483 = vld [vmem:[%s5443 + $0x9c] sm:$0xf]
        %v5484 = vld [vmem:[%s5443 + $0xa0] sm:$0xf]
        %v5485 = vld [vmem:[%s5443 + $0xa4] sm:$0xf]
        %v5486 = vld [vmem:[%s5443 + $0xa8] sm:$0xf]
        %v5487 = vld [vmem:[%s5443 + $0xac] sm:$0xf]
        %v5488 = vld [vmem:[%s5443 + $0xb0] sm:$0xf]
        %v5489 = vld [vmem:[%s5443 + $0xb4] sm:$0xf]
        %v5490 = vld [vmem:[%s5443 + $0xb8] sm:$0xf]
        %v5491 = vld [vmem:[%s5443 + $0xbc] sm:$0xf]
        %v5540 = vunpack.c.l.b16 %v5444
        %v5541 = vunpack.c.l.b16 %v5445
        %v5542 = vunpack.c.l.b16 %v5446
        %v5543 = vunpack.c.l.b16 %v5447
        %v5544 = vunpack.c.l.b16 %v5448
        %v5545 = vunpack.c.l.b16 %v5449
        %v5546 = vunpack.c.l.b16 %v5450
        %v5547 = vunpack.c.l.b16 %v5451
        %v5548 = vunpack.c.l.b16 %v5452
        %v5549 = vunpack.c.l.b16 %v5453
        %v5550 = vunpack.c.l.b16 %v5454
        %v5551 = vunpack.c.l.b16 %v5455
        %v5552 = vunpack.c.l.b16 %v5456
        %v5553 = vunpack.c.l.b16 %v5457
        %v5554 = vunpack.c.l.b16 %v5458
        %v5555 = vunpack.c.l.b16 %v5459
        %v5556 = vunpack.c.l.b16 %v5460
        %v5557 = vunpack.c.l.b16 %v5461
        %v5558 = vunpack.c.l.b16 %v5462
        %v5559 = vunpack.c.l.b16 %v5463
        %v5560 = vunpack.c.l.b16 %v5464
        %v5561 = vunpack.c.l.b16 %v5465
        %v5562 = vunpack.c.l.b16 %v5466
        %v5563 = vunpack.c.l.b16 %v5467
        %v5564 = vunpack.c.l.b16 %v5468
        %v5565 = vunpack.c.l.b16 %v5469
        %v5566 = vunpack.c.l.b16 %v5470
        %v5567 = vunpack.c.l.b16 %v5471
        %v5568 = vunpack.c.l.b16 %v5472
        %v5569 = vunpack.c.l.b16 %v5473
        %v5570 = vunpack.c.l.b16 %v5474
        %v5571 = vunpack.c.l.b16 %v5475
        %v5572 = vunpack.c.l.b16 %v5476
        %v5573 = vunpack.c.l.b16 %v5477
        %v5574 = vunpack.c.l.b16 %v5478
        %v5575 = vunpack.c.l.b16 %v5479
        %v5576 = vunpack.c.l.b16 %v5480
        %v5577 = vunpack.c.l.b16 %v5481
        %v5578 = vunpack.c.l.b16 %v5482
        %v5579 = vunpack.c.l.b16 %v5483
        %v5580 = vunpack.c.l.b16 %v5484
        %v5581 = vunpack.c.l.b16 %v5485
        %v5582 = vunpack.c.l.b16 %v5486
        %v5583 = vunpack.c.l.b16 %v5487
        %v5584 = vunpack.c.l.b16 %v5488
        %v5585 = vunpack.c.l.b16 %v5489
        %v5586 = vunpack.c.l.b16 %v5490
        %v5587 = vunpack.c.l.b16 %v5491
        %v5588 = vpack.c.b16 %v5541, %v5540
        %v5589 = vpack.c.b16 %v5543, %v5542
        %v5590 = vpack.c.b16 %v5545, %v5544
        %v5591 = vpack.c.b16 %v5547, %v5546
        %v5592 = vpack.c.b16 %v5549, %v5548
        %v5593 = vpack.c.b16 %v5551, %v5550
        %v5594 = vpack.c.b16 %v5553, %v5552
        %v5595 = vpack.c.b16 %v5555, %v5554
        %v5596 = vpack.c.b16 %v5557, %v5556
        %v5597 = vpack.c.b16 %v5559, %v5558
        %v5598 = vpack.c.b16 %v5561, %v5560
        %v5599 = vpack.c.b16 %v5563, %v5562
        %v5600 = vpack.c.b16 %v5565, %v5564
        %v5601 = vpack.c.b16 %v5567, %v5566
        %v5602 = vpack.c.b16 %v5569, %v5568
        %v5603 = vpack.c.b16 %v5571, %v5570
        %v5604 = vpack.c.b16 %v5573, %v5572
        %v5605 = vpack.c.b16 %v5575, %v5574
        %v5606 = vpack.c.b16 %v5577, %v5576
        %v5607 = vpack.c.b16 %v5579, %v5578
        %v5608 = vpack.c.b16 %v5581, %v5580
        %v5609 = vpack.c.b16 %v5583, %v5582
        %v5610 = vpack.c.b16 %v5585, %v5584
        %v5611 = vpack.c.b16 %v5587, %v5586
        %5636 = vmatpush.bf16.msra.mxu0 %v5595
        %5637 = vmatpush.bf16.msra.mxu0 %v5594
        %5638 = vmatpush.bf16.msra.mxu0 %v5593
        %5639 = vmatpush.bf16.msra.mxu0 %v5592
        %5640 = vmatpush.bf16.msra.mxu0 %v5591
        %5641 = vmatpush.bf16.msra.mxu0 %v5590
        %5642 = vmatpush.bf16.msra.mxu0 %v5589
        %5643 = vmatpush.bf16.msra.mxu0 %v5588
        %5644 = vmatmul.bf16.gmra.mxu0 %v5208
        %v5645 = vpop.f32.mrf.mxu0
        %v5646 = vadd.f32 0.0, %v5645
        %v5647 = vpop.f32.mrf.mxu0
        %v5648 = vadd.f32 0.0, %v5647
        %5649 = vmatmul.bf16.gmra.mxu0 %v5209
        %v5650 = vpop.f32.mrf.mxu0
        %v5651 = vadd.f32 0.0, %v5650
        %v5652 = vpop.f32.mrf.mxu0
        %v5653 = vadd.f32 0.0, %v5652
        %5654 = vmatmul.bf16.gmra.mxu0 %v5210
        %v5655 = vpop.f32.mrf.mxu0
        %v5656 = vadd.f32 0.0, %v5655
        %v5657 = vpop.f32.mrf.mxu0
        %v5658 = vadd.f32 0.0, %v5657
        %5659 = vmatmul.bf16.gmra.mxu0 %v5211
        %v5660 = vpop.f32.mrf.mxu0
        %v5661 = vadd.f32 0.0, %v5660
        %v5662 = vpop.f32.mrf.mxu0
        %v5663 = vadd.f32 0.0, %v5662
        %5664 = vmatmul.bf16.gmra.mxu0 %v5212
        %v5665 = vpop.f32.mrf.mxu0
        %v5666 = vadd.f32 0.0, %v5665
        %v5667 = vpop.f32.mrf.mxu0
        %v5668 = vadd.f32 0.0, %v5667
        %5669 = vmatmul.bf16.gmra.mxu0 %v5213
        %v5670 = vpop.f32.mrf.mxu0
        %v5671 = vadd.f32 0.0, %v5670
        %v5672 = vpop.f32.mrf.mxu0
        %v5673 = vadd.f32 0.0, %v5672
        %5674 = vmatmul.bf16.gmra.mxu0 %v5214
        %v5675 = vpop.f32.mrf.mxu0
        %v5676 = vadd.f32 0.0, %v5675
        %v5677 = vpop.f32.mrf.mxu0
        %v5678 = vadd.f32 0.0, %v5677
        %5679 = vmatmul.bf16.gmra.mxu0 %v5215
        %v5680 = vpop.f32.mrf.mxu0
        %v5681 = vadd.f32 0.0, %v5680
        %v5682 = vpop.f32.mrf.mxu0
        %v5683 = vadd.f32 0.0, %v5682
        %5684 = vmatmul.bf16.gmra.mxu0 %v5216
        %v5685 = vpop.f32.mrf.mxu0
        %v5686 = vadd.f32 0.0, %v5685
        %v5687 = vpop.f32.mrf.mxu0
        %v5688 = vadd.f32 0.0, %v5687
        %5689 = vmatmul.bf16.gmra.mxu0 %v5217
        %v5690 = vpop.f32.mrf.mxu0
        %v5691 = vadd.f32 0.0, %v5690
        %v5692 = vpop.f32.mrf.mxu0
        %v5693 = vadd.f32 0.0, %v5692
        %5694 = vmatmul.bf16.gmra.mxu0 %v5218
        %v5695 = vpop.f32.mrf.mxu0
        %v5696 = vadd.f32 0.0, %v5695
        %v5697 = vpop.f32.mrf.mxu0
        %v5698 = vadd.f32 0.0, %v5697
        %5699 = vmatmul.bf16.gmra.mxu0 %v5219
        %v5700 = vpop.f32.mrf.mxu0
        %v5701 = vadd.f32 0.0, %v5700
        %v5702 = vpop.f32.mrf.mxu0
        %v5703 = vadd.f32 0.0, %v5702
        %5704 = vmatmul.bf16.gmra.mxu0 %v5220
        %v5705 = vpop.f32.mrf.mxu0
        %v5706 = vadd.f32 0.0, %v5705
        %v5707 = vpop.f32.mrf.mxu0
        %v5708 = vadd.f32 0.0, %v5707
        %5709 = vmatmul.bf16.gmra.mxu0 %v5221
        %v5710 = vpop.f32.mrf.mxu0
        %v5711 = vadd.f32 0.0, %v5710
        %v5712 = vpop.f32.mrf.mxu0
        %v5713 = vadd.f32 0.0, %v5712
        %5714 = vmatmul.bf16.gmra.mxu0 %v5222
        %v5715 = vpop.f32.mrf.mxu0
        %v5716 = vadd.f32 0.0, %v5715
        %v5717 = vpop.f32.mrf.mxu0
        %v5718 = vadd.f32 0.0, %v5717
        %5719 = vmatmul.bf16.gmra.mxu0 %v5223
        %v5720 = vpop.f32.mrf.mxu0
        %v5721 = vadd.f32 0.0, %v5720
        %v5722 = vpop.f32.mrf.mxu0
        %v5723 = vadd.f32 0.0, %v5722
        %5724 = vdwg.mxu0
        %5725 = vmatpush.bf16.msra.mxu0 %v5603
        %5726 = vmatpush.bf16.msra.mxu0 %v5602
        %5727 = vmatpush.bf16.msra.mxu0 %v5601
        %5728 = vmatpush.bf16.msra.mxu0 %v5600
        %5729 = vmatpush.bf16.msra.mxu0 %v5599
        %5730 = vmatpush.bf16.msra.mxu0 %v5598
        %5731 = vmatpush.bf16.msra.mxu0 %v5597
        %5732 = vmatpush.bf16.msra.mxu0 %v5596
        %5733 = vmatmul.bf16.gmra.mxu0 %v5254
        %v5734 = vpop.f32.mrf.mxu0
        %v5735 = vadd.f32 %v5646, %v5734
        %v5736 = vpop.f32.mrf.mxu0
        %v5737 = vadd.f32 %v5648, %v5736
        %5738 = vmatmul.bf16.gmra.mxu0 %v5262
        %v5739 = vpop.f32.mrf.mxu0
        %v5740 = vadd.f32 %v5651, %v5739
        %v5741 = vpop.f32.mrf.mxu0
        %v5742 = vadd.f32 %v5653, %v5741
        %5743 = vmatmul.bf16.gmra.mxu0 %v5270
        %v5744 = vpop.f32.mrf.mxu0
        %v5745 = vadd.f32 %v5656, %v5744
        %v5746 = vpop.f32.mrf.mxu0
        %v5747 = vadd.f32 %v5658, %v5746
        %5748 = vmatmul.bf16.gmra.mxu0 %v5278
        %v5749 = vpop.f32.mrf.mxu0
        %v5750 = vadd.f32 %v5661, %v5749
        %v5751 = vpop.f32.mrf.mxu0
        %v5752 = vadd.f32 %v5663, %v5751
        %5753 = vmatmul.bf16.gmra.mxu0 %v5286
        %v5754 = vpop.f32.mrf.mxu0
        %v5755 = vadd.f32 %v5666, %v5754
        %v5756 = vpop.f32.mrf.mxu0
        %v5757 = vadd.f32 %v5668, %v5756
        %5758 = vmatmul.bf16.gmra.mxu0 %v5294
        %v5759 = vpop.f32.mrf.mxu0
        %v5760 = vadd.f32 %v5671, %v5759
        %v5761 = vpop.f32.mrf.mxu0
        %v5762 = vadd.f32 %v5673, %v5761
        %5763 = vmatmul.bf16.gmra.mxu0 %v5302
        %v5764 = vpop.f32.mrf.mxu0
        %v5765 = vadd.f32 %v5676, %v5764
        %v5766 = vpop.f32.mrf.mxu0
        %v5767 = vadd.f32 %v5678, %v5766
        %5768 = vmatmul.bf16.gmra.mxu0 %v5310
        %v5769 = vpop.f32.mrf.mxu0
        %v5770 = vadd.f32 %v5681, %v5769
        %v5771 = vpop.f32.mrf.mxu0
        %v5772 = vadd.f32 %v5683, %v5771
        %5773 = vmatmul.bf16.gmra.mxu0 %v5318
        %v5774 = vpop.f32.mrf.mxu0
        %v5775 = vadd.f32 %v5686, %v5774
        %v5776 = vpop.f32.mrf.mxu0
        %v5777 = vadd.f32 %v5688, %v5776
        %5778 = vmatmul.bf16.gmra.mxu0 %v5326
        %v5779 = vpop.f32.mrf.mxu0
        %v5780 = vadd.f32 %v5691, %v5779
        %v5781 = vpop.f32.mrf.mxu0
        %v5782 = vadd.f32 %v5693, %v5781
        %5783 = vmatmul.bf16.gmra.mxu0 %v5334
        %v5784 = vpop.f32.mrf.mxu0
        %v5785 = vadd.f32 %v5696, %v5784
        %v5786 = vpop.f32.mrf.mxu0
        %v5787 = vadd.f32 %v5698, %v5786
        %5788 = vmatmul.bf16.gmra.mxu0 %v5342
        %v5789 = vpop.f32.mrf.mxu0
        %v5790 = vadd.f32 %v5701, %v5789
        %v5791 = vpop.f32.mrf.mxu0
        %v5792 = vadd.f32 %v5703, %v5791
        %5793 = vmatmul.bf16.gmra.mxu0 %v5350
        %v5794 = vpop.f32.mrf.mxu0
        %v5795 = vadd.f32 %v5706, %v5794
        %v5796 = vpop.f32.mrf.mxu0
        %v5797 = vadd.f32 %v5708, %v5796
        %5798 = vmatmul.bf16.gmra.mxu0 %v5358
        %v5799 = vpop.f32.mrf.mxu0
        %v5800 = vadd.f32 %v5711, %v5799
        %v5801 = vpop.f32.mrf.mxu0
        %v5802 = vadd.f32 %v5713, %v5801
        %5803 = vmatmul.bf16.gmra.mxu0 %v5366
        %v5804 = vpop.f32.mrf.mxu0
        %v5805 = vadd.f32 %v5716, %v5804
        %v5806 = vpop.f32.mrf.mxu0
        %v5807 = vadd.f32 %v5718, %v5806
        %5808 = vmatmul.bf16.gmra.mxu0 %v5374
        %v5809 = vpop.f32.mrf.mxu0
        %v5810 = vadd.f32 %v5721, %v5809
        %v5811 = vpop.f32.mrf.mxu0
        %v5812 = vadd.f32 %v5723, %v5811
        %5813 = vdwg.mxu0
        %5814 = vmatpush.bf16.msra.mxu0 %v5611
        %5815 = vmatpush.bf16.msra.mxu0 %v5610
        %5816 = vmatpush.bf16.msra.mxu0 %v5609
        %5817 = vmatpush.bf16.msra.mxu0 %v5608
        %5818 = vmatpush.bf16.msra.mxu0 %v5607
        %5819 = vmatpush.bf16.msra.mxu0 %v5606
        %5820 = vmatpush.bf16.msra.mxu0 %v5605
        %5821 = vmatpush.bf16.msra.mxu0 %v5604
        %5822 = vmatmul.bf16.gmra.mxu0 %v5396
        %v5823 = vpop.f32.mrf.mxu0
        %v5824 = vadd.f32 %v5735, %v5823
        %v5825 = vpop.f32.mrf.mxu0
        %v5826 = vadd.f32 %v5737, %v5825
        %5827 = vmatmul.bf16.gmra.mxu0 %v5398
        %v5828 = vpop.f32.mrf.mxu0
        %v5829 = vadd.f32 %v5740, %v5828
        %v5830 = vpop.f32.mrf.mxu0
        %v5831 = vadd.f32 %v5742, %v5830
        %5832 = vmatmul.bf16.gmra.mxu0 %v5400
        %v5833 = vpop.f32.mrf.mxu0
        %v5834 = vadd.f32 %v5745, %v5833
        %v5835 = vpop.f32.mrf.mxu0
        %v5836 = vadd.f32 %v5747, %v5835
        %5837 = vmatmul.bf16.gmra.mxu0 %v5402
        %v5838 = vpop.f32.mrf.mxu0
        %v5839 = vadd.f32 %v5750, %v5838
        %v5840 = vpop.f32.mrf.mxu0
        %v5841 = vadd.f32 %v5752, %v5840
        %5842 = vmatmul.bf16.gmra.mxu0 %v5404
        %v5843 = vpop.f32.mrf.mxu0
        %v5844 = vadd.f32 %v5755, %v5843
        %v5845 = vpop.f32.mrf.mxu0
        %v5846 = vadd.f32 %v5757, %v5845
        %5847 = vmatmul.bf16.gmra.mxu0 %v5406
        %v5848 = vpop.f32.mrf.mxu0
        %v5849 = vadd.f32 %v5760, %v5848
        %v5850 = vpop.f32.mrf.mxu0
        %v5851 = vadd.f32 %v5762, %v5850
        %5852 = vmatmul.bf16.gmra.mxu0 %v5408
        %v5853 = vpop.f32.mrf.mxu0
        %v5854 = vadd.f32 %v5765, %v5853
        %v5855 = vpop.f32.mrf.mxu0
        %v5856 = vadd.f32 %v5767, %v5855
        %5857 = vmatmul.bf16.gmra.mxu0 %v5410
        %v5858 = vpop.f32.mrf.mxu0
        %v5859 = vadd.f32 %v5770, %v5858
        %v5860 = vpop.f32.mrf.mxu0
        %v5861 = vadd.f32 %v5772, %v5860
        %5862 = vmatmul.bf16.gmra.mxu0 %v5412
        %v5863 = vpop.f32.mrf.mxu0
        %v5864 = vadd.f32 %v5775, %v5863
        %v5865 = vpop.f32.mrf.mxu0
        %v5866 = vadd.f32 %v5777, %v5865
        %5867 = vmatmul.bf16.gmra.mxu0 %v5414
        %v5868 = vpop.f32.mrf.mxu0
        %v5869 = vadd.f32 %v5780, %v5868
        %v5870 = vpop.f32.mrf.mxu0
        %v5871 = vadd.f32 %v5782, %v5870
        %5872 = vmatmul.bf16.gmra.mxu0 %v5416
        %v5873 = vpop.f32.mrf.mxu0
        %v5874 = vadd.f32 %v5785, %v5873
        %v5875 = vpop.f32.mrf.mxu0
        %v5876 = vadd.f32 %v5787, %v5875
        %5877 = vmatmul.bf16.gmra.mxu0 %v5418
        %v5878 = vpop.f32.mrf.mxu0
        %v5879 = vadd.f32 %v5790, %v5878
        %v5880 = vpop.f32.mrf.mxu0
        %v5881 = vadd.f32 %v5792, %v5880
        %5882 = vmatmul.bf16.gmra.mxu0 %v5420
        %v5883 = vpop.f32.mrf.mxu0
        %v5884 = vadd.f32 %v5795, %v5883
        %v5885 = vpop.f32.mrf.mxu0
        %v5886 = vadd.f32 %v5797, %v5885
        %5887 = vmatmul.bf16.gmra.mxu0 %v5422
        %v5888 = vpop.f32.mrf.mxu0
        %v5889 = vadd.f32 %v5800, %v5888
        %v5890 = vpop.f32.mrf.mxu0
        %v5891 = vadd.f32 %v5802, %v5890
        %5892 = vmatmul.bf16.gmra.mxu0 %v5424
        %v5893 = vpop.f32.mrf.mxu0
        %v5894 = vadd.f32 %v5805, %v5893
        %v5895 = vpop.f32.mrf.mxu0
        %v5896 = vadd.f32 %v5807, %v5895
        %5897 = vmatmul.bf16.gmra.mxu0 %v5426
        %v5898 = vpop.f32.mrf.mxu0
        %v5899 = vadd.f32 %v5810, %v5898
        %v5900 = vpop.f32.mrf.mxu0
        %v5901 = vadd.f32 %v5812, %v5900
        %5902 = vdwg.mxu0
        %v5903 = vadd.f32 %v5078, %v5824
        %v5904 = vadd.f32 %v5079, %v5826
        %v5905 = vadd.f32 %v5080, %v5829
        %v5906 = vadd.f32 %v5081, %v5831
        %v5907 = vadd.f32 %v5082, %v5834
        %v5908 = vadd.f32 %v5083, %v5836
        %v5909 = vadd.f32 %v5084, %v5839
        %v5910 = vadd.f32 %v5085, %v5841
        %v5911 = vadd.f32 %v5086, %v5844
        %v5912 = vadd.f32 %v5087, %v5846
        %v5913 = vadd.f32 %v5088, %v5849
        %v5914 = vadd.f32 %v5089, %v5851
        %v5915 = vadd.f32 %v5090, %v5854
        %v5916 = vadd.f32 %v5091, %v5856
        %v5917 = vadd.f32 %v5092, %v5859
        %v5918 = vadd.f32 %v5093, %v5861
        %v5919 = vadd.f32 %v5094, %v5864
        %v5920 = vadd.f32 %v5095, %v5866
        %v5921 = vadd.f32 %v5096, %v5869
        %v5922 = vadd.f32 %v5097, %v5871
        %v5923 = vadd.f32 %v5098, %v5874
        %v5924 = vadd.f32 %v5099, %v5876
        %v5925 = vadd.f32 %v5100, %v5879
        %v5926 = vadd.f32 %v5101, %v5881
        %v5927 = vadd.f32 %v5102, %v5884
        %v5928 = vadd.f32 %v5103, %v5886
        %v5929 = vadd.f32 %v5104, %v5889
        %v5930 = vadd.f32 %v5105, %v5891
        %v5931 = vadd.f32 %v5106, %v5894
        %v5932 = vadd.f32 %v5107, %v5896
        %v5933 = vadd.f32 %v5108, %v5899
        %v5934 = vadd.f32 %v5109, %v5901
        %v5935 = vld [vmem:[#allocation2 + $0x20] sm:$0xf]
        %v5936 = vld [vmem:[#allocation2 + $0x24] sm:$0xf]
        %v5937 = vld [vmem:[#allocation2 + $0x28] sm:$0xf]
        %v5938 = vld [vmem:[#allocation2 + $0x2c] sm:$0xf]
        %v5939 = vld [vmem:[#allocation2 + $0x30] sm:$0xf]
        %v5940 = vld [vmem:[#allocation2 + $0x34] sm:$0xf]
        %v5941 = vld [vmem:[#allocation2 + $0x38] sm:$0xf]
        %v5942 = vld [vmem:[#allocation2 + $0x3c] sm:$0xf]
        %v5943 = vld [vmem:[#allocation2 + $0x40] sm:$0xf]
        %v5944 = vld [vmem:[#allocation2 + $0x44] sm:$0xf]
        %v5945 = vld [vmem:[#allocation2 + $0x48] sm:$0xf]
        %v5946 = vld [vmem:[#allocation2 + $0x4c] sm:$0xf]
        %v5947 = vld [vmem:[#allocation2 + $0x50] sm:$0xf]
        %v5948 = vld [vmem:[#allocation2 + $0x54] sm:$0xf]
        %v5949 = vld [vmem:[#allocation2 + $0x58] sm:$0xf]
        %v5950 = vld [vmem:[#allocation2 + $0x5c] sm:$0xf]
        %v5951 = vld [vmem:[#allocation2 + $0x60] sm:$0xf]
        %v5952 = vld [vmem:[#allocation2 + $0x64] sm:$0xf]
        %v5953 = vld [vmem:[#allocation2 + $0x68] sm:$0xf]
        %v5954 = vld [vmem:[#allocation2 + $0x6c] sm:$0xf]
        %v5955 = vld [vmem:[#allocation2 + $0x70] sm:$0xf]
        %v5956 = vld [vmem:[#allocation2 + $0x74] sm:$0xf]
        %v5957 = vld [vmem:[#allocation2 + $0x78] sm:$0xf]
        %v5958 = vld [vmem:[#allocation2 + $0x7c] sm:$0xf]
        %v5959 = vld [vmem:[#allocation2 + $0x80] sm:$0xf]
        %v5960 = vld [vmem:[#allocation2 + $0x84] sm:$0xf]
        %v5961 = vld [vmem:[#allocation2 + $0x88] sm:$0xf]
        %v5962 = vld [vmem:[#allocation2 + $0x8c] sm:$0xf]
        %v5963 = vld [vmem:[#allocation2 + $0x90] sm:$0xf]
        %v5964 = vld [vmem:[#allocation2 + $0x94] sm:$0xf]
        %v5965 = vld [vmem:[#allocation2 + $0x98] sm:$0xf]
        %v5966 = vld [vmem:[#allocation2 + $0x9c] sm:$0xf]
        %v5967 = vld [vmem:[#allocation2 + $0xa0] sm:$0x1]
        %v5968 = vld [vmem:[#allocation2 + $0x20] sm:$0xe]
        %v6001 = vunpack.c.l.b16 %v5935
        %v6002 = vunpack.c.l.b16 %v5936
        %v6003 = vunpack.c.l.b16 %v5937
        %v6004 = vunpack.c.l.b16 %v5938
        %v6005 = vunpack.c.l.b16 %v5939
        %v6006 = vunpack.c.l.b16 %v5940
        %v6007 = vunpack.c.l.b16 %v5941
        %v6008 = vunpack.c.l.b16 %v5942
        %v6009 = vunpack.c.l.b16 %v5943
        %v6010 = vunpack.c.l.b16 %v5944
        %v6011 = vunpack.c.l.b16 %v5945
        %v6012 = vunpack.c.l.b16 %v5946
        %v6013 = vunpack.c.l.b16 %v5947
        %v6014 = vunpack.c.l.b16 %v5948
        %v6015 = vunpack.c.l.b16 %v5949
        %v6016 = vunpack.c.l.b16 %v5950
        %v6017 = vunpack.c.l.b16 %v5951
        %v6018 = vunpack.c.l.b16 %v5952
        %v6019 = vunpack.c.l.b16 %v5953
        %v6020 = vunpack.c.l.b16 %v5954
        %v6021 = vunpack.c.l.b16 %v5955
        %v6022 = vunpack.c.l.b16 %v5956
        %v6023 = vunpack.c.l.b16 %v5957
        %v6024 = vunpack.c.l.b16 %v5958
        %v6025 = vunpack.c.l.b16 %v5959
        %v6026 = vunpack.c.l.b16 %v5960
        %v6027 = vunpack.c.l.b16 %v5961
        %v6028 = vunpack.c.l.b16 %v5962
        %v6029 = vunpack.c.l.b16 %v5963
        %v6030 = vunpack.c.l.b16 %v5964
        %v6031 = vunpack.c.l.b16 %v5965
        %v6032 = vunpack.c.l.b16 %v5966
        %v6033 = vpack.c.b16 %v6002, %v6001
        %v6034 = vpack.c.b16 %v6004, %v6003
        %v6035 = vpack.c.b16 %v6006, %v6005
        %v6036 = vpack.c.b16 %v6008, %v6007
        %v6037 = vpack.c.b16 %v6010, %v6009
        %v6038 = vpack.c.b16 %v6012, %v6011
        %v6039 = vpack.c.b16 %v6014, %v6013
        %v6040 = vpack.c.b16 %v6016, %v6015
        %v6041 = vpack.c.b16 %v6018, %v6017
        %v6042 = vpack.c.b16 %v6020, %v6019
        %v6043 = vpack.c.b16 %v6022, %v6021
        %v6044 = vpack.c.b16 %v6024, %v6023
        %v6045 = vpack.c.b16 %v6026, %v6025
        %v6046 = vpack.c.b16 %v6028, %v6027
        %v6047 = vpack.c.b16 %v6030, %v6029
        %v6048 = vpack.c.b16 %v6032, %v6031
        %v6066 = vunpack.c.l.b16 %v5967
        %v6067 = vpack.c.b16 %v6066, %v6066
        %v6069 = vshrl.u32 %v6033, 16
        %v6071 = vshll.u32 %v6033, 16
        %v6073 = vrot.slane %v6071, 1
        %v6074 = vor.u32 %v6069, %v6073
        %v6076 = vshll.u32 %v6034, 16
        %v6078 = vrot.slane %v6076, 1
        %v6079 = vsel %vm536, %v6074, %v6078
        %v6080 = vshrl.u32 %v6034, 16
        %v6082 = vor.u32 %v6080, %v6078
        %v6084 = vshll.u32 %v6035, 16
        %v6086 = vrot.slane %v6084, 1
        %v6087 = vsel %vm536, %v6082, %v6086
        %v6088 = vshrl.u32 %v6035, 16
        %v6090 = vor.u32 %v6088, %v6086
        %v6092 = vshll.u32 %v6036, 16
        %v6094 = vrot.slane %v6092, 1
        %v6095 = vsel %vm536, %v6090, %v6094
        %v6096 = vshrl.u32 %v6036, 16
        %v6098 = vor.u32 %v6096, %v6094
        %v6100 = vshll.u32 %v6037, 16
        %v6102 = vrot.slane %v6100, 1
        %v6103 = vsel %vm536, %v6098, %v6102
        %v6104 = vshrl.u32 %v6037, 16
        %v6106 = vor.u32 %v6104, %v6102
        %v6108 = vshll.u32 %v6038, 16
        %v6110 = vrot.slane %v6108, 1
        %v6111 = vsel %vm536, %v6106, %v6110
        %v6112 = vshrl.u32 %v6038, 16
        %v6114 = vor.u32 %v6112, %v6110
        %v6116 = vshll.u32 %v6039, 16
        %v6118 = vrot.slane %v6116, 1
        %v6119 = vsel %vm536, %v6114, %v6118
        %v6120 = vshrl.u32 %v6039, 16
        %v6122 = vor.u32 %v6120, %v6118
        %v6124 = vshll.u32 %v6040, 16
        %v6126 = vrot.slane %v6124, 1
        %v6127 = vsel %vm536, %v6122, %v6126
        %v6128 = vshrl.u32 %v6040, 16
        %v6130 = vor.u32 %v6128, %v6126
        %v6132 = vshll.u32 %v6041, 16
        %v6134 = vrot.slane %v6132, 1
        %v6135 = vsel %vm536, %v6130, %v6134
        %v6136 = vshrl.u32 %v6041, 16
        %v6138 = vor.u32 %v6136, %v6134
        %v6140 = vshll.u32 %v6042, 16
        %v6142 = vrot.slane %v6140, 1
        %v6143 = vsel %vm536, %v6138, %v6142
        %v6144 = vshrl.u32 %v6042, 16
        %v6146 = vor.u32 %v6144, %v6142
        %v6148 = vshll.u32 %v6043, 16
        %v6150 = vrot.slane %v6148, 1
        %v6151 = vsel %vm536, %v6146, %v6150
        %v6152 = vshrl.u32 %v6043, 16
        %v6154 = vor.u32 %v6152, %v6150
        %v6156 = vshll.u32 %v6044, 16
        %v6158 = vrot.slane %v6156, 1
        %v6159 = vsel %vm536, %v6154, %v6158
        %v6160 = vshrl.u32 %v6044, 16
        %v6162 = vor.u32 %v6160, %v6158
        %v6164 = vshll.u32 %v6045, 16
        %v6166 = vrot.slane %v6164, 1
        %v6167 = vsel %vm536, %v6162, %v6166
        %v6168 = vshrl.u32 %v6045, 16
        %v6170 = vor.u32 %v6168, %v6166
        %v6172 = vshll.u32 %v6046, 16
        %v6174 = vrot.slane %v6172, 1
        %v6175 = vsel %vm536, %v6170, %v6174
        %v6176 = vshrl.u32 %v6046, 16
        %v6178 = vor.u32 %v6176, %v6174
        %v6180 = vshll.u32 %v6047, 16
        %v6182 = vrot.slane %v6180, 1
        %v6183 = vsel %vm536, %v6178, %v6182
        %v6184 = vshrl.u32 %v6047, 16
        %v6186 = vor.u32 %v6184, %v6182
        %v6188 = vshll.u32 %v6048, 16
        %v6190 = vrot.slane %v6188, 1
        %v6191 = vsel %vm536, %v6186, %v6190
        %v6192 = vshrl.u32 %v6048, 16
        %v6194 = vor.u32 %v6192, %v6190
        %v6196 = vshll.u32 %v6067, 16
        %v6198 = vrot.slane %v6196, 1
        %v6199 = vsel %vm536, %v6194, %v6198
        %v6217 = vunpack.c.l.b16 %v5968
        %v6218 = vpack.c.b16 %v6002, %v6217
        %v6219 = vrot.slane %v6218, 1
        %v6220 = vrot.slane %v6034, 1
        %v6221 = vsel %vm724, %v6219, %v6220
        %v6222 = vrot.slane %v6035, 1
        %v6223 = vsel %vm724, %v6220, %v6222
        %v6224 = vrot.slane %v6036, 1
        %v6225 = vsel %vm724, %v6222, %v6224
        %v6226 = vrot.slane %v6037, 1
        %v6227 = vsel %vm724, %v6224, %v6226
        %v6228 = vrot.slane %v6038, 1
        %v6229 = vsel %vm724, %v6226, %v6228
        %v6230 = vrot.slane %v6039, 1
        %v6231 = vsel %vm724, %v6228, %v6230
        %v6232 = vrot.slane %v6040, 1
        %v6233 = vsel %vm724, %v6230, %v6232
        %v6234 = vrot.slane %v6041, 1
        %v6235 = vsel %vm724, %v6232, %v6234
        %v6236 = vrot.slane %v6042, 1
        %v6237 = vsel %vm724, %v6234, %v6236
        %v6238 = vrot.slane %v6043, 1
        %v6239 = vsel %vm724, %v6236, %v6238
        %v6240 = vrot.slane %v6044, 1
        %v6241 = vsel %vm724, %v6238, %v6240
        %v6242 = vrot.slane %v6045, 1
        %v6243 = vsel %vm724, %v6240, %v6242
        %v6244 = vrot.slane %v6046, 1
        %v6245 = vsel %vm724, %v6242, %v6244
        %v6246 = vrot.slane %v6047, 1
        %v6247 = vsel %vm724, %v6244, %v6246
        %v6248 = vrot.slane %v6048, 1
        %v6249 = vsel %vm724, %v6246, %v6248
        %v6250 = vrot.slane %v6067, 1
        %v6251 = vsel %vm724, %v6248, %v6250
        %s6268 = scalar_lea.vmem [#allocation8], 384
        %v6269 = vld [vmem:[%s6268] sm:$0xf]
        %v6270 = vld [vmem:[%s6268 + $0x4] sm:$0xf]
        %v6271 = vld [vmem:[%s6268 + $0x8] sm:$0xf]
        %v6272 = vld [vmem:[%s6268 + $0xc] sm:$0xf]
        %v6273 = vld [vmem:[%s6268 + $0x10] sm:$0xf]
        %v6274 = vld [vmem:[%s6268 + $0x14] sm:$0xf]
        %v6275 = vld [vmem:[%s6268 + $0x18] sm:$0xf]
        %v6276 = vld [vmem:[%s6268 + $0x1c] sm:$0xf]
        %v6277 = vld [vmem:[%s6268 + $0x20] sm:$0xf]
        %v6278 = vld [vmem:[%s6268 + $0x24] sm:$0xf]
        %v6279 = vld [vmem:[%s6268 + $0x28] sm:$0xf]
        %v6280 = vld [vmem:[%s6268 + $0x2c] sm:$0xf]
        %v6281 = vld [vmem:[%s6268 + $0x30] sm:$0xf]
        %v6282 = vld [vmem:[%s6268 + $0x34] sm:$0xf]
        %v6283 = vld [vmem:[%s6268 + $0x38] sm:$0xf]
        %v6284 = vld [vmem:[%s6268 + $0x3c] sm:$0xf]
        %v6285 = vld [vmem:[%s6268 + $0x40] sm:$0xf]
        %v6286 = vld [vmem:[%s6268 + $0x44] sm:$0xf]
        %v6287 = vld [vmem:[%s6268 + $0x48] sm:$0xf]
        %v6288 = vld [vmem:[%s6268 + $0x4c] sm:$0xf]
        %v6289 = vld [vmem:[%s6268 + $0x50] sm:$0xf]
        %v6290 = vld [vmem:[%s6268 + $0x54] sm:$0xf]
        %v6291 = vld [vmem:[%s6268 + $0x58] sm:$0xf]
        %v6292 = vld [vmem:[%s6268 + $0x5c] sm:$0xf]
        %v6293 = vld [vmem:[%s6268 + $0x60] sm:$0xf]
        %v6294 = vld [vmem:[%s6268 + $0x64] sm:$0xf]
        %v6295 = vld [vmem:[%s6268 + $0x68] sm:$0xf]
        %v6296 = vld [vmem:[%s6268 + $0x6c] sm:$0xf]
        %v6297 = vld [vmem:[%s6268 + $0x70] sm:$0xf]
        %v6298 = vld [vmem:[%s6268 + $0x74] sm:$0xf]
        %v6299 = vld [vmem:[%s6268 + $0x78] sm:$0xf]
        %v6300 = vld [vmem:[%s6268 + $0x7c] sm:$0xf]
        %v6301 = vld [vmem:[%s6268 + $0x80] sm:$0xf]
        %v6302 = vld [vmem:[%s6268 + $0x84] sm:$0xf]
        %v6303 = vld [vmem:[%s6268 + $0x88] sm:$0xf]
        %v6304 = vld [vmem:[%s6268 + $0x8c] sm:$0xf]
        %v6305 = vld [vmem:[%s6268 + $0x90] sm:$0xf]
        %v6306 = vld [vmem:[%s6268 + $0x94] sm:$0xf]
        %v6307 = vld [vmem:[%s6268 + $0x98] sm:$0xf]
        %v6308 = vld [vmem:[%s6268 + $0x9c] sm:$0xf]
        %v6309 = vld [vmem:[%s6268 + $0xa0] sm:$0xf]
        %v6310 = vld [vmem:[%s6268 + $0xa4] sm:$0xf]
        %v6311 = vld [vmem:[%s6268 + $0xa8] sm:$0xf]
        %v6312 = vld [vmem:[%s6268 + $0xac] sm:$0xf]
        %v6313 = vld [vmem:[%s6268 + $0xb0] sm:$0xf]
        %v6314 = vld [vmem:[%s6268 + $0xb4] sm:$0xf]
        %v6315 = vld [vmem:[%s6268 + $0xb8] sm:$0xf]
        %v6316 = vld [vmem:[%s6268 + $0xbc] sm:$0xf]
        %v6365 = vunpack.c.l.b16 %v6269
        %v6366 = vunpack.c.l.b16 %v6270
        %v6367 = vunpack.c.l.b16 %v6271
        %v6368 = vunpack.c.l.b16 %v6272
        %v6369 = vunpack.c.l.b16 %v6273
        %v6370 = vunpack.c.l.b16 %v6274
        %v6371 = vunpack.c.l.b16 %v6275
        %v6372 = vunpack.c.l.b16 %v6276
        %v6373 = vunpack.c.l.b16 %v6277
        %v6374 = vunpack.c.l.b16 %v6278
        %v6375 = vunpack.c.l.b16 %v6279
        %v6376 = vunpack.c.l.b16 %v6280
        %v6377 = vunpack.c.l.b16 %v6281
        %v6378 = vunpack.c.l.b16 %v6282
        %v6379 = vunpack.c.l.b16 %v6283
        %v6380 = vunpack.c.l.b16 %v6284
        %v6381 = vunpack.c.l.b16 %v6285
        %v6382 = vunpack.c.l.b16 %v6286
        %v6383 = vunpack.c.l.b16 %v6287
        %v6384 = vunpack.c.l.b16 %v6288
        %v6385 = vunpack.c.l.b16 %v6289
        %v6386 = vunpack.c.l.b16 %v6290
        %v6387 = vunpack.c.l.b16 %v6291
        %v6388 = vunpack.c.l.b16 %v6292
        %v6389 = vunpack.c.l.b16 %v6293
        %v6390 = vunpack.c.l.b16 %v6294
        %v6391 = vunpack.c.l.b16 %v6295
        %v6392 = vunpack.c.l.b16 %v6296
        %v6393 = vunpack.c.l.b16 %v6297
        %v6394 = vunpack.c.l.b16 %v6298
        %v6395 = vunpack.c.l.b16 %v6299
        %v6396 = vunpack.c.l.b16 %v6300
        %v6397 = vunpack.c.l.b16 %v6301
        %v6398 = vunpack.c.l.b16 %v6302
        %v6399 = vunpack.c.l.b16 %v6303
        %v6400 = vunpack.c.l.b16 %v6304
        %v6401 = vunpack.c.l.b16 %v6305
        %v6402 = vunpack.c.l.b16 %v6306
        %v6403 = vunpack.c.l.b16 %v6307
        %v6404 = vunpack.c.l.b16 %v6308
        %v6405 = vunpack.c.l.b16 %v6309
        %v6406 = vunpack.c.l.b16 %v6310
        %v6407 = vunpack.c.l.b16 %v6311
        %v6408 = vunpack.c.l.b16 %v6312
        %v6409 = vunpack.c.l.b16 %v6313
        %v6410 = vunpack.c.l.b16 %v6314
        %v6411 = vunpack.c.l.b16 %v6315
        %v6412 = vunpack.c.l.b16 %v6316
        %v6413 = vpack.c.b16 %v6366, %v6365
        %v6414 = vpack.c.b16 %v6368, %v6367
        %v6415 = vpack.c.b16 %v6370, %v6369
        %v6416 = vpack.c.b16 %v6372, %v6371
        %v6417 = vpack.c.b16 %v6374, %v6373
        %v6418 = vpack.c.b16 %v6376, %v6375
        %v6419 = vpack.c.b16 %v6378, %v6377
        %v6420 = vpack.c.b16 %v6380, %v6379
        %v6421 = vpack.c.b16 %v6382, %v6381
        %v6422 = vpack.c.b16 %v6384, %v6383
        %v6423 = vpack.c.b16 %v6386, %v6385
        %v6424 = vpack.c.b16 %v6388, %v6387
        %v6425 = vpack.c.b16 %v6390, %v6389
        %v6426 = vpack.c.b16 %v6392, %v6391
        %v6427 = vpack.c.b16 %v6394, %v6393
        %v6428 = vpack.c.b16 %v6396, %v6395
        %v6429 = vpack.c.b16 %v6398, %v6397
        %v6430 = vpack.c.b16 %v6400, %v6399
        %v6431 = vpack.c.b16 %v6402, %v6401
        %v6432 = vpack.c.b16 %v6404, %v6403
        %v6433 = vpack.c.b16 %v6406, %v6405
        %v6434 = vpack.c.b16 %v6408, %v6407
        %v6435 = vpack.c.b16 %v6410, %v6409
        %v6436 = vpack.c.b16 %v6412, %v6411
        %6461 = vmatpush.bf16.msra.mxu0 %v6420
        %6462 = vmatpush.bf16.msra.mxu0 %v6419
        %6463 = vmatpush.bf16.msra.mxu0 %v6418
        %6464 = vmatpush.bf16.msra.mxu0 %v6417
        %6465 = vmatpush.bf16.msra.mxu0 %v6416
        %6466 = vmatpush.bf16.msra.mxu0 %v6415
        %6467 = vmatpush.bf16.msra.mxu0 %v6414
        %6468 = vmatpush.bf16.msra.mxu0 %v6413
        %6469 = vmatmul.bf16.gmra.mxu0 %v6033
        %v6470 = vpop.f32.mrf.mxu0
        %v6471 = vadd.f32 0.0, %v6470
        %v6472 = vpop.f32.mrf.mxu0
        %v6473 = vadd.f32 0.0, %v6472
        %6474 = vmatmul.bf16.gmra.mxu0 %v6034
        %v6475 = vpop.f32.mrf.mxu0
        %v6476 = vadd.f32 0.0, %v6475
        %v6477 = vpop.f32.mrf.mxu0
        %v6478 = vadd.f32 0.0, %v6477
        %6479 = vmatmul.bf16.gmra.mxu0 %v6035
        %v6480 = vpop.f32.mrf.mxu0
        %v6481 = vadd.f32 0.0, %v6480
        %v6482 = vpop.f32.mrf.mxu0
        %v6483 = vadd.f32 0.0, %v6482
        %6484 = vmatmul.bf16.gmra.mxu0 %v6036
        %v6485 = vpop.f32.mrf.mxu0
        %v6486 = vadd.f32 0.0, %v6485
        %v6487 = vpop.f32.mrf.mxu0
        %v6488 = vadd.f32 0.0, %v6487
        %6489 = vmatmul.bf16.gmra.mxu0 %v6037
        %v6490 = vpop.f32.mrf.mxu0
        %v6491 = vadd.f32 0.0, %v6490
        %v6492 = vpop.f32.mrf.mxu0
        %v6493 = vadd.f32 0.0, %v6492
        %6494 = vmatmul.bf16.gmra.mxu0 %v6038
        %v6495 = vpop.f32.mrf.mxu0
        %v6496 = vadd.f32 0.0, %v6495
        %v6497 = vpop.f32.mrf.mxu0
        %v6498 = vadd.f32 0.0, %v6497
        %6499 = vmatmul.bf16.gmra.mxu0 %v6039
        %v6500 = vpop.f32.mrf.mxu0
        %v6501 = vadd.f32 0.0, %v6500
        %v6502 = vpop.f32.mrf.mxu0
        %v6503 = vadd.f32 0.0, %v6502
        %6504 = vmatmul.bf16.gmra.mxu0 %v6040
        %v6505 = vpop.f32.mrf.mxu0
        %v6506 = vadd.f32 0.0, %v6505
        %v6507 = vpop.f32.mrf.mxu0
        %v6508 = vadd.f32 0.0, %v6507
        %6509 = vmatmul.bf16.gmra.mxu0 %v6041
        %v6510 = vpop.f32.mrf.mxu0
        %v6511 = vadd.f32 0.0, %v6510
        %v6512 = vpop.f32.mrf.mxu0
        %v6513 = vadd.f32 0.0, %v6512
        %6514 = vmatmul.bf16.gmra.mxu0 %v6042
        %v6515 = vpop.f32.mrf.mxu0
        %v6516 = vadd.f32 0.0, %v6515
        %v6517 = vpop.f32.mrf.mxu0
        %v6518 = vadd.f32 0.0, %v6517
        %6519 = vmatmul.bf16.gmra.mxu0 %v6043
        %v6520 = vpop.f32.mrf.mxu0
        %v6521 = vadd.f32 0.0, %v6520
        %v6522 = vpop.f32.mrf.mxu0
        %v6523 = vadd.f32 0.0, %v6522
        %6524 = vmatmul.bf16.gmra.mxu0 %v6044
        %v6525 = vpop.f32.mrf.mxu0
        %v6526 = vadd.f32 0.0, %v6525
        %v6527 = vpop.f32.mrf.mxu0
        %v6528 = vadd.f32 0.0, %v6527
        %6529 = vmatmul.bf16.gmra.mxu0 %v6045
        %v6530 = vpop.f32.mrf.mxu0
        %v6531 = vadd.f32 0.0, %v6530
        %v6532 = vpop.f32.mrf.mxu0
        %v6533 = vadd.f32 0.0, %v6532
        %6534 = vmatmul.bf16.gmra.mxu0 %v6046
        %v6535 = vpop.f32.mrf.mxu0
        %v6536 = vadd.f32 0.0, %v6535
        %v6537 = vpop.f32.mrf.mxu0
        %v6538 = vadd.f32 0.0, %v6537
        %6539 = vmatmul.bf16.gmra.mxu0 %v6047
        %v6540 = vpop.f32.mrf.mxu0
        %v6541 = vadd.f32 0.0, %v6540
        %v6542 = vpop.f32.mrf.mxu0
        %v6543 = vadd.f32 0.0, %v6542
        %6544 = vmatmul.bf16.gmra.mxu0 %v6048
        %v6545 = vpop.f32.mrf.mxu0
        %v6546 = vadd.f32 0.0, %v6545
        %v6547 = vpop.f32.mrf.mxu0
        %v6548 = vadd.f32 0.0, %v6547
        %6549 = vdwg.mxu0
        %6550 = vmatpush.bf16.msra.mxu0 %v6428
        %6551 = vmatpush.bf16.msra.mxu0 %v6427
        %6552 = vmatpush.bf16.msra.mxu0 %v6426
        %6553 = vmatpush.bf16.msra.mxu0 %v6425
        %6554 = vmatpush.bf16.msra.mxu0 %v6424
        %6555 = vmatpush.bf16.msra.mxu0 %v6423
        %6556 = vmatpush.bf16.msra.mxu0 %v6422
        %6557 = vmatpush.bf16.msra.mxu0 %v6421
        %6558 = vmatmul.bf16.gmra.mxu0 %v6079
        %v6559 = vpop.f32.mrf.mxu0
        %v6560 = vadd.f32 %v6471, %v6559
        %v6561 = vpop.f32.mrf.mxu0
        %v6562 = vadd.f32 %v6473, %v6561
        %6563 = vmatmul.bf16.gmra.mxu0 %v6087
        %v6564 = vpop.f32.mrf.mxu0
        %v6565 = vadd.f32 %v6476, %v6564
        %v6566 = vpop.f32.mrf.mxu0
        %v6567 = vadd.f32 %v6478, %v6566
        %6568 = vmatmul.bf16.gmra.mxu0 %v6095
        %v6569 = vpop.f32.mrf.mxu0
        %v6570 = vadd.f32 %v6481, %v6569
        %v6571 = vpop.f32.mrf.mxu0
        %v6572 = vadd.f32 %v6483, %v6571
        %6573 = vmatmul.bf16.gmra.mxu0 %v6103
        %v6574 = vpop.f32.mrf.mxu0
        %v6575 = vadd.f32 %v6486, %v6574
        %v6576 = vpop.f32.mrf.mxu0
        %v6577 = vadd.f32 %v6488, %v6576
        %6578 = vmatmul.bf16.gmra.mxu0 %v6111
        %v6579 = vpop.f32.mrf.mxu0
        %v6580 = vadd.f32 %v6491, %v6579
        %v6581 = vpop.f32.mrf.mxu0
        %v6582 = vadd.f32 %v6493, %v6581
        %6583 = vmatmul.bf16.gmra.mxu0 %v6119
        %v6584 = vpop.f32.mrf.mxu0
        %v6585 = vadd.f32 %v6496, %v6584
        %v6586 = vpop.f32.mrf.mxu0
        %v6587 = vadd.f32 %v6498, %v6586
        %6588 = vmatmul.bf16.gmra.mxu0 %v6127
        %v6589 = vpop.f32.mrf.mxu0
        %v6590 = vadd.f32 %v6501, %v6589
        %v6591 = vpop.f32.mrf.mxu0
        %v6592 = vadd.f32 %v6503, %v6591
        %6593 = vmatmul.bf16.gmra.mxu0 %v6135
        %v6594 = vpop.f32.mrf.mxu0
        %v6595 = vadd.f32 %v6506, %v6594
        %v6596 = vpop.f32.mrf.mxu0
        %v6597 = vadd.f32 %v6508, %v6596
        %6598 = vmatmul.bf16.gmra.mxu0 %v6143
        %v6599 = vpop.f32.mrf.mxu0
        %v6600 = vadd.f32 %v6511, %v6599
        %v6601 = vpop.f32.mrf.mxu0
        %v6602 = vadd.f32 %v6513, %v6601
        %6603 = vmatmul.bf16.gmra.mxu0 %v6151
        %v6604 = vpop.f32.mrf.mxu0
        %v6605 = vadd.f32 %v6516, %v6604
        %v6606 = vpop.f32.mrf.mxu0
        %v6607 = vadd.f32 %v6518, %v6606
        %6608 = vmatmul.bf16.gmra.mxu0 %v6159
        %v6609 = vpop.f32.mrf.mxu0
        %v6610 = vadd.f32 %v6521, %v6609
        %v6611 = vpop.f32.mrf.mxu0
        %v6612 = vadd.f32 %v6523, %v6611
        %6613 = vmatmul.bf16.gmra.mxu0 %v6167
        %v6614 = vpop.f32.mrf.mxu0
        %v6615 = vadd.f32 %v6526, %v6614
        %v6616 = vpop.f32.mrf.mxu0
        %v6617 = vadd.f32 %v6528, %v6616
        %6618 = vmatmul.bf16.gmra.mxu0 %v6175
        %v6619 = vpop.f32.mrf.mxu0
        %v6620 = vadd.f32 %v6531, %v6619
        %v6621 = vpop.f32.mrf.mxu0
        %v6622 = vadd.f32 %v6533, %v6621
        %6623 = vmatmul.bf16.gmra.mxu0 %v6183
        %v6624 = vpop.f32.mrf.mxu0
        %v6625 = vadd.f32 %v6536, %v6624
        %v6626 = vpop.f32.mrf.mxu0
        %v6627 = vadd.f32 %v6538, %v6626
        %6628 = vmatmul.bf16.gmra.mxu0 %v6191
        %v6629 = vpop.f32.mrf.mxu0
        %v6630 = vadd.f32 %v6541, %v6629
        %v6631 = vpop.f32.mrf.mxu0
        %v6632 = vadd.f32 %v6543, %v6631
        %6633 = vmatmul.bf16.gmra.mxu0 %v6199
        %v6634 = vpop.f32.mrf.mxu0
        %v6635 = vadd.f32 %v6546, %v6634
        %v6636 = vpop.f32.mrf.mxu0
        %v6637 = vadd.f32 %v6548, %v6636
        %6638 = vdwg.mxu0
        %6639 = vmatpush.bf16.msra.mxu0 %v6436
        %6640 = vmatpush.bf16.msra.mxu0 %v6435
        %6641 = vmatpush.bf16.msra.mxu0 %v6434
        %6642 = vmatpush.bf16.msra.mxu0 %v6433
        %6643 = vmatpush.bf16.msra.mxu0 %v6432
        %6644 = vmatpush.bf16.msra.mxu0 %v6431
        %6645 = vmatpush.bf16.msra.mxu0 %v6430
        %6646 = vmatpush.bf16.msra.mxu0 %v6429
        %6647 = vmatmul.bf16.gmra.mxu0 %v6221
        %v6648 = vpop.f32.mrf.mxu0
        %v6649 = vadd.f32 %v6560, %v6648
        %v6650 = vpop.f32.mrf.mxu0
        %v6651 = vadd.f32 %v6562, %v6650
        %6652 = vmatmul.bf16.gmra.mxu0 %v6223
        %v6653 = vpop.f32.mrf.mxu0
        %v6654 = vadd.f32 %v6565, %v6653
        %v6655 = vpop.f32.mrf.mxu0
        %v6656 = vadd.f32 %v6567, %v6655
        %6657 = vmatmul.bf16.gmra.mxu0 %v6225
        %v6658 = vpop.f32.mrf.mxu0
        %v6659 = vadd.f32 %v6570, %v6658
        %v6660 = vpop.f32.mrf.mxu0
        %v6661 = vadd.f32 %v6572, %v6660
        %6662 = vmatmul.bf16.gmra.mxu0 %v6227
        %v6663 = vpop.f32.mrf.mxu0
        %v6664 = vadd.f32 %v6575, %v6663
        %v6665 = vpop.f32.mrf.mxu0
        %v6666 = vadd.f32 %v6577, %v6665
        %6667 = vmatmul.bf16.gmra.mxu0 %v6229
        %v6668 = vpop.f32.mrf.mxu0
        %v6669 = vadd.f32 %v6580, %v6668
        %v6670 = vpop.f32.mrf.mxu0
        %v6671 = vadd.f32 %v6582, %v6670
        %6672 = vmatmul.bf16.gmra.mxu0 %v6231
        %v6673 = vpop.f32.mrf.mxu0
        %v6674 = vadd.f32 %v6585, %v6673
        %v6675 = vpop.f32.mrf.mxu0
        %v6676 = vadd.f32 %v6587, %v6675
        %6677 = vmatmul.bf16.gmra.mxu0 %v6233
        %v6678 = vpop.f32.mrf.mxu0
        %v6679 = vadd.f32 %v6590, %v6678
        %v6680 = vpop.f32.mrf.mxu0
        %v6681 = vadd.f32 %v6592, %v6680
        %6682 = vmatmul.bf16.gmra.mxu0 %v6235
        %v6683 = vpop.f32.mrf.mxu0
        %v6684 = vadd.f32 %v6595, %v6683
        %v6685 = vpop.f32.mrf.mxu0
        %v6686 = vadd.f32 %v6597, %v6685
        %6687 = vmatmul.bf16.gmra.mxu0 %v6237
        %v6688 = vpop.f32.mrf.mxu0
        %v6689 = vadd.f32 %v6600, %v6688
        %v6690 = vpop.f32.mrf.mxu0
        %v6691 = vadd.f32 %v6602, %v6690
        %6692 = vmatmul.bf16.gmra.mxu0 %v6239
        %v6693 = vpop.f32.mrf.mxu0
        %v6694 = vadd.f32 %v6605, %v6693
        %v6695 = vpop.f32.mrf.mxu0
        %v6696 = vadd.f32 %v6607, %v6695
        %6697 = vmatmul.bf16.gmra.mxu0 %v6241
        %v6698 = vpop.f32.mrf.mxu0
        %v6699 = vadd.f32 %v6610, %v6698
        %v6700 = vpop.f32.mrf.mxu0
        %v6701 = vadd.f32 %v6612, %v6700
        %6702 = vmatmul.bf16.gmra.mxu0 %v6243
        %v6703 = vpop.f32.mrf.mxu0
        %v6704 = vadd.f32 %v6615, %v6703
        %v6705 = vpop.f32.mrf.mxu0
        %v6706 = vadd.f32 %v6617, %v6705
        %6707 = vmatmul.bf16.gmra.mxu0 %v6245
        %v6708 = vpop.f32.mrf.mxu0
        %v6709 = vadd.f32 %v6620, %v6708
        %v6710 = vpop.f32.mrf.mxu0
        %v6711 = vadd.f32 %v6622, %v6710
        %6712 = vmatmul.bf16.gmra.mxu0 %v6247
        %v6713 = vpop.f32.mrf.mxu0
        %v6714 = vadd.f32 %v6625, %v6713
        %v6715 = vpop.f32.mrf.mxu0
        %v6716 = vadd.f32 %v6627, %v6715
        %6717 = vmatmul.bf16.gmra.mxu0 %v6249
        %v6718 = vpop.f32.mrf.mxu0
        %v6719 = vadd.f32 %v6630, %v6718
        %v6720 = vpop.f32.mrf.mxu0
        %v6721 = vadd.f32 %v6632, %v6720
        %6722 = vmatmul.bf16.gmra.mxu0 %v6251
        %v6723 = vpop.f32.mrf.mxu0
        %v6724 = vadd.f32 %v6635, %v6723
        %v6725 = vpop.f32.mrf.mxu0
        %v6726 = vadd.f32 %v6637, %v6725
        %6727 = vdwg.mxu0
        %v6728 = vadd.f32 %v5903, %v6649
        %v6729 = vadd.f32 %v5904, %v6651
        %v6730 = vadd.f32 %v5905, %v6654
        %v6731 = vadd.f32 %v5906, %v6656
        %v6732 = vadd.f32 %v5907, %v6659
        %v6733 = vadd.f32 %v5908, %v6661
        %v6734 = vadd.f32 %v5909, %v6664
        %v6735 = vadd.f32 %v5910, %v6666
        %v6736 = vadd.f32 %v5911, %v6669
        %v6737 = vadd.f32 %v5912, %v6671
        %v6738 = vadd.f32 %v5913, %v6674
        %v6739 = vadd.f32 %v5914, %v6676
        %v6740 = vadd.f32 %v5915, %v6679
        %v6741 = vadd.f32 %v5916, %v6681
        %v6742 = vadd.f32 %v5917, %v6684
        %v6743 = vadd.f32 %v5918, %v6686
        %v6744 = vadd.f32 %v5919, %v6689
        %v6745 = vadd.f32 %v5920, %v6691
        %v6746 = vadd.f32 %v5921, %v6694
        %v6747 = vadd.f32 %v5922, %v6696
        %v6748 = vadd.f32 %v5923, %v6699
        %v6749 = vadd.f32 %v5924, %v6701
        %v6750 = vadd.f32 %v5925, %v6704
        %v6751 = vadd.f32 %v5926, %v6706
        %v6752 = vadd.f32 %v5927, %v6709
        %v6753 = vadd.f32 %v5928, %v6711
        %v6754 = vadd.f32 %v5929, %v6714
        %v6755 = vadd.f32 %v5930, %v6716
        %v6756 = vadd.f32 %v5931, %v6719
        %v6757 = vadd.f32 %v5932, %v6721
        %v6758 = vadd.f32 %v5933, %v6724
        %v6759 = vadd.f32 %v5934, %v6726
        %v6760 = vld [vmem:[%s320 + $0x20] sm:$0xf]
        %v6761 = vld [vmem:[%s320 + $0x24] sm:$0xf]
        %v6762 = vld [vmem:[%s320 + $0x28] sm:$0xf]
        %v6763 = vld [vmem:[%s320 + $0x2c] sm:$0xf]
        %v6764 = vld [vmem:[%s320 + $0x30] sm:$0xf]
        %v6765 = vld [vmem:[%s320 + $0x34] sm:$0xf]
        %v6766 = vld [vmem:[%s320 + $0x38] sm:$0xf]
        %v6767 = vld [vmem:[%s320 + $0x3c] sm:$0xf]
        %v6768 = vld [vmem:[%s320 + $0x40] sm:$0xf]
        %v6769 = vld [vmem:[%s320 + $0x44] sm:$0xf]
        %v6770 = vld [vmem:[%s320 + $0x48] sm:$0xf]
        %v6771 = vld [vmem:[%s320 + $0x4c] sm:$0xf]
        %v6772 = vld [vmem:[%s320 + $0x50] sm:$0xf]
        %v6773 = vld [vmem:[%s320 + $0x54] sm:$0xf]
        %v6774 = vld [vmem:[%s320 + $0x58] sm:$0xf]
        %v6775 = vld [vmem:[%s320 + $0x5c] sm:$0xf]
        %v6776 = vld [vmem:[%s320 + $0x60] sm:$0xf]
        %v6777 = vld [vmem:[%s320 + $0x64] sm:$0xf]
        %v6778 = vld [vmem:[%s320 + $0x68] sm:$0xf]
        %v6779 = vld [vmem:[%s320 + $0x6c] sm:$0xf]
        %v6780 = vld [vmem:[%s320 + $0x70] sm:$0xf]
        %v6781 = vld [vmem:[%s320 + $0x74] sm:$0xf]
        %v6782 = vld [vmem:[%s320 + $0x78] sm:$0xf]
        %v6783 = vld [vmem:[%s320 + $0x7c] sm:$0xf]
        %v6784 = vld [vmem:[%s320 + $0x80] sm:$0xf]
        %v6785 = vld [vmem:[%s320 + $0x84] sm:$0xf]
        %v6786 = vld [vmem:[%s320 + $0x88] sm:$0xf]
        %v6787 = vld [vmem:[%s320 + $0x8c] sm:$0xf]
        %v6788 = vld [vmem:[%s320 + $0x90] sm:$0xf]
        %v6789 = vld [vmem:[%s320 + $0x94] sm:$0xf]
        %v6790 = vld [vmem:[%s320 + $0x98] sm:$0xf]
        %v6791 = vld [vmem:[%s320 + $0x9c] sm:$0xf]
        %v6792 = vld [vmem:[%s320 + $0xa0] sm:$0x1]
        %v6793 = vld [vmem:[%s6] sm:$0x1]
        %v6794 = vld [vmem:[#allocation9] sm:$0xf]
        %v6795 = vld [vmem:[#allocation9 + $0x4] sm:$0xf]
        %v6796 = vld [vmem:[#allocation9 + $0x8] sm:$0xf]
        %v6797 = vld [vmem:[#allocation9 + $0xc] sm:$0xf]
        %v6798 = vld [vmem:[#allocation9 + $0x10] sm:$0xf]
        %v6799 = vld [vmem:[#allocation9 + $0x14] sm:$0xf]
        %v6800 = vld [vmem:[#allocation9 + $0x18] sm:$0xf]
        %v6801 = vld [vmem:[#allocation9 + $0x1c] sm:$0xf]
        %v6802 = vld [vmem:[#allocation9 + $0x20] sm:$0xf]
        %v6803 = vld [vmem:[#allocation9 + $0x24] sm:$0xf]
        %v6804 = vld [vmem:[#allocation9 + $0x28] sm:$0xf]
        %v6805 = vld [vmem:[#allocation9 + $0x2c] sm:$0xf]
        %v6806 = vld [vmem:[#allocation9 + $0x30] sm:$0xf]
        %v6807 = vld [vmem:[#allocation9 + $0x34] sm:$0xf]
        %v6808 = vld [vmem:[#allocation9 + $0x38] sm:$0xf]
        %v6809 = vld [vmem:[#allocation9 + $0x3c] sm:$0xf]
        %v6843 = vunpack.c.l.b16 %v6760
        %v6844 = vunpack.c.l.b16 %v6761
        %v6845 = vunpack.c.l.b16 %v6762
        %v6846 = vunpack.c.l.b16 %v6763
        %v6847 = vunpack.c.l.b16 %v6764
        %v6848 = vunpack.c.l.b16 %v6765
        %v6849 = vunpack.c.l.b16 %v6766
        %v6850 = vunpack.c.l.b16 %v6767
        %v6851 = vunpack.c.l.b16 %v6768
        %v6852 = vunpack.c.l.b16 %v6769
        %v6853 = vunpack.c.l.b16 %v6770
        %v6854 = vunpack.c.l.b16 %v6771
        %v6855 = vunpack.c.l.b16 %v6772
        %v6856 = vunpack.c.l.b16 %v6773
        %v6857 = vunpack.c.l.b16 %v6774
        %v6858 = vunpack.c.l.b16 %v6775
        %v6859 = vunpack.c.l.b16 %v6776
        %v6860 = vunpack.c.l.b16 %v6777
        %v6861 = vunpack.c.l.b16 %v6778
        %v6862 = vunpack.c.l.b16 %v6779
        %v6863 = vunpack.c.l.b16 %v6780
        %v6864 = vunpack.c.l.b16 %v6781
        %v6865 = vunpack.c.l.b16 %v6782
        %v6866 = vunpack.c.l.b16 %v6783
        %v6867 = vunpack.c.l.b16 %v6784
        %v6868 = vunpack.c.l.b16 %v6785
        %v6869 = vunpack.c.l.b16 %v6786
        %v6870 = vunpack.c.l.b16 %v6787
        %v6871 = vunpack.c.l.b16 %v6788
        %v6872 = vunpack.c.l.b16 %v6789
        %v6873 = vunpack.c.l.b16 %v6790
        %v6874 = vunpack.c.l.b16 %v6791
        %v6875 = vunpack.c.l.b16 %v6792
        %v6876 = vpack.c.b16 %v6844, %v6843
        %v6877 = vpack.c.b16 %v6846, %v6845
        %v6878 = vpack.c.b16 %v6848, %v6847
        %v6879 = vpack.c.b16 %v6850, %v6849
        %v6880 = vpack.c.b16 %v6852, %v6851
        %v6881 = vpack.c.b16 %v6854, %v6853
        %v6882 = vpack.c.b16 %v6856, %v6855
        %v6883 = vpack.c.b16 %v6858, %v6857
        %v6884 = vpack.c.b16 %v6860, %v6859
        %v6885 = vpack.c.b16 %v6862, %v6861
        %v6886 = vpack.c.b16 %v6864, %v6863
        %v6887 = vpack.c.b16 %v6866, %v6865
        %v6888 = vpack.c.b16 %v6868, %v6867
        %v6889 = vpack.c.b16 %v6870, %v6869
        %v6890 = vpack.c.b16 %v6872, %v6871
        %v6891 = vpack.c.b16 %v6874, %v6873
        %v6892 = vpack.c.b16 %v6875, %v6875
        %v6894 = vshrl.u32 %v6876, 16
        %v6896 = vshll.u32 %v6876, 16
        %v6898 = vrot.slane %v6896, 1
        %v6899 = vor.u32 %v6894, %v6898
        %v6901 = vshll.u32 %v6877, 16
        %v6903 = vrot.slane %v6901, 1
        %v6904 = vsel %vm536, %v6899, %v6903
        %v6905 = vshrl.u32 %v6877, 16
        %v6907 = vor.u32 %v6905, %v6903
        %v6909 = vshll.u32 %v6878, 16
        %v6911 = vrot.slane %v6909, 1
        %v6912 = vsel %vm536, %v6907, %v6911
        %v6913 = vshrl.u32 %v6878, 16
        %v6915 = vor.u32 %v6913, %v6911
        %v6917 = vshll.u32 %v6879, 16
        %v6919 = vrot.slane %v6917, 1
        %v6920 = vsel %vm536, %v6915, %v6919
        %v6921 = vshrl.u32 %v6879, 16
        %v6923 = vor.u32 %v6921, %v6919
        %v6925 = vshll.u32 %v6880, 16
        %v6927 = vrot.slane %v6925, 1
        %v6928 = vsel %vm536, %v6923, %v6927
        %v6929 = vshrl.u32 %v6880, 16
        %v6931 = vor.u32 %v6929, %v6927
        %v6933 = vshll.u32 %v6881, 16
        %v6935 = vrot.slane %v6933, 1
        %v6936 = vsel %vm536, %v6931, %v6935
        %v6937 = vshrl.u32 %v6881, 16
        %v6939 = vor.u32 %v6937, %v6935
        %v6941 = vshll.u32 %v6882, 16
        %v6943 = vrot.slane %v6941, 1
        %v6944 = vsel %vm536, %v6939, %v6943
        %v6945 = vshrl.u32 %v6882, 16
        %v6947 = vor.u32 %v6945, %v6943
        %v6949 = vshll.u32 %v6883, 16
        %v6951 = vrot.slane %v6949, 1
        %v6952 = vsel %vm536, %v6947, %v6951
        %v6953 = vshrl.u32 %v6883, 16
        %v6955 = vor.u32 %v6953, %v6951
        %v6957 = vshll.u32 %v6884, 16
        %v6959 = vrot.slane %v6957, 1
        %v6960 = vsel %vm536, %v6955, %v6959
        %v6961 = vshrl.u32 %v6884, 16
        %v6963 = vor.u32 %v6961, %v6959
        %v6965 = vshll.u32 %v6885, 16
        %v6967 = vrot.slane %v6965, 1
        %v6968 = vsel %vm536, %v6963, %v6967
        %v6969 = vshrl.u32 %v6885, 16
        %v6971 = vor.u32 %v6969, %v6967
        %v6973 = vshll.u32 %v6886, 16
        %v6975 = vrot.slane %v6973, 1
        %v6976 = vsel %vm536, %v6971, %v6975
        %v6977 = vshrl.u32 %v6886, 16
        %v6979 = vor.u32 %v6977, %v6975
        %v6981 = vshll.u32 %v6887, 16
        %v6983 = vrot.slane %v6981, 1
        %v6984 = vsel %vm536, %v6979, %v6983
        %v6985 = vshrl.u32 %v6887, 16
        %v6987 = vor.u32 %v6985, %v6983
        %v6989 = vshll.u32 %v6888, 16
        %v6991 = vrot.slane %v6989, 1
        %v6992 = vsel %vm536, %v6987, %v6991
        %v6993 = vshrl.u32 %v6888, 16
        %v6995 = vor.u32 %v6993, %v6991
        %v6997 = vshll.u32 %v6889, 16
        %v6999 = vrot.slane %v6997, 1
        %v7000 = vsel %vm536, %v6995, %v6999
        %v7001 = vshrl.u32 %v6889, 16
        %v7003 = vor.u32 %v7001, %v6999
        %v7005 = vshll.u32 %v6890, 16
        %v7007 = vrot.slane %v7005, 1
        %v7008 = vsel %vm536, %v7003, %v7007
        %v7009 = vshrl.u32 %v6890, 16
        %v7011 = vor.u32 %v7009, %v7007
        %v7013 = vshll.u32 %v6891, 16
        %v7015 = vrot.slane %v7013, 1
        %v7016 = vsel %vm536, %v7011, %v7015
        %v7017 = vshrl.u32 %v6891, 16
        %v7019 = vor.u32 %v7017, %v7015
        %v7021 = vshll.u32 %v6892, 16
        %v7023 = vrot.slane %v7021, 1
        %v7024 = vsel %vm536, %v7019, %v7023
        %v7057 = vunpack.c.l.b16 %v6794
        %v7058 = vunpack.c.l.b16 %v6795
        %v7059 = vunpack.c.l.b16 %v6796
        %v7060 = vunpack.c.l.b16 %v6797
        %v7061 = vunpack.c.l.b16 %v6798
        %v7062 = vunpack.c.l.b16 %v6799
        %v7063 = vunpack.c.l.b16 %v6800
        %v7064 = vunpack.c.l.b16 %v6801
        %v7065 = vunpack.c.l.b16 %v6802
        %v7066 = vunpack.c.l.b16 %v6803
        %v7067 = vunpack.c.l.b16 %v6804
        %v7068 = vunpack.c.l.b16 %v6805
        %v7069 = vunpack.c.l.b16 %v6806
        %v7070 = vunpack.c.l.b16 %v6807
        %v7071 = vunpack.c.l.b16 %v6808
        %v7072 = vunpack.c.l.b16 %v6809
        %v7073 = vpack.c.b16 %v7058, %v7057
        %v7074 = vpack.c.b16 %v7060, %v7059
        %v7075 = vpack.c.b16 %v7062, %v7061
        %v7076 = vpack.c.b16 %v7064, %v7063
        %v7077 = vpack.c.b16 %v7066, %v7065
        %v7078 = vpack.c.b16 %v7068, %v7067
        %v7079 = vpack.c.b16 %v7070, %v7069
        %v7080 = vpack.c.b16 %v7072, %v7071
        %7089 = vmatpush.bf16.msra.mxu0 %v7080
        %7090 = vmatpush.bf16.msra.mxu0 %v7079
        %7091 = vmatpush.bf16.msra.mxu0 %v7078
        %7092 = vmatpush.bf16.msra.mxu0 %v7077
        %7093 = vmatpush.bf16.msra.mxu0 %v7076
        %7094 = vmatpush.bf16.msra.mxu0 %v7075
        %7095 = vmatpush.bf16.msra.mxu0 %v7074
        %7096 = vmatpush.bf16.msra.mxu0 %v7073
        %7097 = vmatmul.bf16.gmra.mxu0 %v6904
        %v7098 = vpop.f32.mrf.mxu0
        %v7099 = vadd.f32 0.0, %v7098
        %v7100 = vpop.f32.mrf.mxu0
        %v7101 = vadd.f32 0.0, %v7100
        %7102 = vmatmul.bf16.gmra.mxu0 %v6912
        %v7103 = vpop.f32.mrf.mxu0
        %v7104 = vadd.f32 0.0, %v7103
        %v7105 = vpop.f32.mrf.mxu0
        %v7106 = vadd.f32 0.0, %v7105
        %7107 = vmatmul.bf16.gmra.mxu0 %v6920
        %v7108 = vpop.f32.mrf.mxu0
        %v7109 = vadd.f32 0.0, %v7108
        %v7110 = vpop.f32.mrf.mxu0
        %v7111 = vadd.f32 0.0, %v7110
        %7112 = vmatmul.bf16.gmra.mxu0 %v6928
        %v7113 = vpop.f32.mrf.mxu0
        %v7114 = vadd.f32 0.0, %v7113
        %v7115 = vpop.f32.mrf.mxu0
        %v7116 = vadd.f32 0.0, %v7115
        %7117 = vmatmul.bf16.gmra.mxu0 %v6936
        %v7118 = vpop.f32.mrf.mxu0
        %v7119 = vadd.f32 0.0, %v7118
        %v7120 = vpop.f32.mrf.mxu0
        %v7121 = vadd.f32 0.0, %v7120
        %7122 = vmatmul.bf16.gmra.mxu0 %v6944
        %v7123 = vpop.f32.mrf.mxu0
        %v7124 = vadd.f32 0.0, %v7123
        %v7125 = vpop.f32.mrf.mxu0
        %v7126 = vadd.f32 0.0, %v7125
        %7127 = vmatmul.bf16.gmra.mxu0 %v6952
        %v7128 = vpop.f32.mrf.mxu0
        %v7129 = vadd.f32 0.0, %v7128
        %v7130 = vpop.f32.mrf.mxu0
        %v7131 = vadd.f32 0.0, %v7130
        %7132 = vmatmul.bf16.gmra.mxu0 %v6960
        %v7133 = vpop.f32.mrf.mxu0
        %v7134 = vadd.f32 0.0, %v7133
        %v7135 = vpop.f32.mrf.mxu0
        %v7136 = vadd.f32 0.0, %v7135
        %7137 = vmatmul.bf16.gmra.mxu0 %v6968
        %v7138 = vpop.f32.mrf.mxu0
        %v7139 = vadd.f32 0.0, %v7138
        %v7140 = vpop.f32.mrf.mxu0
        %v7141 = vadd.f32 0.0, %v7140
        %7142 = vmatmul.bf16.gmra.mxu0 %v6976
        %v7143 = vpop.f32.mrf.mxu0
        %v7144 = vadd.f32 0.0, %v7143
        %v7145 = vpop.f32.mrf.mxu0
        %v7146 = vadd.f32 0.0, %v7145
        %7147 = vmatmul.bf16.gmra.mxu0 %v6984
        %v7148 = vpop.f32.mrf.mxu0
        %v7149 = vadd.f32 0.0, %v7148
        %v7150 = vpop.f32.mrf.mxu0
        %v7151 = vadd.f32 0.0, %v7150
        %7152 = vmatmul.bf16.gmra.mxu0 %v6992
        %v7153 = vpop.f32.mrf.mxu0
        %v7154 = vadd.f32 0.0, %v7153
        %v7155 = vpop.f32.mrf.mxu0
        %v7156 = vadd.f32 0.0, %v7155
        %7157 = vmatmul.bf16.gmra.mxu0 %v7000
        %v7158 = vpop.f32.mrf.mxu0
        %v7159 = vadd.f32 0.0, %v7158
        %v7160 = vpop.f32.mrf.mxu0
        %v7161 = vadd.f32 0.0, %v7160
        %7162 = vmatmul.bf16.gmra.mxu0 %v7008
        %v7163 = vpop.f32.mrf.mxu0
        %v7164 = vadd.f32 0.0, %v7163
        %v7165 = vpop.f32.mrf.mxu0
        %v7166 = vadd.f32 0.0, %v7165
        %7167 = vmatmul.bf16.gmra.mxu0 %v7016
        %v7168 = vpop.f32.mrf.mxu0
        %v7169 = vadd.f32 0.0, %v7168
        %v7170 = vpop.f32.mrf.mxu0
        %v7171 = vadd.f32 0.0, %v7170
        %7172 = vmatmul.bf16.gmra.mxu0 %v7024
        %v7173 = vpop.f32.mrf.mxu0
        %v7174 = vadd.f32 0.0, %v7173
        %v7175 = vpop.f32.mrf.mxu0
        %v7176 = vadd.f32 0.0, %v7175
        %7177 = vdwg.mxu0
        %v7179 = vperm.slane %v6793, 0
        %v7181 = vadd.f32 %v7179, %v7099
        %v7182 = vadd.f32 %v7179, %v7101
        %v7183 = vadd.f32 %v7179, %v7104
        %v7184 = vadd.f32 %v7179, %v7106
        %v7185 = vadd.f32 %v7179, %v7109
        %v7186 = vadd.f32 %v7179, %v7111
        %v7187 = vadd.f32 %v7179, %v7114
        %v7188 = vadd.f32 %v7179, %v7116
        %v7189 = vadd.f32 %v7179, %v7119
        %v7190 = vadd.f32 %v7179, %v7121
        %v7191 = vadd.f32 %v7179, %v7124
        %v7192 = vadd.f32 %v7179, %v7126
        %v7193 = vadd.f32 %v7179, %v7129
        %v7194 = vadd.f32 %v7179, %v7131
        %v7195 = vadd.f32 %v7179, %v7134
        %v7196 = vadd.f32 %v7179, %v7136
        %v7197 = vadd.f32 %v7179, %v7139
        %v7198 = vadd.f32 %v7179, %v7141
        %v7199 = vadd.f32 %v7179, %v7144
        %v7200 = vadd.f32 %v7179, %v7146
        %v7201 = vadd.f32 %v7179, %v7149
        %v7202 = vadd.f32 %v7179, %v7151
        %v7203 = vadd.f32 %v7179, %v7154
        %v7204 = vadd.f32 %v7179, %v7156
        %v7205 = vadd.f32 %v7179, %v7159
        %v7206 = vadd.f32 %v7179, %v7161
        %v7207 = vadd.f32 %v7179, %v7164
        %v7208 = vadd.f32 %v7179, %v7166
        %v7209 = vadd.f32 %v7179, %v7169
        %v7210 = vadd.f32 %v7179, %v7171
        %v7211 = vadd.f32 %v7179, %v7174
        %v7212 = vadd.f32 %v7179, %v7176
        %v7213 = vadd.f32 %v6728, %v7181
        %v7214 = vadd.f32 %v6729, %v7182
        %v7215 = vadd.f32 %v6730, %v7183
        %v7216 = vadd.f32 %v6731, %v7184
        %v7217 = vadd.f32 %v6732, %v7185
        %v7218 = vadd.f32 %v6733, %v7186
        %v7219 = vadd.f32 %v6734, %v7187
        %v7220 = vadd.f32 %v6735, %v7188
        %v7221 = vadd.f32 %v6736, %v7189
        %v7222 = vadd.f32 %v6737, %v7190
        %v7223 = vadd.f32 %v6738, %v7191
        %v7224 = vadd.f32 %v6739, %v7192
        %v7225 = vadd.f32 %v6740, %v7193
        %v7226 = vadd.f32 %v6741, %v7194
        %v7227 = vadd.f32 %v6742, %v7195
        %v7228 = vadd.f32 %v6743, %v7196
        %v7229 = vadd.f32 %v6744, %v7197
        %v7230 = vadd.f32 %v6745, %v7198
        %v7231 = vadd.f32 %v6746, %v7199
        %v7232 = vadd.f32 %v6747, %v7200
        %v7233 = vadd.f32 %v6748, %v7201
        %v7234 = vadd.f32 %v6749, %v7202
        %v7235 = vadd.f32 %v6750, %v7203
        %v7236 = vadd.f32 %v6751, %v7204
        %v7237 = vadd.f32 %v6752, %v7205
        %v7238 = vadd.f32 %v6753, %v7206
        %v7239 = vadd.f32 %v6754, %v7207
        %v7240 = vadd.f32 %v6755, %v7208
        %v7241 = vadd.f32 %v6756, %v7209
        %v7242 = vadd.f32 %v6757, %v7210
        %v7243 = vadd.f32 %v6758, %v7211
        %v7244 = vadd.f32 %v6759, %v7212
        %v7245 = vmul.f32 %v7213, 0.01
        %v7246 = vmul.f32 %v7214, 0.01
        %v7247 = vmul.f32 %v7215, 0.01
        %v7248 = vmul.f32 %v7216, 0.01
        %v7249 = vmul.f32 %v7217, 0.01
        %v7250 = vmul.f32 %v7218, 0.01
        %v7251 = vmul.f32 %v7219, 0.01
        %v7252 = vmul.f32 %v7220, 0.01
        %v7253 = vmul.f32 %v7221, 0.01
        %v7254 = vmul.f32 %v7222, 0.01
        %v7255 = vmul.f32 %v7223, 0.01
        %v7256 = vmul.f32 %v7224, 0.01
        %v7257 = vmul.f32 %v7225, 0.01
        %v7258 = vmul.f32 %v7226, 0.01
        %v7259 = vmul.f32 %v7227, 0.01
        %v7260 = vmul.f32 %v7228, 0.01
        %v7261 = vmul.f32 %v7229, 0.01
        %v7262 = vmul.f32 %v7230, 0.01
        %v7263 = vmul.f32 %v7231, 0.01
        %v7264 = vmul.f32 %v7232, 0.01
        %v7265 = vmul.f32 %v7233, 0.01
        %v7266 = vmul.f32 %v7234, 0.01
        %v7267 = vmul.f32 %v7235, 0.01
        %v7268 = vmul.f32 %v7236, 0.01
        %v7269 = vmul.f32 %v7237, 0.01
        %v7270 = vmul.f32 %v7238, 0.01
        %v7271 = vmul.f32 %v7239, 0.01
        %v7272 = vmul.f32 %v7240, 0.01
        %v7273 = vmul.f32 %v7241, 0.01
        %v7274 = vmul.f32 %v7242, 0.01
        %v7275 = vmul.f32 %v7243, 0.01
        %v7276 = vmul.f32 %v7244, 0.01
        %v7277 = vmax.f32 %v7213, %v7245
        %v7278 = vmax.f32 %v7214, %v7246
        %v7279 = vmax.f32 %v7215, %v7247
        %v7280 = vmax.f32 %v7216, %v7248
        %v7281 = vmax.f32 %v7217, %v7249
        %v7282 = vmax.f32 %v7218, %v7250
        %v7283 = vmax.f32 %v7219, %v7251
        %v7284 = vmax.f32 %v7220, %v7252
        %v7285 = vmax.f32 %v7221, %v7253
        %v7286 = vmax.f32 %v7222, %v7254
        %v7287 = vmax.f32 %v7223, %v7255
        %v7288 = vmax.f32 %v7224, %v7256
        %v7289 = vmax.f32 %v7225, %v7257
        %v7290 = vmax.f32 %v7226, %v7258
        %v7291 = vmax.f32 %v7227, %v7259
        %v7292 = vmax.f32 %v7228, %v7260
        %v7293 = vmax.f32 %v7229, %v7261
        %v7294 = vmax.f32 %v7230, %v7262
        %v7295 = vmax.f32 %v7231, %v7263
        %v7296 = vmax.f32 %v7232, %v7264
        %v7297 = vmax.f32 %v7233, %v7265
        %v7298 = vmax.f32 %v7234, %v7266
        %v7299 = vmax.f32 %v7235, %v7267
        %v7300 = vmax.f32 %v7236, %v7268
        %v7301 = vmax.f32 %v7237, %v7269
        %v7302 = vmax.f32 %v7238, %v7270
        %v7303 = vmax.f32 %v7239, %v7271
        %v7304 = vmax.f32 %v7240, %v7272
        %v7305 = vmax.f32 %v7241, %v7273
        %v7306 = vmax.f32 %v7242, %v7274
        %v7307 = vmax.f32 %v7243, %v7275
        %v7308 = vmax.f32 %v7244, %v7276
        %7309 = vst [vmem:[%s366] sm:$0xff] %v7277
        %7310 = vst [vmem:[%s366 + $0x8] sm:$0xff] %v7278
        %7311 = vst [vmem:[%s366 + $0x10] sm:$0xff] %v7279
        %7312 = vst [vmem:[%s366 + $0x18] sm:$0xff] %v7280
        %7313 = vst [vmem:[%s366 + $0x20] sm:$0xff] %v7281
        %7314 = vst [vmem:[%s366 + $0x28] sm:$0xff] %v7282
        %7315 = vst [vmem:[%s366 + $0x30] sm:$0xff] %v7283
        %7316 = vst [vmem:[%s366 + $0x38] sm:$0xff] %v7284
        %7317 = vst [vmem:[%s366 + $0x40] sm:$0xff] %v7285
        %7318 = vst [vmem:[%s366 + $0x48] sm:$0xff] %v7286
        %7319 = vst [vmem:[%s366 + $0x50] sm:$0xff] %v7287
        %7320 = vst [vmem:[%s366 + $0x58] sm:$0xff] %v7288
        %7321 = vst [vmem:[%s366 + $0x60] sm:$0xff] %v7289
        %7322 = vst [vmem:[%s366 + $0x68] sm:$0xff] %v7290
        %7323 = vst [vmem:[%s366 + $0x70] sm:$0xff] %v7291
        %7324 = vst [vmem:[%s366 + $0x78] sm:$0xff] %v7292
        %7325 = vst [vmem:[%s366 + $0x80] sm:$0xff] %v7293
        %7326 = vst [vmem:[%s366 + $0x88] sm:$0xff] %v7294
        %7327 = vst [vmem:[%s366 + $0x90] sm:$0xff] %v7295
        %7328 = vst [vmem:[%s366 + $0x98] sm:$0xff] %v7296
        %7329 = vst [vmem:[%s366 + $0xa0] sm:$0xff] %v7297
        %7330 = vst [vmem:[%s366 + $0xa8] sm:$0xff] %v7298
        %7331 = vst [vmem:[%s366 + $0xb0] sm:$0xff] %v7299
        %7332 = vst [vmem:[%s366 + $0xb8] sm:$0xff] %v7300
        %7333 = vst [vmem:[%s366 + $0xc0] sm:$0xff] %v7301
        %7334 = vst [vmem:[%s366 + $0xc8] sm:$0xff] %v7302
        %7335 = vst [vmem:[%s366 + $0xd0] sm:$0xff] %v7303
        %7336 = vst [vmem:[%s366 + $0xd8] sm:$0xff] %v7304
        %7337 = vst [vmem:[%s366 + $0xe0] sm:$0xff] %v7305
        %7338 = vst [vmem:[%s366 + $0xe8] sm:$0xff] %v7306
        %7339 = vst [vmem:[%s366 + $0xf0] sm:$0xff] %v7307
        %7340 = vst [vmem:[%s366 + $0xf8] sm:$0xff] %v7308
        %s7341 = sand.u32 %s202, 1
        %s7342 = scalar_lea.sflag [#allocation5], %s7341
        %s7343 = sand.u32 %s202, 1
        %s7344 = smul.addr %s7343, 256
        %s7345 = scalar_lea.vmem [#allocation11], %s7344
        // Predicated region
        $region65: #{tpu_custom_call.1} parent=47 // pred_check
          %p7346 = pneg %p212
        $region66: #{tpu_custom_call.1} parent=47 // pred_check_branch
          %7348 = sbr.rel (%p7346) target = $region68
        $region67: #{tpu_custom_call.1} parent=47 // pred_region
          %s7349 = smul.u32 32, %s31
          %7351 = vsyncadd %s7342, 0
          %s7352 = smul.addr %s30, 64
          %s7353 = sadd.s32 %s7349, %s7352
          %s7354 = smul.addr %s7353, 8
          %s7355 = scalar_lea.hbm %s7, %s7354
          %s7356 = sshll.u32 %s7345, 4
          %s7357 = int_to_ptr.vmem [resolvable:$true] %s7356
          %s7358 = sshll.u32 %s7355, 4
          %s7359 = int_to_ptr.hbm [resolvable:$true] %s7358
          %7364 = dma.vmem_to_hbm [thread:$0]  %s7357, 4096, %s7359, %s7342, 128, 128, 8
        $region68: #{tpu_custom_call.1} parent=47 // pred_fallthru
          _
      $region48: #{tpu_custom_call.1} parent=5 // pred_fallthru
        _
      %p7365 = scmp.le.s32.totalorder 2, %s21
      // Predicated region
      $region69: #{tpu_custom_call.1} parent=5 // pred_check
        %p7366 = pneg %p7365
      $region70: #{tpu_custom_call.1} parent=5 // pred_check_branch
        %7368 = sbr.rel (%p7366) target = $region72
      $region71: #{tpu_custom_call.1} parent=5 // pred_region
        %s7369 = ssub.s32 %s21, 2
        // Predicated region
        $region73: #{tpu_custom_call.1} parent=71 // pred_check
          %p7370 = pneg %p218
        $region74: #{tpu_custom_call.1} parent=71 // pred_check_branch
          %7372 = sbr.rel (%p7370) target = $region76
        $region75: #{tpu_custom_call.1} parent=71 // pred_region
          %s7373 = sand.u32 %s203, 1
          %s7374 = scalar_lea.sflag [#allocation5], %s7373
          %s7375 = sand.u32 %s203, 1
          %s7376 = smul.addr %s7375, 256
          %s7377 = scalar_lea.vmem [#allocation11], %s7376
          %7379 = dma.done %s7374, 4096
        $region76: #{tpu_custom_call.1} parent=71 // pred_fallthru
          _
      $region72: #{tpu_custom_call.1} parent=5 // pred_fallthru
        _
    $region6: #{tpu_custom_call.1} parent=1 // loop_footer
      %s25 = sadd.s32 1, %s21
    $region7: #{tpu_custom_call.1} parent=1 // loop_footer_branch
      %20 = sbr.rel target = $region3
    $region8: #{tpu_custom_call.1} parent=1 // loop_exit
      _
    %7380 = vsyncpa [#allocation4], 1
    %s7381 = scalar_lea.sflag [#allocation4], 1
    %7382 = vsyncpa %s7381, 1
    %7383 = vsyncpa [#allocation7], 1
    %7384 = vsyncpa [#allocation10], 1
    %7385 = vsyncpa [#allocation5], 1
    %s7386 = scalar_lea.sflag [#allocation5], 1
    %7387 = vsyncpa %s7386, 1

</llo_original>
